<compile_context>
chip_gen: v7x
topology: tpu7x:2x2x1
jax: 0.10.0
libtpu: 0.0.40
codegen_flags: <defaults>
</compile_context>

<pallas_src>
import math

import jax
import jax.numpy as jnp
from jax import lax
from jax.experimental import pallas as pl


# ----------------------------- config ---------------------------------------
B = 2            # batch
C = 4            # num_channels
IMG = 16         # H = W
FH = FW = 4      # patch size (fh, fw); slide_step = 0 -> stride = patch
GH = IMG // FH
GW = IMG // FW
S = GH * GW      # seq_len = 16
K = C * FH * FW  # flattened patch dim = 64
D = 32           # hidden_size
NH = 4           # num_attention_heads
DH = D // NH     # head dim = 8
FF = 64          # intermediate_size
NL = 2           # num_hidden_layers
EPS = 1e-6       # layer_norm_eps
BS = B * S       # flattened (batch, seq) rows = 32

# ---- packed-slab layout (shared between pack_params and the kernel) ---------
LANES = 128
# bf16 weight slab rows: patch_w, then per layer: [qkv|wo] (D rows), w1 (D rows), w2 (FF rows)
LAYER_W_ROWS = 2 * D + FF                      # 128
W_ROWS = K + NL * LAYER_W_ROWS                 # 320 (multiple of bf16 sublane tile 16)
# f32 param slab rows: posb (BS rows), then 8 rows per layer, then encoder-norm row
LAYER_P_ROWS = 8
EROW = BS + NL * LAYER_P_ROWS                  # 48
P_ROWS = EROW + 8                              # 56 (multiple of f32 sublane tile 8)


# ----------------------------- in-kernel helpers ------------------------------
def _layernorm(x, w, b, eps=EPS):
    # x: (rows, D) f32, w/b: (1, D) f32
    mean = jnp.mean(x, axis=-1, keepdims=True)
    var = jnp.mean(jnp.square(x - mean), axis=-1, keepdims=True)
    return (x - mean) * jax.lax.rsqrt(var + eps) * w + b


def _softmax(s):
    # f32 softmax; reciprocal goes to the (otherwise idle) EUP slot.
    m = jnp.max(s, axis=-1, keepdims=True)
    p = jnp.exp(s - m)
    return p * pl.reciprocal(jnp.sum(p, axis=-1, keepdims=True), approx=True)


# ----------------------------- fused forward kernel ---------------------------
def vit_fused_kernel(xp_ref, w_ref, p_ref, o_ref):
    # ---- patch embedding: (BS, K)bf16 @ (K, D)bf16 + (pos_emb + conv bias) ----
    x = jnp.dot(xp_ref[0:BS, 0:K], w_ref[0:K, 0:D],
                preferred_element_type=jnp.float32)
    x = x + p_ref[0:BS, 0:D]                                 # (BS, D) f32 residual stream

    for l in range(NL):                                      # static layer unroll
        wb = K + l * LAYER_W_ROWS                            # weight-slab row base
        pb = BS + l * LAYER_P_ROWS                           # param-slab row base

        ln1w = p_ref[pb:pb + 1, 0:D]
        ln1b = p_ref[pb:pb + 1, D:2 * D]
        ln2w = p_ref[pb:pb + 1, 2 * D:3 * D]
        ln2b = p_ref[pb:pb + 1, 3 * D:4 * D]
        qkv_b = p_ref[pb + 1:pb + 2, 0:3 * D]
        wo_b = p_ref[pb + 1:pb + 2, 3 * D:4 * D]
        b1 = p_ref[pb + 2:pb + 3, 0:FF]
        b2 = p_ref[pb + 2:pb + 3, FF:FF + D]

        # ---- MHSA (pre-norm), fused QKV, 1/sqrt(DH) folded into Wq ----
        h = _layernorm(x, ln1w, ln1b).astype(jnp.bfloat16)   # (BS, D) bf16
        qkv = jnp.dot(h, w_ref[wb:wb + D, 0:3 * D],
                      preferred_element_type=jnp.float32) + qkv_b      # (BS, 3D) f32
        qkv_bf = qkv.astype(jnp.bfloat16)                    # hoisted cast: 1 per layer

        ctx_rows = []
        for bb in range(B):                                  # static batch unroll
            qkv_row = qkv_bf[bb * S:(bb + 1) * S, :]         # (S, 3D) bf16
            heads = []
            for hh in range(NH):                             # static head unroll
                qh = qkv_row[:, hh * DH:(hh + 1) * DH]                     # (S, DH)
                kh = qkv_row[:, D + hh * DH:D + (hh + 1) * DH]             # (S, DH)
                vh = qkv_row[:, 2 * D + hh * DH:2 * D + (hh + 1) * DH]     # (S, DH)
                # q @ k^T without an explicit XLU transpose: contract last dims on MXU
                s = lax.dot_general(qh, kh, (((1,), (1,)), ((), ())),
                                    preferred_element_type=jnp.float32)    # (S, S)
                pmat = _softmax(s)                                         # (S, S) f32
                heads.append(jnp.dot(pmat.astype(jnp.bfloat16), vh,
                                     preferred_element_type=jnp.float32))  # (S, DH)
            ctx_rows.append(jnp.concatenate(heads, axis=1))  # lane-concat -> (S, D)
        ctx = jnp.concatenate(ctx_rows, axis=0).astype(jnp.bfloat16)       # (BS, D)
        # single Wo matmul per layer (head-major rows of Wo match ctx lane order)
        attn = jnp.dot(ctx, w_ref[wb:wb + D, 3 * D:4 * D],
                       preferred_element_type=jnp.float32) + wo_b          # (BS, D)
        x = x + attn                                         # residual 1

        # ---- MLP (pre-norm) ----
        h2 = _layernorm(x, ln2w, ln2b).astype(jnp.bfloat16)
        f = jnp.dot(h2, w_ref[wb + D:wb + 2 * D, 0:FF],
                    preferred_element_type=jnp.float32) + b1               # (BS, FF)
        # TODO(synk): PyTorch nn.GELU default is exact erf; tanh approximation used.
        f = jax.nn.gelu(f, approximate=True).astype(jnp.bfloat16)
        f = jnp.dot(f, w_ref[wb + 2 * D:wb + 2 * D + FF, 0:D],
                    preferred_element_type=jnp.float32) + b2               # (BS, D)
        x = x + f                                            # residual 2

    # ---- final encoder LayerNorm + tanh head ----
    y = _layernorm(x, p_ref[EROW:EROW + 1, 0:D], p_ref[EROW:EROW + 1, D:2 * D])
    o_ref[...] = jnp.tanh(y)


# ----------------------------- parameter init (deterministic) -----------------
def xavier_uniform(key, shape):
    fan_in, fan_out = shape[0], shape[1]
    limit = math.sqrt(6.0 / (fan_in + fan_out))
    return jax.random.uniform(key, shape, jnp.float32, -limit, limit)


def init_params(key):
    keys = iter(jax.random.split(key, 64))
    p = {}
    # Conv2d(C, D, (fh, fw), stride=(fh, fw)) expressed as matmul (K, D) + bias (1, D)
    p["patch_w"] = xavier_uniform(next(keys), (K, D))
    p["patch_b"] = jax.random.normal(next(keys), (1, D)) * 1e-6
    # learned positional embedding, std 0.02
    p["pos"] = jax.random.normal(next(keys), (S, D)) * 0.02
    blocks = []
    for _ in range(NL):
        blocks.append(dict(
            ln1w=jnp.ones((1, D), jnp.float32),
            ln1b=jnp.zeros((1, D), jnp.float32),
            wq=xavier_uniform(next(keys), (D, D)),
            bq=jax.random.normal(next(keys), (1, D)) * 1e-6,
            wk=xavier_uniform(next(keys), (D, D)),
            bk=jax.random.normal(next(keys), (1, D)) * 1e-6,
            wv=xavier_uniform(next(keys), (D, D)),
            bv=jax.random.normal(next(keys), (1, D)) * 1e-6,
            wo=xavier_uniform(next(keys), (D, D)),
            bo=jax.random.normal(next(keys), (1, D)) * 1e-6,
            ln2w=jnp.ones((1, D), jnp.float32),
            ln2b=jnp.zeros((1, D), jnp.float32),
            w1=xavier_uniform(next(keys), (D, FF)),
            b1=jax.random.normal(next(keys), (1, FF)) * 1e-6,
            w2=xavier_uniform(next(keys), (FF, D)),
            b2=jax.random.normal(next(keys), (1, D)) * 1e-6,
        ))
    p["blocks"] = blocks
    p["enorm_w"] = jnp.ones((1, D), jnp.float32)
    p["enorm_b"] = jnp.zeros((1, D), jnp.float32)
    return p


def pack_params(p):
    """Fold scale / conv bias, fuse QKV, and pack everything into two lane-dense
    128-wide slabs: one bf16 MXU-weight slab and one f32 param/bias slab."""
    scale = 1.0 / math.sqrt(DH)

    # ---- bf16 weight slab (W_ROWS, 128) ----
    w = jnp.zeros((W_ROWS, LANES), jnp.float32)
    w = w.at[0:K, 0:D].set(p["patch_w"])
    for l, blk in enumerate(p["blocks"]):
        base = K + l * LAYER_W_ROWS
        qkv_w = jnp.concatenate([blk["wq"] * scale, blk["wk"], blk["wv"]], axis=1)  # (D, 3D)
        w = w.at[base:base + D, 0:3 * D].set(qkv_w)
        w = w.at[base:base + D, 3 * D:4 * D].set(blk["wo"])                         # (D, D)
        w = w.at[base + D:base + 2 * D, 0:FF].set(blk["w1"])                        # (D, FF)
        w = w.at[base + 2 * D:base + 2 * D + FF, 0:D].set(blk["w2"])                # (FF, D)
    wslab = w.astype(jnp.bfloat16)

    # ---- f32 param slab (P_ROWS, 128) ----
    ps = jnp.zeros((P_ROWS, LANES), jnp.float32)
    posb = jnp.tile(p["pos"] + p["patch_b"], (B, 1))                                # (BS, D)
    ps = ps.at[0:BS, 0:D].set(posb)
    for l, blk in enumerate(p["blocks"]):
        base = BS + l * LAYER_P_ROWS
        ln_row = jnp.concatenate([blk["ln1w"], blk["ln1b"],
                                  blk["ln2w"], blk["ln2b"]], axis=1)                # (1, 128)
        ps = ps.at[base, :].set(ln_row[0])
        qkv_b = jnp.concatenate([blk["bq"] * scale, blk["bk"], blk["bv"]], axis=1)  # (1, 3D)
        ps = ps.at[base + 1, 0:3 * D].set(qkv_b[0])
        ps = ps.at[base + 1, 3 * D:4 * D].set(blk["bo"][0])
        ps = ps.at[base + 2, 0:FF].set(blk["b1"][0])
        ps = ps.at[base + 2, FF:FF + D].set(blk["b2"][0])
    ps = ps.at[EROW, 0:D].set(p["enorm_w"][0])
    ps = ps.at[EROW, D:2 * D].set(p["enorm_b"][0])

    return dict(wslab=wslab, pslab=ps)


# ----------------------------- full forward -----------------------------------
def extract_patches(x):
    """x: (B, C, H, W) NCHW -> (B*S, K), K flattened in (c, fh, fw) order
    matching the Conv2d(kernel == stride == patch) weight layout.
    Lives inside the same @jax.jit program that feeds pallas_call (fused, no
    separate dispatch / extra HBM round trip)."""
    xb = x.reshape(B, C, GH, FH, GW, FW)
    xb = jnp.transpose(xb, (0, 2, 4, 1, 3, 5))   # (B, gh, gw, C, fh, fw)
    return xb.reshape(BS, K)


@jax.jit
def vit_forward(x, pp):
    xp = extract_patches(x).astype(jnp.bfloat16)
    y = pl.pallas_call(
        vit_fused_kernel,
        out_shape=jax.ShapeDtypeStruct((BS, D), jnp.float32),
    )(xp, pp["wslab"], pp["pslab"])
    # TODO(synk): Depatchifier source not provided; output stays (B, S, D).
    return y.reshape(B, S, D)


# ----------------------------- main -------------------------------------------
if __name__ == "__main__":
    key = jax.random.PRNGKey(0)
    kx, kp = jax.random.split(key)
    x = jax.random.normal(kx, (B, C, IMG, IMG), dtype=jnp.float32)
    params = pack_params(init_params(kp))

    out = jax.block_until_ready(vit_forward(x, params))
    assert out.shape == (B, S, D), out.shape
    assert bool(jnp.all(jnp.isfinite(out)))
    print("KERNEL_OK")
</pallas_src>

<mosaic_0001>
module attributes {stable_mosaic.version = 11 : i64} {
  func.func @vit_fused_kernel(%arg0: memref<32x64xbf16, #tpu.memory_space<vmem>>, %arg1: memref<320x128xbf16, #tpu.memory_space<vmem>>, %arg2: memref<56x128xf32, #tpu.memory_space<vmem>>, %arg3: memref<32x32xf32, #tpu.memory_space<vmem>>) attributes {dimension_semantics = [], scalar_prefetch = 0 : i64, scratch_operands = 0 : i64, tpu.core_type = #tpu.core_type<tc>} {
    %c0 = arith.constant 0 : index
    %c0_0 = arith.constant 0 : index
    %0 = vector.load %arg0[%c0, %c0_0] : memref<32x64xbf16, #tpu.memory_space<vmem>>, vector<32x64xbf16>
    %c0_1 = arith.constant 0 : index
    %c0_2 = arith.constant 0 : index
    %1 = vector.load %arg1[%c0_1, %c0_2] : memref<320x128xbf16, #tpu.memory_space<vmem>>, vector<64x32xbf16>
    %cst = arith.constant dense<0.000000e+00> : vector<32x32xf32>
    %2 = tpu.matmul %0, %1, %cst {dimension_numbers = #tpu.dot_dimension_numbers<[1], [0], [0], [1], [0, 0, 1, 1], [], []>} : vector<32x64xbf16>, vector<64x32xbf16>, vector<32x32xf32> -> vector<32x32xf32>
    %c0_3 = arith.constant 0 : index
    %c0_4 = arith.constant 0 : index
    %3 = vector.load %arg2[%c0_3, %c0_4] : memref<56x128xf32, #tpu.memory_space<vmem>>, vector<32x32xf32>
    %4 = arith.addf %2, %3 : vector<32x32xf32>
    %c32 = arith.constant 32 : index
    %c0_5 = arith.constant 0 : index
    %5 = vector.load %arg2[%c32, %c0_5] : memref<56x128xf32, #tpu.memory_space<vmem>>, vector<1x32xf32>
    %c32_6 = arith.constant 32 : index
    %c32_7 = arith.constant 32 : index
    %6 = vector.load %arg2[%c32_6, %c32_7] : memref<56x128xf32, #tpu.memory_space<vmem>>, vector<1x32xf32>
    %c32_8 = arith.constant 32 : index
    %c64 = arith.constant 64 : index
    %7 = vector.load %arg2[%c32_8, %c64] : memref<56x128xf32, #tpu.memory_space<vmem>>, vector<1x32xf32>
    %c32_9 = arith.constant 32 : index
    %c96 = arith.constant 96 : index
    %8 = vector.load %arg2[%c32_9, %c96] : memref<56x128xf32, #tpu.memory_space<vmem>>, vector<1x32xf32>
    %c33 = arith.constant 33 : index
    %c0_10 = arith.constant 0 : index
    %9 = vector.load %arg2[%c33, %c0_10] : memref<56x128xf32, #tpu.memory_space<vmem>>, vector<1x96xf32>
    %c33_11 = arith.constant 33 : index
    %c96_12 = arith.constant 96 : index
    %10 = vector.load %arg2[%c33_11, %c96_12] : memref<56x128xf32, #tpu.memory_space<vmem>>, vector<1x32xf32>
    %c34 = arith.constant 34 : index
    %c0_13 = arith.constant 0 : index
    %11 = vector.load %arg2[%c34, %c0_13] : memref<56x128xf32, #tpu.memory_space<vmem>>, vector<1x64xf32>
    %c34_14 = arith.constant 34 : index
    %c64_15 = arith.constant 64 : index
    %12 = vector.load %arg2[%c34_14, %c64_15] : memref<56x128xf32, #tpu.memory_space<vmem>>, vector<1x32xf32>
    %cst_16 = arith.constant dense<0.000000e+00> : vector<32xf32>
    %13 = vector.multi_reduction <add>, %4, %cst_16 [1] : vector<32x32xf32> to vector<32xf32>
    %14 = vector.shape_cast %13 : vector<32xf32> to vector<32x1xf32>
    %cst_17 = arith.constant 3.200000e+01 : f32
    %15 = vector.broadcast %cst_17 : f32 to vector<32x1xf32>
    %16 = arith.divf %14, %15 : vector<32x1xf32>
    %17 = vector.broadcast %16 : vector<32x1xf32> to vector<32x32xf32>
    %18 = arith.subf %4, %17 : vector<32x32xf32>
    %19 = arith.mulf %18, %18 : vector<32x32xf32>
    %cst_18 = arith.constant dense<0.000000e+00> : vector<32xf32>
    %20 = vector.multi_reduction <add>, %19, %cst_18 [1] : vector<32x32xf32> to vector<32xf32>
    %21 = vector.shape_cast %20 : vector<32xf32> to vector<32x1xf32>
    %cst_19 = arith.constant 3.200000e+01 : f32
    %22 = vector.broadcast %cst_19 : f32 to vector<32x1xf32>
    %23 = arith.divf %21, %22 : vector<32x1xf32>
    %24 = vector.broadcast %16 : vector<32x1xf32> to vector<32x32xf32>
    %25 = arith.subf %4, %24 : vector<32x32xf32>
    %cst_20 = arith.constant 9.99999997E-7 : f32
    %26 = vector.broadcast %cst_20 : f32 to vector<32x1xf32>
    %27 = arith.addf %23, %26 : vector<32x1xf32>
    %28 = math.rsqrt %27 : vector<32x1xf32>
    %29 = vector.broadcast %28 : vector<32x1xf32> to vector<32x32xf32>
    %30 = arith.mulf %25, %29 : vector<32x32xf32>
    %31 = vector.broadcast %5 : vector<1x32xf32> to vector<32x32xf32>
    %32 = arith.mulf %30, %31 : vector<32x32xf32>
    %33 = vector.broadcast %6 : vector<1x32xf32> to vector<32x32xf32>
    %34 = arith.addf %32, %33 : vector<32x32xf32>
    %35 = arith.truncf %34 : vector<32x32xf32> to vector<32x32xbf16>
    %c64_21 = arith.constant 64 : index
    %c0_22 = arith.constant 0 : index
    %36 = vector.load %arg1[%c64_21, %c0_22] : memref<320x128xbf16, #tpu.memory_space<vmem>>, vector<32x96xbf16>
    %cst_23 = arith.constant dense<0.000000e+00> : vector<32x96xf32>
    %37 = tpu.matmul %35, %36, %cst_23 {dimension_numbers = #tpu.dot_dimension_numbers<[1], [0], [0], [1], [0, 0, 1, 1], [], []>} : vector<32x32xbf16>, vector<32x96xbf16>, vector<32x96xf32> -> vector<32x96xf32>
    %38 = vector.broadcast %9 : vector<1x96xf32> to vector<32x96xf32>
    %39 = arith.addf %37, %38 : vector<32x96xf32>
    %40 = arith.truncf %39 : vector<32x96xf32> to vector<32x96xbf16>
    %41 = vector.extract_strided_slice %40 {offsets = [0, 0], sizes = [16, 96], strides = [1, 1]} : vector<32x96xbf16> to vector<16x96xbf16>
    %42 = vector.extract_strided_slice %41 {offsets = [0, 0], sizes = [16, 8], strides = [1, 1]} : vector<16x96xbf16> to vector<16x8xbf16>
    %43 = vector.extract_strided_slice %41 {offsets = [0, 32], sizes = [16, 8], strides = [1, 1]} : vector<16x96xbf16> to vector<16x8xbf16>
    %44 = vector.extract_strided_slice %41 {offsets = [0, 64], sizes = [16, 8], strides = [1, 1]} : vector<16x96xbf16> to vector<16x8xbf16>
    %cst_24 = arith.constant dense<0.000000e+00> : vector<16x16xf32>
    %45 = tpu.matmul %42, %43, %cst_24 {dimension_numbers = #tpu.dot_dimension_numbers<[1], [1], [0], [0], [0, 0, 1, 0], [], []>} : vector<16x8xbf16>, vector<16x8xbf16>, vector<16x16xf32> -> vector<16x16xf32>
    %cst_25 = arith.constant dense<0xFF800000> : vector<16xf32>
    %46 = vector.multi_reduction <maximumf>, %45, %cst_25 [1] : vector<16x16xf32> to vector<16xf32>
    %47 = vector.shape_cast %46 : vector<16xf32> to vector<16x1xf32>
    %48 = vector.broadcast %47 : vector<16x1xf32> to vector<16x16xf32>
    %49 = arith.subf %45, %48 : vector<16x16xf32>
    %50 = math.exp %49 : vector<16x16xf32>
    %cst_26 = arith.constant dense<0.000000e+00> : vector<16xf32>
    %51 = vector.multi_reduction <add>, %50, %cst_26 [1] : vector<16x16xf32> to vector<16xf32>
    %52 = vector.shape_cast %51 : vector<16xf32> to vector<16x1xf32>
    %53 = tpu.reciprocal %52 {approx = true} : vector<16x1xf32> -> vector<16x1xf32>
    %54 = vector.broadcast %53 : vector<16x1xf32> to vector<16x16xf32>
    %55 = arith.mulf %50, %54 : vector<16x16xf32>
    %56 = arith.truncf %55 : vector<16x16xf32> to vector<16x16xbf16>
    %cst_27 = arith.constant dense<0.000000e+00> : vector<16x8xf32>
    %57 = tpu.matmul %56, %44, %cst_27 {dimension_numbers = #tpu.dot_dimension_numbers<[1], [0], [0], [1], [0, 0, 1, 1], [], []>} : vector<16x16xbf16>, vector<16x8xbf16>, vector<16x8xf32> -> vector<16x8xf32>
    %58 = vector.extract_strided_slice %41 {offsets = [0, 8], sizes = [16, 8], strides = [1, 1]} : vector<16x96xbf16> to vector<16x8xbf16>
    %59 = vector.extract_strided_slice %41 {offsets = [0, 40], sizes = [16, 8], strides = [1, 1]} : vector<16x96xbf16> to vector<16x8xbf16>
    %60 = vector.extract_strided_slice %41 {offsets = [0, 72], sizes = [16, 8], strides = [1, 1]} : vector<16x96xbf16> to vector<16x8xbf16>
    %cst_28 = arith.constant dense<0.000000e+00> : vector<16x16xf32>
    %61 = tpu.matmul %58, %59, %cst_28 {dimension_numbers = #tpu.dot_dimension_numbers<[1], [1], [0], [0], [0, 0, 1, 0], [], []>} : vector<16x8xbf16>, vector<16x8xbf16>, vector<16x16xf32> -> vector<16x16xf32>
    %cst_29 = arith.constant dense<0xFF800000> : vector<16xf32>
    %62 = vector.multi_reduction <maximumf>, %61, %cst_29 [1] : vector<16x16xf32> to vector<16xf32>
    %63 = vector.shape_cast %62 : vector<16xf32> to vector<16x1xf32>
    %64 = vector.broadcast %63 : vector<16x1xf32> to vector<16x16xf32>
    %65 = arith.subf %61, %64 : vector<16x16xf32>
    %66 = math.exp %65 : vector<16x16xf32>
    %cst_30 = arith.constant dense<0.000000e+00> : vector<16xf32>
    %67 = vector.multi_reduction <add>, %66, %cst_30 [1] : vector<16x16xf32> to vector<16xf32>
    %68 = vector.shape_cast %67 : vector<16xf32> to vector<16x1xf32>
    %69 = tpu.reciprocal %68 {approx = true} : vector<16x1xf32> -> vector<16x1xf32>
    %70 = vector.broadcast %69 : vector<16x1xf32> to vector<16x16xf32>
    %71 = arith.mulf %66, %70 : vector<16x16xf32>
    %72 = arith.truncf %71 : vector<16x16xf32> to vector<16x16xbf16>
    %cst_31 = arith.constant dense<0.000000e+00> : vector<16x8xf32>
    %73 = tpu.matmul %72, %60, %cst_31 {dimension_numbers = #tpu.dot_dimension_numbers<[1], [0], [0], [1], [0, 0, 1, 1], [], []>} : vector<16x16xbf16>, vector<16x8xbf16>, vector<16x8xf32> -> vector<16x8xf32>
    %74 = vector.extract_strided_slice %41 {offsets = [0, 16], sizes = [16, 8], strides = [1, 1]} : vector<16x96xbf16> to vector<16x8xbf16>
    %75 = vector.extract_strided_slice %41 {offsets = [0, 48], sizes = [16, 8], strides = [1, 1]} : vector<16x96xbf16> to vector<16x8xbf16>
    %76 = vector.extract_strided_slice %41 {offsets = [0, 80], sizes = [16, 8], strides = [1, 1]} : vector<16x96xbf16> to vector<16x8xbf16>
    %cst_32 = arith.constant dense<0.000000e+00> : vector<16x16xf32>
    %77 = tpu.matmul %74, %75, %cst_32 {dimension_numbers = #tpu.dot_dimension_numbers<[1], [1], [0], [0], [0, 0, 1, 0], [], []>} : vector<16x8xbf16>, vector<16x8xbf16>, vector<16x16xf32> -> vector<16x16xf32>
    %cst_33 = arith.constant dense<0xFF800000> : vector<16xf32>
    %78 = vector.multi_reduction <maximumf>, %77, %cst_33 [1] : vector<16x16xf32> to vector<16xf32>
    %79 = vector.shape_cast %78 : vector<16xf32> to vector<16x1xf32>
    %80 = vector.broadcast %79 : vector<16x1xf32> to vector<16x16xf32>
    %81 = arith.subf %77, %80 : vector<16x16xf32>
    %82 = math.exp %81 : vector<16x16xf32>
    %cst_34 = arith.constant dense<0.000000e+00> : vector<16xf32>
    %83 = vector.multi_reduction <add>, %82, %cst_34 [1] : vector<16x16xf32> to vector<16xf32>
    %84 = vector.shape_cast %83 : vector<16xf32> to vector<16x1xf32>
    %85 = tpu.reciprocal %84 {approx = true} : vector<16x1xf32> -> vector<16x1xf32>
    %86 = vector.broadcast %85 : vector<16x1xf32> to vector<16x16xf32>
    %87 = arith.mulf %82, %86 : vector<16x16xf32>
    %88 = arith.truncf %87 : vector<16x16xf32> to vector<16x16xbf16>
    %cst_35 = arith.constant dense<0.000000e+00> : vector<16x8xf32>
    %89 = tpu.matmul %88, %76, %cst_35 {dimension_numbers = #tpu.dot_dimension_numbers<[1], [0], [0], [1], [0, 0, 1, 1], [], []>} : vector<16x16xbf16>, vector<16x8xbf16>, vector<16x8xf32> -> vector<16x8xf32>
    %90 = vector.extract_strided_slice %41 {offsets = [0, 24], sizes = [16, 8], strides = [1, 1]} : vector<16x96xbf16> to vector<16x8xbf16>
    %91 = vector.extract_strided_slice %41 {offsets = [0, 56], sizes = [16, 8], strides = [1, 1]} : vector<16x96xbf16> to vector<16x8xbf16>
    %92 = vector.extract_strided_slice %41 {offsets = [0, 88], sizes = [16, 8], strides = [1, 1]} : vector<16x96xbf16> to vector<16x8xbf16>
    %cst_36 = arith.constant dense<0.000000e+00> : vector<16x16xf32>
    %93 = tpu.matmul %90, %91, %cst_36 {dimension_numbers = #tpu.dot_dimension_numbers<[1], [1], [0], [0], [0, 0, 1, 0], [], []>} : vector<16x8xbf16>, vector<16x8xbf16>, vector<16x16xf32> -> vector<16x16xf32>
    %cst_37 = arith.constant dense<0xFF800000> : vector<16xf32>
    %94 = vector.multi_reduction <maximumf>, %93, %cst_37 [1] : vector<16x16xf32> to vector<16xf32>
    %95 = vector.shape_cast %94 : vector<16xf32> to vector<16x1xf32>
    %96 = vector.broadcast %95 : vector<16x1xf32> to vector<16x16xf32>
    %97 = arith.subf %93, %96 : vector<16x16xf32>
    %98 = math.exp %97 : vector<16x16xf32>
    %cst_38 = arith.constant dense<0.000000e+00> : vector<16xf32>
    %99 = vector.multi_reduction <add>, %98, %cst_38 [1] : vector<16x16xf32> to vector<16xf32>
    %100 = vector.shape_cast %99 : vector<16xf32> to vector<16x1xf32>
    %101 = tpu.reciprocal %100 {approx = true} : vector<16x1xf32> -> vector<16x1xf32>
    %102 = vector.broadcast %101 : vector<16x1xf32> to vector<16x16xf32>
    %103 = arith.mulf %98, %102 : vector<16x16xf32>
    %104 = arith.truncf %103 : vector<16x16xf32> to vector<16x16xbf16>
    %cst_39 = arith.constant dense<0.000000e+00> : vector<16x8xf32>
    %105 = tpu.matmul %104, %92, %cst_39 {dimension_numbers = #tpu.dot_dimension_numbers<[1], [0], [0], [1], [0, 0, 1, 1], [], []>} : vector<16x16xbf16>, vector<16x8xbf16>, vector<16x8xf32> -> vector<16x8xf32>
    %106 = tpu.concatenate %57, %73, %89, %105 in 1 : vector<16x8xf32>, vector<16x8xf32>, vector<16x8xf32>, vector<16x8xf32> -> vector<16x32xf32>
    %107 = vector.extract_strided_slice %40 {offsets = [16, 0], sizes = [16, 96], strides = [1, 1]} : vector<32x96xbf16> to vector<16x96xbf16>
    %108 = vector.extract_strided_slice %107 {offsets = [0, 0], sizes = [16, 8], strides = [1, 1]} : vector<16x96xbf16> to vector<16x8xbf16>
    %109 = vector.extract_strided_slice %107 {offsets = [0, 32], sizes = [16, 8], strides = [1, 1]} : vector<16x96xbf16> to vector<16x8xbf16>
    %110 = vector.extract_strided_slice %107 {offsets = [0, 64], sizes = [16, 8], strides = [1, 1]} : vector<16x96xbf16> to vector<16x8xbf16>
    %cst_40 = arith.constant dense<0.000000e+00> : vector<16x16xf32>
    %111 = tpu.matmul %108, %109, %cst_40 {dimension_numbers = #tpu.dot_dimension_numbers<[1], [1], [0], [0], [0, 0, 1, 0], [], []>} : vector<16x8xbf16>, vector<16x8xbf16>, vector<16x16xf32> -> vector<16x16xf32>
    %cst_41 = arith.constant dense<0xFF800000> : vector<16xf32>
    %112 = vector.multi_reduction <maximumf>, %111, %cst_41 [1] : vector<16x16xf32> to vector<16xf32>
    %113 = vector.shape_cast %112 : vector<16xf32> to vector<16x1xf32>
    %114 = vector.broadcast %113 : vector<16x1xf32> to vector<16x16xf32>
    %115 = arith.subf %111, %114 : vector<16x16xf32>
    %116 = math.exp %115 : vector<16x16xf32>
    %cst_42 = arith.constant dense<0.000000e+00> : vector<16xf32>
    %117 = vector.multi_reduction <add>, %116, %cst_42 [1] : vector<16x16xf32> to vector<16xf32>
    %118 = vector.shape_cast %117 : vector<16xf32> to vector<16x1xf32>
    %119 = tpu.reciprocal %118 {approx = true} : vector<16x1xf32> -> vector<16x1xf32>
    %120 = vector.broadcast %119 : vector<16x1xf32> to vector<16x16xf32>
    %121 = arith.mulf %116, %120 : vector<16x16xf32>
    %122 = arith.truncf %121 : vector<16x16xf32> to vector<16x16xbf16>
    %cst_43 = arith.constant dense<0.000000e+00> : vector<16x8xf32>
    %123 = tpu.matmul %122, %110, %cst_43 {dimension_numbers = #tpu.dot_dimension_numbers<[1], [0], [0], [1], [0, 0, 1, 1], [], []>} : vector<16x16xbf16>, vector<16x8xbf16>, vector<16x8xf32> -> vector<16x8xf32>
    %124 = vector.extract_strided_slice %107 {offsets = [0, 8], sizes = [16, 8], strides = [1, 1]} : vector<16x96xbf16> to vector<16x8xbf16>
    %125 = vector.extract_strided_slice %107 {offsets = [0, 40], sizes = [16, 8], strides = [1, 1]} : vector<16x96xbf16> to vector<16x8xbf16>
    %126 = vector.extract_strided_slice %107 {offsets = [0, 72], sizes = [16, 8], strides = [1, 1]} : vector<16x96xbf16> to vector<16x8xbf16>
    %cst_44 = arith.constant dense<0.000000e+00> : vector<16x16xf32>
    %127 = tpu.matmul %124, %125, %cst_44 {dimension_numbers = #tpu.dot_dimension_numbers<[1], [1], [0], [0], [0, 0, 1, 0], [], []>} : vector<16x8xbf16>, vector<16x8xbf16>, vector<16x16xf32> -> vector<16x16xf32>
    %cst_45 = arith.constant dense<0xFF800000> : vector<16xf32>
    %128 = vector.multi_reduction <maximumf>, %127, %cst_45 [1] : vector<16x16xf32> to vector<16xf32>
    %129 = vector.shape_cast %128 : vector<16xf32> to vector<16x1xf32>
    %130 = vector.broadcast %129 : vector<16x1xf32> to vector<16x16xf32>
    %131 = arith.subf %127, %130 : vector<16x16xf32>
    %132 = math.exp %131 : vector<16x16xf32>
    %cst_46 = arith.constant dense<0.000000e+00> : vector<16xf32>
    %133 = vector.multi_reduction <add>, %132, %cst_46 [1] : vector<16x16xf32> to vector<16xf32>
    %134 = vector.shape_cast %133 : vector<16xf32> to vector<16x1xf32>
    %135 = tpu.reciprocal %134 {approx = true} : vector<16x1xf32> -> vector<16x1xf32>
    %136 = vector.broadcast %135 : vector<16x1xf32> to vector<16x16xf32>
    %137 = arith.mulf %132, %136 : vector<16x16xf32>
    %138 = arith.truncf %137 : vector<16x16xf32> to vector<16x16xbf16>
    %cst_47 = arith.constant dense<0.000000e+00> : vector<16x8xf32>
    %139 = tpu.matmul %138, %126, %cst_47 {dimension_numbers = #tpu.dot_dimension_numbers<[1], [0], [0], [1], [0, 0, 1, 1], [], []>} : vector<16x16xbf16>, vector<16x8xbf16>, vector<16x8xf32> -> vector<16x8xf32>
    %140 = vector.extract_strided_slice %107 {offsets = [0, 16], sizes = [16, 8], strides = [1, 1]} : vector<16x96xbf16> to vector<16x8xbf16>
    %141 = vector.extract_strided_slice %107 {offsets = [0, 48], sizes = [16, 8], strides = [1, 1]} : vector<16x96xbf16> to vector<16x8xbf16>
    %142 = vector.extract_strided_slice %107 {offsets = [0, 80], sizes = [16, 8], strides = [1, 1]} : vector<16x96xbf16> to vector<16x8xbf16>
    %cst_48 = arith.constant dense<0.000000e+00> : vector<16x16xf32>
    %143 = tpu.matmul %140, %141, %cst_48 {dimension_numbers = #tpu.dot_dimension_numbers<[1], [1], [0], [0], [0, 0, 1, 0], [], []>} : vector<16x8xbf16>, vector<16x8xbf16>, vector<16x16xf32> -> vector<16x16xf32>
    %cst_49 = arith.constant dense<0xFF800000> : vector<16xf32>
    %144 = vector.multi_reduction <maximumf>, %143, %cst_49 [1] : vector<16x16xf32> to vector<16xf32>
    %145 = vector.shape_cast %144 : vector<16xf32> to vector<16x1xf32>
    %146 = vector.broadcast %145 : vector<16x1xf32> to vector<16x16xf32>
    %147 = arith.subf %143, %146 : vector<16x16xf32>
    %148 = math.exp %147 : vector<16x16xf32>
    %cst_50 = arith.constant dense<0.000000e+00> : vector<16xf32>
    %149 = vector.multi_reduction <add>, %148, %cst_50 [1] : vector<16x16xf32> to vector<16xf32>
    %150 = vector.shape_cast %149 : vector<16xf32> to vector<16x1xf32>
    %151 = tpu.reciprocal %150 {approx = true} : vector<16x1xf32> -> vector<16x1xf32>
    %152 = vector.broadcast %151 : vector<16x1xf32> to vector<16x16xf32>
    %153 = arith.mulf %148, %152 : vector<16x16xf32>
    %154 = arith.truncf %153 : vector<16x16xf32> to vector<16x16xbf16>
    %cst_51 = arith.constant dense<0.000000e+00> : vector<16x8xf32>
    %155 = tpu.matmul %154, %142, %cst_51 {dimension_numbers = #tpu.dot_dimension_numbers<[1], [0], [0], [1], [0, 0, 1, 1], [], []>} : vector<16x16xbf16>, vector<16x8xbf16>, vector<16x8xf32> -> vector<16x8xf32>
    %156 = vector.extract_strided_slice %107 {offsets = [0, 24], sizes = [16, 8], strides = [1, 1]} : vector<16x96xbf16> to vector<16x8xbf16>
    %157 = vector.extract_strided_slice %107 {offsets = [0, 56], sizes = [16, 8], strides = [1, 1]} : vector<16x96xbf16> to vector<16x8xbf16>
    %158 = vector.extract_strided_slice %107 {offsets = [0, 88], sizes = [16, 8], strides = [1, 1]} : vector<16x96xbf16> to vector<16x8xbf16>
    %cst_52 = arith.constant dense<0.000000e+00> : vector<16x16xf32>
    %159 = tpu.matmul %156, %157, %cst_52 {dimension_numbers = #tpu.dot_dimension_numbers<[1], [1], [0], [0], [0, 0, 1, 0], [], []>} : vector<16x8xbf16>, vector<16x8xbf16>, vector<16x16xf32> -> vector<16x16xf32>
    %cst_53 = arith.constant dense<0xFF800000> : vector<16xf32>
    %160 = vector.multi_reduction <maximumf>, %159, %cst_53 [1] : vector<16x16xf32> to vector<16xf32>
    %161 = vector.shape_cast %160 : vector<16xf32> to vector<16x1xf32>
    %162 = vector.broadcast %161 : vector<16x1xf32> to vector<16x16xf32>
    %163 = arith.subf %159, %162 : vector<16x16xf32>
    %164 = math.exp %163 : vector<16x16xf32>
    %cst_54 = arith.constant dense<0.000000e+00> : vector<16xf32>
    %165 = vector.multi_reduction <add>, %164, %cst_54 [1] : vector<16x16xf32> to vector<16xf32>
    %166 = vector.shape_cast %165 : vector<16xf32> to vector<16x1xf32>
    %167 = tpu.reciprocal %166 {approx = true} : vector<16x1xf32> -> vector<16x1xf32>
    %168 = vector.broadcast %167 : vector<16x1xf32> to vector<16x16xf32>
    %169 = arith.mulf %164, %168 : vector<16x16xf32>
    %170 = arith.truncf %169 : vector<16x16xf32> to vector<16x16xbf16>
    %cst_55 = arith.constant dense<0.000000e+00> : vector<16x8xf32>
    %171 = tpu.matmul %170, %158, %cst_55 {dimension_numbers = #tpu.dot_dimension_numbers<[1], [0], [0], [1], [0, 0, 1, 1], [], []>} : vector<16x16xbf16>, vector<16x8xbf16>, vector<16x8xf32> -> vector<16x8xf32>
    %172 = tpu.concatenate %123, %139, %155, %171 in 1 : vector<16x8xf32>, vector<16x8xf32>, vector<16x8xf32>, vector<16x8xf32> -> vector<16x32xf32>
    %173 = tpu.concatenate %106, %172 in 0 : vector<16x32xf32>, vector<16x32xf32> -> vector<32x32xf32>
    %174 = arith.truncf %173 : vector<32x32xf32> to vector<32x32xbf16>
    %c64_56 = arith.constant 64 : index
    %c96_57 = arith.constant 96 : index
    %175 = vector.load %arg1[%c64_56, %c96_57] : memref<320x128xbf16, #tpu.memory_space<vmem>>, vector<32x32xbf16>
    %cst_58 = arith.constant dense<0.000000e+00> : vector<32x32xf32>
    %176 = tpu.matmul %174, %175, %cst_58 {dimension_numbers = #tpu.dot_dimension_numbers<[1], [0], [0], [1], [0, 0, 1, 1], [], []>} : vector<32x32xbf16>, vector<32x32xbf16>, vector<32x32xf32> -> vector<32x32xf32>
    %177 = vector.broadcast %10 : vector<1x32xf32> to vector<32x32xf32>
    %178 = arith.addf %176, %177 : vector<32x32xf32>
    %179 = arith.addf %4, %178 : vector<32x32xf32>
    %cst_59 = arith.constant dense<0.000000e+00> : vector<32xf32>
    %180 = vector.multi_reduction <add>, %179, %cst_59 [1] : vector<32x32xf32> to vector<32xf32>
    %181 = vector.shape_cast %180 : vector<32xf32> to vector<32x1xf32>
    %cst_60 = arith.constant 3.200000e+01 : f32
    %182 = vector.broadcast %cst_60 : f32 to vector<32x1xf32>
    %183 = arith.divf %181, %182 : vector<32x1xf32>
    %184 = vector.broadcast %183 : vector<32x1xf32> to vector<32x32xf32>
    %185 = arith.subf %179, %184 : vector<32x32xf32>
    %186 = arith.mulf %185, %185 : vector<32x32xf32>
    %cst_61 = arith.constant dense<0.000000e+00> : vector<32xf32>
    %187 = vector.multi_reduction <add>, %186, %cst_61 [1] : vector<32x32xf32> to vector<32xf32>
    %188 = vector.shape_cast %187 : vector<32xf32> to vector<32x1xf32>
    %cst_62 = arith.constant 3.200000e+01 : f32
    %189 = vector.broadcast %cst_62 : f32 to vector<32x1xf32>
    %190 = arith.divf %188, %189 : vector<32x1xf32>
    %191 = vector.broadcast %183 : vector<32x1xf32> to vector<32x32xf32>
    %192 = arith.subf %179, %191 : vector<32x32xf32>
    %cst_63 = arith.constant 9.99999997E-7 : f32
    %193 = vector.broadcast %cst_63 : f32 to vector<32x1xf32>
    %194 = arith.addf %190, %193 : vector<32x1xf32>
    %195 = math.rsqrt %194 : vector<32x1xf32>
    %196 = vector.broadcast %195 : vector<32x1xf32> to vector<32x32xf32>
    %197 = arith.mulf %192, %196 : vector<32x32xf32>
    %198 = vector.broadcast %7 : vector<1x32xf32> to vector<32x32xf32>
    %199 = arith.mulf %197, %198 : vector<32x32xf32>
    %200 = vector.broadcast %8 : vector<1x32xf32> to vector<32x32xf32>
    %201 = arith.addf %199, %200 : vector<32x32xf32>
    %202 = arith.truncf %201 : vector<32x32xf32> to vector<32x32xbf16>
    %c96_64 = arith.constant 96 : index
    %c0_65 = arith.constant 0 : index
    %203 = vector.load %arg1[%c96_64, %c0_65] : memref<320x128xbf16, #tpu.memory_space<vmem>>, vector<32x64xbf16>
    %cst_66 = arith.constant dense<0.000000e+00> : vector<32x64xf32>
    %204 = tpu.matmul %202, %203, %cst_66 {dimension_numbers = #tpu.dot_dimension_numbers<[1], [0], [0], [1], [0, 0, 1, 1], [], []>} : vector<32x32xbf16>, vector<32x64xbf16>, vector<32x64xf32> -> vector<32x64xf32>
    %205 = vector.broadcast %11 : vector<1x64xf32> to vector<32x64xf32>
    %206 = arith.addf %204, %205 : vector<32x64xf32>
    %207 = arith.mulf %206, %206 : vector<32x64xf32>
    %208 = arith.mulf %206, %207 : vector<32x64xf32>
    %cst_67 = arith.constant 4.471500e-02 : f32
    %209 = vector.broadcast %cst_67 : f32 to vector<32x64xf32>
    %210 = arith.mulf %209, %208 : vector<32x64xf32>
    %211 = arith.addf %206, %210 : vector<32x64xf32>
    %cst_68 = arith.constant 0.797884583 : f32
    %212 = vector.broadcast %cst_68 : f32 to vector<32x64xf32>
    %213 = arith.mulf %212, %211 : vector<32x64xf32>
    %214 = math.tanh %213 : vector<32x64xf32>
    %cst_69 = arith.constant 1.000000e+00 : f32
    %215 = vector.broadcast %cst_69 : f32 to vector<32x64xf32>
    %216 = arith.addf %215, %214 : vector<32x64xf32>
    %cst_70 = arith.constant 5.000000e-01 : f32
    %217 = vector.broadcast %cst_70 : f32 to vector<32x64xf32>
    %218 = arith.mulf %217, %216 : vector<32x64xf32>
    %219 = arith.mulf %206, %218 : vector<32x64xf32>
    %220 = arith.truncf %219 : vector<32x64xf32> to vector<32x64xbf16>
    %c128 = arith.constant 128 : index
    %c0_71 = arith.constant 0 : index
    %221 = vector.load %arg1[%c128, %c0_71] : memref<320x128xbf16, #tpu.memory_space<vmem>>, vector<64x32xbf16>
    %cst_72 = arith.constant dense<0.000000e+00> : vector<32x32xf32>
    %222 = tpu.matmul %220, %221, %cst_72 {dimension_numbers = #tpu.dot_dimension_numbers<[1], [0], [0], [1], [0, 0, 1, 1], [], []>} : vector<32x64xbf16>, vector<64x32xbf16>, vector<32x32xf32> -> vector<32x32xf32>
    %223 = vector.broadcast %12 : vector<1x32xf32> to vector<32x32xf32>
    %224 = arith.addf %222, %223 : vector<32x32xf32>
    %225 = arith.addf %179, %224 : vector<32x32xf32>
    %c40 = arith.constant 40 : index
    %c0_73 = arith.constant 0 : index
    %226 = vector.load %arg2[%c40, %c0_73] : memref<56x128xf32, #tpu.memory_space<vmem>>, vector<1x32xf32>
    %c40_74 = arith.constant 40 : index
    %c32_75 = arith.constant 32 : index
    %227 = vector.load %arg2[%c40_74, %c32_75] : memref<56x128xf32, #tpu.memory_space<vmem>>, vector<1x32xf32>
    %c40_76 = arith.constant 40 : index
    %c64_77 = arith.constant 64 : index
    %228 = vector.load %arg2[%c40_76, %c64_77] : memref<56x128xf32, #tpu.memory_space<vmem>>, vector<1x32xf32>
    %c40_78 = arith.constant 40 : index
    %c96_79 = arith.constant 96 : index
    %229 = vector.load %arg2[%c40_78, %c96_79] : memref<56x128xf32, #tpu.memory_space<vmem>>, vector<1x32xf32>
    %c41 = arith.constant 41 : index
    %c0_80 = arith.constant 0 : index
    %230 = vector.load %arg2[%c41, %c0_80] : memref<56x128xf32, #tpu.memory_space<vmem>>, vector<1x96xf32>
    %c41_81 = arith.constant 41 : index
    %c96_82 = arith.constant 96 : index
    %231 = vector.load %arg2[%c41_81, %c96_82] : memref<56x128xf32, #tpu.memory_space<vmem>>, vector<1x32xf32>
    %c42 = arith.constant 42 : index
    %c0_83 = arith.constant 0 : index
    %232 = vector.load %arg2[%c42, %c0_83] : memref<56x128xf32, #tpu.memory_space<vmem>>, vector<1x64xf32>
    %c42_84 = arith.constant 42 : index
    %c64_85 = arith.constant 64 : index
    %233 = vector.load %arg2[%c42_84, %c64_85] : memref<56x128xf32, #tpu.memory_space<vmem>>, vector<1x32xf32>
    %cst_86 = arith.constant dense<0.000000e+00> : vector<32xf32>
    %234 = vector.multi_reduction <add>, %225, %cst_86 [1] : vector<32x32xf32> to vector<32xf32>
    %235 = vector.shape_cast %234 : vector<32xf32> to vector<32x1xf32>
    %cst_87 = arith.constant 3.200000e+01 : f32
    %236 = vector.broadcast %cst_87 : f32 to vector<32x1xf32>
    %237 = arith.divf %235, %236 : vector<32x1xf32>
    %238 = vector.broadcast %237 : vector<32x1xf32> to vector<32x32xf32>
    %239 = arith.subf %225, %238 : vector<32x32xf32>
    %240 = arith.mulf %239, %239 : vector<32x32xf32>
    %cst_88 = arith.constant dense<0.000000e+00> : vector<32xf32>
    %241 = vector.multi_reduction <add>, %240, %cst_88 [1] : vector<32x32xf32> to vector<32xf32>
    %242 = vector.shape_cast %241 : vector<32xf32> to vector<32x1xf32>
    %cst_89 = arith.constant 3.200000e+01 : f32
    %243 = vector.broadcast %cst_89 : f32 to vector<32x1xf32>
    %244 = arith.divf %242, %243 : vector<32x1xf32>
    %245 = vector.broadcast %237 : vector<32x1xf32> to vector<32x32xf32>
    %246 = arith.subf %225, %245 : vector<32x32xf32>
    %cst_90 = arith.constant 9.99999997E-7 : f32
    %247 = vector.broadcast %cst_90 : f32 to vector<32x1xf32>
    %248 = arith.addf %244, %247 : vector<32x1xf32>
    %249 = math.rsqrt %248 : vector<32x1xf32>
    %250 = vector.broadcast %249 : vector<32x1xf32> to vector<32x32xf32>
    %251 = arith.mulf %246, %250 : vector<32x32xf32>
    %252 = vector.broadcast %226 : vector<1x32xf32> to vector<32x32xf32>
    %253 = arith.mulf %251, %252 : vector<32x32xf32>
    %254 = vector.broadcast %227 : vector<1x32xf32> to vector<32x32xf32>
    %255 = arith.addf %253, %254 : vector<32x32xf32>
    %256 = arith.truncf %255 : vector<32x32xf32> to vector<32x32xbf16>
    %c192 = arith.constant 192 : index
    %c0_91 = arith.constant 0 : index
    %257 = vector.load %arg1[%c192, %c0_91] : memref<320x128xbf16, #tpu.memory_space<vmem>>, vector<32x96xbf16>
    %cst_92 = arith.constant dense<0.000000e+00> : vector<32x96xf32>
    %258 = tpu.matmul %256, %257, %cst_92 {dimension_numbers = #tpu.dot_dimension_numbers<[1], [0], [0], [1], [0, 0, 1, 1], [], []>} : vector<32x32xbf16>, vector<32x96xbf16>, vector<32x96xf32> -> vector<32x96xf32>
    %259 = vector.broadcast %230 : vector<1x96xf32> to vector<32x96xf32>
    %260 = arith.addf %258, %259 : vector<32x96xf32>
    %261 = arith.truncf %260 : vector<32x96xf32> to vector<32x96xbf16>
    %262 = vector.extract_strided_slice %261 {offsets = [0, 0], sizes = [16, 96], strides = [1, 1]} : vector<32x96xbf16> to vector<16x96xbf16>
    %263 = vector.extract_strided_slice %262 {offsets = [0, 0], sizes = [16, 8], strides = [1, 1]} : vector<16x96xbf16> to vector<16x8xbf16>
    %264 = vector.extract_strided_slice %262 {offsets = [0, 32], sizes = [16, 8], strides = [1, 1]} : vector<16x96xbf16> to vector<16x8xbf16>
    %265 = vector.extract_strided_slice %262 {offsets = [0, 64], sizes = [16, 8], strides = [1, 1]} : vector<16x96xbf16> to vector<16x8xbf16>
    %cst_93 = arith.constant dense<0.000000e+00> : vector<16x16xf32>
    %266 = tpu.matmul %263, %264, %cst_93 {dimension_numbers = #tpu.dot_dimension_numbers<[1], [1], [0], [0], [0, 0, 1, 0], [], []>} : vector<16x8xbf16>, vector<16x8xbf16>, vector<16x16xf32> -> vector<16x16xf32>
    %cst_94 = arith.constant dense<0xFF800000> : vector<16xf32>
    %267 = vector.multi_reduction <maximumf>, %266, %cst_94 [1] : vector<16x16xf32> to vector<16xf32>
    %268 = vector.shape_cast %267 : vector<16xf32> to vector<16x1xf32>
    %269 = vector.broadcast %268 : vector<16x1xf32> to vector<16x16xf32>
    %270 = arith.subf %266, %269 : vector<16x16xf32>
    %271 = math.exp %270 : vector<16x16xf32>
    %cst_95 = arith.constant dense<0.000000e+00> : vector<16xf32>
    %272 = vector.multi_reduction <add>, %271, %cst_95 [1] : vector<16x16xf32> to vector<16xf32>
    %273 = vector.shape_cast %272 : vector<16xf32> to vector<16x1xf32>
    %274 = tpu.reciprocal %273 {approx = true} : vector<16x1xf32> -> vector<16x1xf32>
    %275 = vector.broadcast %274 : vector<16x1xf32> to vector<16x16xf32>
    %276 = arith.mulf %271, %275 : vector<16x16xf32>
    %277 = arith.truncf %276 : vector<16x16xf32> to vector<16x16xbf16>
    %cst_96 = arith.constant dense<0.000000e+00> : vector<16x8xf32>
    %278 = tpu.matmul %277, %265, %cst_96 {dimension_numbers = #tpu.dot_dimension_numbers<[1], [0], [0], [1], [0, 0, 1, 1], [], []>} : vector<16x16xbf16>, vector<16x8xbf16>, vector<16x8xf32> -> vector<16x8xf32>
    %279 = vector.extract_strided_slice %262 {offsets = [0, 8], sizes = [16, 8], strides = [1, 1]} : vector<16x96xbf16> to vector<16x8xbf16>
    %280 = vector.extract_strided_slice %262 {offsets = [0, 40], sizes = [16, 8], strides = [1, 1]} : vector<16x96xbf16> to vector<16x8xbf16>
    %281 = vector.extract_strided_slice %262 {offsets = [0, 72], sizes = [16, 8], strides = [1, 1]} : vector<16x96xbf16> to vector<16x8xbf16>
    %cst_97 = arith.constant dense<0.000000e+00> : vector<16x16xf32>
    %282 = tpu.matmul %279, %280, %cst_97 {dimension_numbers = #tpu.dot_dimension_numbers<[1], [1], [0], [0], [0, 0, 1, 0], [], []>} : vector<16x8xbf16>, vector<16x8xbf16>, vector<16x16xf32> -> vector<16x16xf32>
    %cst_98 = arith.constant dense<0xFF800000> : vector<16xf32>
    %283 = vector.multi_reduction <maximumf>, %282, %cst_98 [1] : vector<16x16xf32> to vector<16xf32>
    %284 = vector.shape_cast %283 : vector<16xf32> to vector<16x1xf32>
    %285 = vector.broadcast %284 : vector<16x1xf32> to vector<16x16xf32>
    %286 = arith.subf %282, %285 : vector<16x16xf32>
    %287 = math.exp %286 : vector<16x16xf32>
    %cst_99 = arith.constant dense<0.000000e+00> : vector<16xf32>
    %288 = vector.multi_reduction <add>, %287, %cst_99 [1] : vector<16x16xf32> to vector<16xf32>
    %289 = vector.shape_cast %288 : vector<16xf32> to vector<16x1xf32>
    %290 = tpu.reciprocal %289 {approx = true} : vector<16x1xf32> -> vector<16x1xf32>
    %291 = vector.broadcast %290 : vector<16x1xf32> to vector<16x16xf32>
    %292 = arith.mulf %287, %291 : vector<16x16xf32>
    %293 = arith.truncf %292 : vector<16x16xf32> to vector<16x16xbf16>
    %cst_100 = arith.constant dense<0.000000e+00> : vector<16x8xf32>
    %294 = tpu.matmul %293, %281, %cst_100 {dimension_numbers = #tpu.dot_dimension_numbers<[1], [0], [0], [1], [0, 0, 1, 1], [], []>} : vector<16x16xbf16>, vector<16x8xbf16>, vector<16x8xf32> -> vector<16x8xf32>
    %295 = vector.extract_strided_slice %262 {offsets = [0, 16], sizes = [16, 8], strides = [1, 1]} : vector<16x96xbf16> to vector<16x8xbf16>
    %296 = vector.extract_strided_slice %262 {offsets = [0, 48], sizes = [16, 8], strides = [1, 1]} : vector<16x96xbf16> to vector<16x8xbf16>
    %297 = vector.extract_strided_slice %262 {offsets = [0, 80], sizes = [16, 8], strides = [1, 1]} : vector<16x96xbf16> to vector<16x8xbf16>
    %cst_101 = arith.constant dense<0.000000e+00> : vector<16x16xf32>
    %298 = tpu.matmul %295, %296, %cst_101 {dimension_numbers = #tpu.dot_dimension_numbers<[1], [1], [0], [0], [0, 0, 1, 0], [], []>} : vector<16x8xbf16>, vector<16x8xbf16>, vector<16x16xf32> -> vector<16x16xf32>
    %cst_102 = arith.constant dense<0xFF800000> : vector<16xf32>
    %299 = vector.multi_reduction <maximumf>, %298, %cst_102 [1] : vector<16x16xf32> to vector<16xf32>
    %300 = vector.shape_cast %299 : vector<16xf32> to vector<16x1xf32>
    %301 = vector.broadcast %300 : vector<16x1xf32> to vector<16x16xf32>
    %302 = arith.subf %298, %301 : vector<16x16xf32>
    %303 = math.exp %302 : vector<16x16xf32>
    %cst_103 = arith.constant dense<0.000000e+00> : vector<16xf32>
    %304 = vector.multi_reduction <add>, %303, %cst_103 [1] : vector<16x16xf32> to vector<16xf32>
    %305 = vector.shape_cast %304 : vector<16xf32> to vector<16x1xf32>
    %306 = tpu.reciprocal %305 {approx = true} : vector<16x1xf32> -> vector<16x1xf32>
    %307 = vector.broadcast %306 : vector<16x1xf32> to vector<16x16xf32>
    %308 = arith.mulf %303, %307 : vector<16x16xf32>
    %309 = arith.truncf %308 : vector<16x16xf32> to vector<16x16xbf16>
    %cst_104 = arith.constant dense<0.000000e+00> : vector<16x8xf32>
    %310 = tpu.matmul %309, %297, %cst_104 {dimension_numbers = #tpu.dot_dimension_numbers<[1], [0], [0], [1], [0, 0, 1, 1], [], []>} : vector<16x16xbf16>, vector<16x8xbf16>, vector<16x8xf32> -> vector<16x8xf32>
    %311 = vector.extract_strided_slice %262 {offsets = [0, 24], sizes = [16, 8], strides = [1, 1]} : vector<16x96xbf16> to vector<16x8xbf16>
    %312 = vector.extract_strided_slice %262 {offsets = [0, 56], sizes = [16, 8], strides = [1, 1]} : vector<16x96xbf16> to vector<16x8xbf16>
    %313 = vector.extract_strided_slice %262 {offsets = [0, 88], sizes = [16, 8], strides = [1, 1]} : vector<16x96xbf16> to vector<16x8xbf16>
    %cst_105 = arith.constant dense<0.000000e+00> : vector<16x16xf32>
    %314 = tpu.matmul %311, %312, %cst_105 {dimension_numbers = #tpu.dot_dimension_numbers<[1], [1], [0], [0], [0, 0, 1, 0], [], []>} : vector<16x8xbf16>, vector<16x8xbf16>, vector<16x16xf32> -> vector<16x16xf32>
    %cst_106 = arith.constant dense<0xFF800000> : vector<16xf32>
    %315 = vector.multi_reduction <maximumf>, %314, %cst_106 [1] : vector<16x16xf32> to vector<16xf32>
    %316 = vector.shape_cast %315 : vector<16xf32> to vector<16x1xf32>
    %317 = vector.broadcast %316 : vector<16x1xf32> to vector<16x16xf32>
    %318 = arith.subf %314, %317 : vector<16x16xf32>
    %319 = math.exp %318 : vector<16x16xf32>
    %cst_107 = arith.constant dense<0.000000e+00> : vector<16xf32>
    %320 = vector.multi_reduction <add>, %319, %cst_107 [1] : vector<16x16xf32> to vector<16xf32>
    %321 = vector.shape_cast %320 : vector<16xf32> to vector<16x1xf32>
    %322 = tpu.reciprocal %321 {approx = true} : vector<16x1xf32> -> vector<16x1xf32>
    %323 = vector.broadcast %322 : vector<16x1xf32> to vector<16x16xf32>
    %324 = arith.mulf %319, %323 : vector<16x16xf32>
    %325 = arith.truncf %324 : vector<16x16xf32> to vector<16x16xbf16>
    %cst_108 = arith.constant dense<0.000000e+00> : vector<16x8xf32>
    %326 = tpu.matmul %325, %313, %cst_108 {dimension_numbers = #tpu.dot_dimension_numbers<[1], [0], [0], [1], [0, 0, 1, 1], [], []>} : vector<16x16xbf16>, vector<16x8xbf16>, vector<16x8xf32> -> vector<16x8xf32>
    %327 = tpu.concatenate %278, %294, %310, %326 in 1 : vector<16x8xf32>, vector<16x8xf32>, vector<16x8xf32>, vector<16x8xf32> -> vector<16x32xf32>
    %328 = vector.extract_strided_slice %261 {offsets = [16, 0], sizes = [16, 96], strides = [1, 1]} : vector<32x96xbf16> to vector<16x96xbf16>
    %329 = vector.extract_strided_slice %328 {offsets = [0, 0], sizes = [16, 8], strides = [1, 1]} : vector<16x96xbf16> to vector<16x8xbf16>
    %330 = vector.extract_strided_slice %328 {offsets = [0, 32], sizes = [16, 8], strides = [1, 1]} : vector<16x96xbf16> to vector<16x8xbf16>
    %331 = vector.extract_strided_slice %328 {offsets = [0, 64], sizes = [16, 8], strides = [1, 1]} : vector<16x96xbf16> to vector<16x8xbf16>
    %cst_109 = arith.constant dense<0.000000e+00> : vector<16x16xf32>
    %332 = tpu.matmul %329, %330, %cst_109 {dimension_numbers = #tpu.dot_dimension_numbers<[1], [1], [0], [0], [0, 0, 1, 0], [], []>} : vector<16x8xbf16>, vector<16x8xbf16>, vector<16x16xf32> -> vector<16x16xf32>
    %cst_110 = arith.constant dense<0xFF800000> : vector<16xf32>
    %333 = vector.multi_reduction <maximumf>, %332, %cst_110 [1] : vector<16x16xf32> to vector<16xf32>
    %334 = vector.shape_cast %333 : vector<16xf32> to vector<16x1xf32>
    %335 = vector.broadcast %334 : vector<16x1xf32> to vector<16x16xf32>
    %336 = arith.subf %332, %335 : vector<16x16xf32>
    %337 = math.exp %336 : vector<16x16xf32>
    %cst_111 = arith.constant dense<0.000000e+00> : vector<16xf32>
    %338 = vector.multi_reduction <add>, %337, %cst_111 [1] : vector<16x16xf32> to vector<16xf32>
    %339 = vector.shape_cast %338 : vector<16xf32> to vector<16x1xf32>
    %340 = tpu.reciprocal %339 {approx = true} : vector<16x1xf32> -> vector<16x1xf32>
    %341 = vector.broadcast %340 : vector<16x1xf32> to vector<16x16xf32>
    %342 = arith.mulf %337, %341 : vector<16x16xf32>
    %343 = arith.truncf %342 : vector<16x16xf32> to vector<16x16xbf16>
    %cst_112 = arith.constant dense<0.000000e+00> : vector<16x8xf32>
    %344 = tpu.matmul %343, %331, %cst_112 {dimension_numbers = #tpu.dot_dimension_numbers<[1], [0], [0], [1], [0, 0, 1, 1], [], []>} : vector<16x16xbf16>, vector<16x8xbf16>, vector<16x8xf32> -> vector<16x8xf32>
    %345 = vector.extract_strided_slice %328 {offsets = [0, 8], sizes = [16, 8], strides = [1, 1]} : vector<16x96xbf16> to vector<16x8xbf16>
    %346 = vector.extract_strided_slice %328 {offsets = [0, 40], sizes = [16, 8], strides = [1, 1]} : vector<16x96xbf16> to vector<16x8xbf16>
    %347 = vector.extract_strided_slice %328 {offsets = [0, 72], sizes = [16, 8], strides = [1, 1]} : vector<16x96xbf16> to vector<16x8xbf16>
    %cst_113 = arith.constant dense<0.000000e+00> : vector<16x16xf32>
    %348 = tpu.matmul %345, %346, %cst_113 {dimension_numbers = #tpu.dot_dimension_numbers<[1], [1], [0], [0], [0, 0, 1, 0], [], []>} : vector<16x8xbf16>, vector<16x8xbf16>, vector<16x16xf32> -> vector<16x16xf32>
    %cst_114 = arith.constant dense<0xFF800000> : vector<16xf32>
    %349 = vector.multi_reduction <maximumf>, %348, %cst_114 [1] : vector<16x16xf32> to vector<16xf32>
    %350 = vector.shape_cast %349 : vector<16xf32> to vector<16x1xf32>
    %351 = vector.broadcast %350 : vector<16x1xf32> to vector<16x16xf32>
    %352 = arith.subf %348, %351 : vector<16x16xf32>
    %353 = math.exp %352 : vector<16x16xf32>
    %cst_115 = arith.constant dense<0.000000e+00> : vector<16xf32>
    %354 = vector.multi_reduction <add>, %353, %cst_115 [1] : vector<16x16xf32> to vector<16xf32>
    %355 = vector.shape_cast %354 : vector<16xf32> to vector<16x1xf32>
    %356 = tpu.reciprocal %355 {approx = true} : vector<16x1xf32> -> vector<16x1xf32>
    %357 = vector.broadcast %356 : vector<16x1xf32> to vector<16x16xf32>
    %358 = arith.mulf %353, %357 : vector<16x16xf32>
    %359 = arith.truncf %358 : vector<16x16xf32> to vector<16x16xbf16>
    %cst_116 = arith.constant dense<0.000000e+00> : vector<16x8xf32>
    %360 = tpu.matmul %359, %347, %cst_116 {dimension_numbers = #tpu.dot_dimension_numbers<[1], [0], [0], [1], [0, 0, 1, 1], [], []>} : vector<16x16xbf16>, vector<16x8xbf16>, vector<16x8xf32> -> vector<16x8xf32>
    %361 = vector.extract_strided_slice %328 {offsets = [0, 16], sizes = [16, 8], strides = [1, 1]} : vector<16x96xbf16> to vector<16x8xbf16>
    %362 = vector.extract_strided_slice %328 {offsets = [0, 48], sizes = [16, 8], strides = [1, 1]} : vector<16x96xbf16> to vector<16x8xbf16>
    %363 = vector.extract_strided_slice %328 {offsets = [0, 80], sizes = [16, 8], strides = [1, 1]} : vector<16x96xbf16> to vector<16x8xbf16>
    %cst_117 = arith.constant dense<0.000000e+00> : vector<16x16xf32>
    %364 = tpu.matmul %361, %362, %cst_117 {dimension_numbers = #tpu.dot_dimension_numbers<[1], [1], [0], [0], [0, 0, 1, 0], [], []>} : vector<16x8xbf16>, vector<16x8xbf16>, vector<16x16xf32> -> vector<16x16xf32>
    %cst_118 = arith.constant dense<0xFF800000> : vector<16xf32>
    %365 = vector.multi_reduction <maximumf>, %364, %cst_118 [1] : vector<16x16xf32> to vector<16xf32>
    %366 = vector.shape_cast %365 : vector<16xf32> to vector<16x1xf32>
    %367 = vector.broadcast %366 : vector<16x1xf32> to vector<16x16xf32>
    %368 = arith.subf %364, %367 : vector<16x16xf32>
    %369 = math.exp %368 : vector<16x16xf32>
    %cst_119 = arith.constant dense<0.000000e+00> : vector<16xf32>
    %370 = vector.multi_reduction <add>, %369, %cst_119 [1] : vector<16x16xf32> to vector<16xf32>
    %371 = vector.shape_cast %370 : vector<16xf32> to vector<16x1xf32>
    %372 = tpu.reciprocal %371 {approx = true} : vector<16x1xf32> -> vector<16x1xf32>
    %373 = vector.broadcast %372 : vector<16x1xf32> to vector<16x16xf32>
    %374 = arith.mulf %369, %373 : vector<16x16xf32>
    %375 = arith.truncf %374 : vector<16x16xf32> to vector<16x16xbf16>
    %cst_120 = arith.constant dense<0.000000e+00> : vector<16x8xf32>
    %376 = tpu.matmul %375, %363, %cst_120 {dimension_numbers = #tpu.dot_dimension_numbers<[1], [0], [0], [1], [0, 0, 1, 1], [], []>} : vector<16x16xbf16>, vector<16x8xbf16>, vector<16x8xf32> -> vector<16x8xf32>
    %377 = vector.extract_strided_slice %328 {offsets = [0, 24], sizes = [16, 8], strides = [1, 1]} : vector<16x96xbf16> to vector<16x8xbf16>
    %378 = vector.extract_strided_slice %328 {offsets = [0, 56], sizes = [16, 8], strides = [1, 1]} : vector<16x96xbf16> to vector<16x8xbf16>
    %379 = vector.extract_strided_slice %328 {offsets = [0, 88], sizes = [16, 8], strides = [1, 1]} : vector<16x96xbf16> to vector<16x8xbf16>
    %cst_121 = arith.constant dense<0.000000e+00> : vector<16x16xf32>
    %380 = tpu.matmul %377, %378, %cst_121 {dimension_numbers = #tpu.dot_dimension_numbers<[1], [1], [0], [0], [0, 0, 1, 0], [], []>} : vector<16x8xbf16>, vector<16x8xbf16>, vector<16x16xf32> -> vector<16x16xf32>
    %cst_122 = arith.constant dense<0xFF800000> : vector<16xf32>
    %381 = vector.multi_reduction <maximumf>, %380, %cst_122 [1] : vector<16x16xf32> to vector<16xf32>
    %382 = vector.shape_cast %381 : vector<16xf32> to vector<16x1xf32>
    %383 = vector.broadcast %382 : vector<16x1xf32> to vector<16x16xf32>
    %384 = arith.subf %380, %383 : vector<16x16xf32>
    %385 = math.exp %384 : vector<16x16xf32>
    %cst_123 = arith.constant dense<0.000000e+00> : vector<16xf32>
    %386 = vector.multi_reduction <add>, %385, %cst_123 [1] : vector<16x16xf32> to vector<16xf32>
    %387 = vector.shape_cast %386 : vector<16xf32> to vector<16x1xf32>
    %388 = tpu.reciprocal %387 {approx = true} : vector<16x1xf32> -> vector<16x1xf32>
    %389 = vector.broadcast %388 : vector<16x1xf32> to vector<16x16xf32>
    %390 = arith.mulf %385, %389 : vector<16x16xf32>
    %391 = arith.truncf %390 : vector<16x16xf32> to vector<16x16xbf16>
    %cst_124 = arith.constant dense<0.000000e+00> : vector<16x8xf32>
    %392 = tpu.matmul %391, %379, %cst_124 {dimension_numbers = #tpu.dot_dimension_numbers<[1], [0], [0], [1], [0, 0, 1, 1], [], []>} : vector<16x16xbf16>, vector<16x8xbf16>, vector<16x8xf32> -> vector<16x8xf32>
    %393 = tpu.concatenate %344, %360, %376, %392 in 1 : vector<16x8xf32>, vector<16x8xf32>, vector<16x8xf32>, vector<16x8xf32> -> vector<16x32xf32>
    %394 = tpu.concatenate %327, %393 in 0 : vector<16x32xf32>, vector<16x32xf32> -> vector<32x32xf32>
    %395 = arith.truncf %394 : vector<32x32xf32> to vector<32x32xbf16>
    %c192_125 = arith.constant 192 : index
    %c96_126 = arith.constant 96 : index
    %396 = vector.load %arg1[%c192_125, %c96_126] : memref<320x128xbf16, #tpu.memory_space<vmem>>, vector<32x32xbf16>
    %cst_127 = arith.constant dense<0.000000e+00> : vector<32x32xf32>
    %397 = tpu.matmul %395, %396, %cst_127 {dimension_numbers = #tpu.dot_dimension_numbers<[1], [0], [0], [1], [0, 0, 1, 1], [], []>} : vector<32x32xbf16>, vector<32x32xbf16>, vector<32x32xf32> -> vector<32x32xf32>
    %398 = vector.broadcast %231 : vector<1x32xf32> to vector<32x32xf32>
    %399 = arith.addf %397, %398 : vector<32x32xf32>
    %400 = arith.addf %225, %399 : vector<32x32xf32>
    %cst_128 = arith.constant dense<0.000000e+00> : vector<32xf32>
    %401 = vector.multi_reduction <add>, %400, %cst_128 [1] : vector<32x32xf32> to vector<32xf32>
    %402 = vector.shape_cast %401 : vector<32xf32> to vector<32x1xf32>
    %cst_129 = arith.constant 3.200000e+01 : f32
    %403 = vector.broadcast %cst_129 : f32 to vector<32x1xf32>
    %404 = arith.divf %402, %403 : vector<32x1xf32>
    %405 = vector.broadcast %404 : vector<32x1xf32> to vector<32x32xf32>
    %406 = arith.subf %400, %405 : vector<32x32xf32>
    %407 = arith.mulf %406, %406 : vector<32x32xf32>
    %cst_130 = arith.constant dense<0.000000e+00> : vector<32xf32>
    %408 = vector.multi_reduction <add>, %407, %cst_130 [1] : vector<32x32xf32> to vector<32xf32>
    %409 = vector.shape_cast %408 : vector<32xf32> to vector<32x1xf32>
    %cst_131 = arith.constant 3.200000e+01 : f32
    %410 = vector.broadcast %cst_131 : f32 to vector<32x1xf32>
    %411 = arith.divf %409, %410 : vector<32x1xf32>
    %412 = vector.broadcast %404 : vector<32x1xf32> to vector<32x32xf32>
    %413 = arith.subf %400, %412 : vector<32x32xf32>
    %cst_132 = arith.constant 9.99999997E-7 : f32
    %414 = vector.broadcast %cst_132 : f32 to vector<32x1xf32>
    %415 = arith.addf %411, %414 : vector<32x1xf32>
    %416 = math.rsqrt %415 : vector<32x1xf32>
    %417 = vector.broadcast %416 : vector<32x1xf32> to vector<32x32xf32>
    %418 = arith.mulf %413, %417 : vector<32x32xf32>
    %419 = vector.broadcast %228 : vector<1x32xf32> to vector<32x32xf32>
    %420 = arith.mulf %418, %419 : vector<32x32xf32>
    %421 = vector.broadcast %229 : vector<1x32xf32> to vector<32x32xf32>
    %422 = arith.addf %420, %421 : vector<32x32xf32>
    %423 = arith.truncf %422 : vector<32x32xf32> to vector<32x32xbf16>
    %c224 = arith.constant 224 : index
    %c0_133 = arith.constant 0 : index
    %424 = vector.load %arg1[%c224, %c0_133] : memref<320x128xbf16, #tpu.memory_space<vmem>>, vector<32x64xbf16>
    %cst_134 = arith.constant dense<0.000000e+00> : vector<32x64xf32>
    %425 = tpu.matmul %423, %424, %cst_134 {dimension_numbers = #tpu.dot_dimension_numbers<[1], [0], [0], [1], [0, 0, 1, 1], [], []>} : vector<32x32xbf16>, vector<32x64xbf16>, vector<32x64xf32> -> vector<32x64xf32>
    %426 = vector.broadcast %232 : vector<1x64xf32> to vector<32x64xf32>
    %427 = arith.addf %425, %426 : vector<32x64xf32>
    %428 = arith.mulf %427, %427 : vector<32x64xf32>
    %429 = arith.mulf %427, %428 : vector<32x64xf32>
    %cst_135 = arith.constant 4.471500e-02 : f32
    %430 = vector.broadcast %cst_135 : f32 to vector<32x64xf32>
    %431 = arith.mulf %430, %429 : vector<32x64xf32>
    %432 = arith.addf %427, %431 : vector<32x64xf32>
    %cst_136 = arith.constant 0.797884583 : f32
    %433 = vector.broadcast %cst_136 : f32 to vector<32x64xf32>
    %434 = arith.mulf %433, %432 : vector<32x64xf32>
    %435 = math.tanh %434 : vector<32x64xf32>
    %cst_137 = arith.constant 1.000000e+00 : f32
    %436 = vector.broadcast %cst_137 : f32 to vector<32x64xf32>
    %437 = arith.addf %436, %435 : vector<32x64xf32>
    %cst_138 = arith.constant 5.000000e-01 : f32
    %438 = vector.broadcast %cst_138 : f32 to vector<32x64xf32>
    %439 = arith.mulf %438, %437 : vector<32x64xf32>
    %440 = arith.mulf %427, %439 : vector<32x64xf32>
    %441 = arith.truncf %440 : vector<32x64xf32> to vector<32x64xbf16>
    %c256 = arith.constant 256 : index
    %c0_139 = arith.constant 0 : index
    %442 = vector.load %arg1[%c256, %c0_139] : memref<320x128xbf16, #tpu.memory_space<vmem>>, vector<64x32xbf16>
    %cst_140 = arith.constant dense<0.000000e+00> : vector<32x32xf32>
    %443 = tpu.matmul %441, %442, %cst_140 {dimension_numbers = #tpu.dot_dimension_numbers<[1], [0], [0], [1], [0, 0, 1, 1], [], []>} : vector<32x64xbf16>, vector<64x32xbf16>, vector<32x32xf32> -> vector<32x32xf32>
    %444 = vector.broadcast %233 : vector<1x32xf32> to vector<32x32xf32>
    %445 = arith.addf %443, %444 : vector<32x32xf32>
    %446 = arith.addf %400, %445 : vector<32x32xf32>
    %c48 = arith.constant 48 : index
    %c0_141 = arith.constant 0 : index
    %447 = vector.load %arg2[%c48, %c0_141] : memref<56x128xf32, #tpu.memory_space<vmem>>, vector<1x32xf32>
    %c48_142 = arith.constant 48 : index
    %c32_143 = arith.constant 32 : index
    %448 = vector.load %arg2[%c48_142, %c32_143] : memref<56x128xf32, #tpu.memory_space<vmem>>, vector<1x32xf32>
    %cst_144 = arith.constant dense<0.000000e+00> : vector<32xf32>
    %449 = vector.multi_reduction <add>, %446, %cst_144 [1] : vector<32x32xf32> to vector<32xf32>
    %450 = vector.shape_cast %449 : vector<32xf32> to vector<32x1xf32>
    %cst_145 = arith.constant 3.200000e+01 : f32
    %451 = vector.broadcast %cst_145 : f32 to vector<32x1xf32>
    %452 = arith.divf %450, %451 : vector<32x1xf32>
    %453 = vector.broadcast %452 : vector<32x1xf32> to vector<32x32xf32>
    %454 = arith.subf %446, %453 : vector<32x32xf32>
    %455 = arith.mulf %454, %454 : vector<32x32xf32>
    %cst_146 = arith.constant dense<0.000000e+00> : vector<32xf32>
    %456 = vector.multi_reduction <add>, %455, %cst_146 [1] : vector<32x32xf32> to vector<32xf32>
    %457 = vector.shape_cast %456 : vector<32xf32> to vector<32x1xf32>
    %cst_147 = arith.constant 3.200000e+01 : f32
    %458 = vector.broadcast %cst_147 : f32 to vector<32x1xf32>
    %459 = arith.divf %457, %458 : vector<32x1xf32>
    %460 = vector.broadcast %452 : vector<32x1xf32> to vector<32x32xf32>
    %461 = arith.subf %446, %460 : vector<32x32xf32>
    %cst_148 = arith.constant 9.99999997E-7 : f32
    %462 = vector.broadcast %cst_148 : f32 to vector<32x1xf32>
    %463 = arith.addf %459, %462 : vector<32x1xf32>
    %464 = math.rsqrt %463 : vector<32x1xf32>
    %465 = vector.broadcast %464 : vector<32x1xf32> to vector<32x32xf32>
    %466 = arith.mulf %461, %465 : vector<32x32xf32>
    %467 = vector.broadcast %447 : vector<1x32xf32> to vector<32x32xf32>
    %468 = arith.mulf %466, %467 : vector<32x32xf32>
    %469 = vector.broadcast %448 : vector<1x32xf32> to vector<32x32xf32>
    %470 = arith.addf %468, %469 : vector<32x32xf32>
    %471 = math.tanh %470 : vector<32x32xf32>
    %c0_149 = arith.constant 0 : index
    %c0_150 = arith.constant 0 : index
    %472 = vector.load %arg3[%c0_149, %c0_150] : memref<32x32xf32, #tpu.memory_space<vmem>>, vector<32x32xf32>
    tpu.vector_store %arg3[%c0_149, %c0_150], %471 {strides = array<i32>} : memref<32x32xf32, #tpu.memory_space<vmem>>, vector<32x32xf32>,
    return
  }
}

</mosaic_0001>

<llo_original>
// kernel: vit_forward.1
$region0: #{vit_forward.1}
  #allocation0 [shape = 'u32[]', space=smem, size = 0x4, offset = 0x4, fixed_abs, tag = 'smem constant byte address 0x4 - core index']
  #allocation1 [shape = 'u32[144,128]{1,0:T(1,128)}', space=vmem, size = 0x12000, scoped, tag = 'internal scratch']
  %s0 = inlined_call_operand.vmem [shape: bf16[32,64], index: 0, kind: input, shape index: {}]
  %s1 = inlined_call_operand.vmem [shape: bf16[320,128], index: 1, kind: input, shape index: {}]
  %s2 = inlined_call_operand.vmem [shape: f32[56,128], index: 2, kind: input, shape index: {}]
  %s3 = inlined_call_operand.hbm [shape: f32[32,32], index: 3, kind: output, shape index: {}]
  %s4 = sld [smem:[#allocation0]]
  $region22: #{vit_forward.1} parent=0
    _
  %s6 = ssub.s32 1, %s4
  %s7 = scalar_select 0, %s6, %s4
  $region1: #{vit_forward.1} parent=0
    #allocation2 [shape = 'u8[16384]{0}', space=vmem, size = 0x4000, scoped, tag = 'output window, operand 0, single buffered']
    #allocation3 [shape = 's32[1]{0}', space=sflag, size = 0x4, scoped, tag = 'scoped memory for vit_forward.1']
    %8 = vsyncpa [#allocation3], 0
    // Predicated region
    $region2: #{vit_forward.1} parent=1 // pred_check
      _
    $region3: #{vit_forward.1} parent=1 // pred_check_branch
      %10 = sbr.rel (0) target = $region5
    $region4: #{vit_forward.1} parent=1 // pred_region
      _
    $region5: #{vit_forward.1} parent=1 // pred_fallthru
      _
    // Predicated region
    $region6: #{vit_forward.1} parent=1 // pred_check
      _
    $region7: #{vit_forward.1} parent=1 // pred_check_branch
      %12 = sbr.rel (0) target = $region9
    $region8: #{vit_forward.1} parent=1 // pred_region
      _
    $region9: #{vit_forward.1} parent=1 // pred_fallthru
      _
    // Predicated region
    $region10: #{vit_forward.1} parent=1 // pred_check
      _
    $region11: #{vit_forward.1} parent=1 // pred_check_branch
      %14 = sbr.rel (0) target = $region13
    $region12: #{vit_forward.1} parent=1 // pred_region
      _
    $region13: #{vit_forward.1} parent=1 // pred_fallthru
      _
    %v16 = vld [vmem:[%s0] sm:$0xf]
    %v17 = vld [vmem:[%s0 + $0x4] sm:$0xf]
    %v18 = vld [vmem:[%s0 + $0x8] sm:$0xf]
    %v19 = vld [vmem:[%s0 + $0xc] sm:$0xf]
    %v20 = vld [vmem:[%s1] sm:$0xf]
    %v21 = vld [vmem:[%s1 + $0x4] sm:$0xf]
    %v22 = vld [vmem:[%s1 + $0x8] sm:$0xf]
    %v23 = vld [vmem:[%s1 + $0xc] sm:$0xf]
    %v24 = vld [vmem:[%s1 + $0x10] sm:$0xf]
    %v25 = vld [vmem:[%s1 + $0x14] sm:$0xf]
    %v26 = vld [vmem:[%s1 + $0x18] sm:$0xf]
    %v27 = vld [vmem:[%s1 + $0x1c] sm:$0xf]
    %v28 = vld [vmem:[%s2] sm:$0xff]
    %v29 = vld [vmem:[%s2 + $0x8] sm:$0xff]
    %v30 = vld [vmem:[%s2 + $0x10] sm:$0xff]
    %v31 = vld [vmem:[%s2 + $0x18] sm:$0xff]
    %v36 = vunpack.c.l.b16 %v16
    %v37 = vunpack.c.l.b16 %v17
    %v38 = vunpack.c.l.b16 %v18
    %v39 = vunpack.c.l.b16 %v19
    %v40 = vpack.c.b16 %v37, %v36
    %v41 = vpack.c.b16 %v39, %v38
    %v50 = vunpack.c.l.b16 %v20
    %v51 = vunpack.c.l.b16 %v21
    %v52 = vunpack.c.l.b16 %v22
    %v53 = vunpack.c.l.b16 %v23
    %v54 = vunpack.c.l.b16 %v24
    %v55 = vunpack.c.l.b16 %v25
    %v56 = vunpack.c.l.b16 %v26
    %v57 = vunpack.c.l.b16 %v27
    %v58 = vpack.c.b16 %v51, %v50
    %v59 = vpack.c.b16 %v53, %v52
    %v60 = vpack.c.b16 %v55, %v54
    %v61 = vpack.c.b16 %v57, %v56
    %vm66 = vcmask 523264
    %v68 = vsel %vm66, %v40, 0
    %v71 = vsel %vm66, %v41, 0
    %73 = vmatprep.subr.bf16.mxu0 0
    %74 = vmatpush1.bf16.msra.mxu0 %v58
    %75 = vmatprep.subr.bf16.mxu0 0
    %76 = vmatpush1.bf16.msra.mxu0 %v59
    %77 = vmatprep.subr.bf16.mxu0 0
    %78 = vmatpush1.bf16.msra.mxu0 %v60
    %79 = vmatprep.subr.bf16.mxu0 0
    %80 = vmatpush1.bf16.msra.mxu0 %v61
    %81 = vmatprep.subr.bf16.mxu0 0
    %82 = vmatpush1.bf16.msra.mxu0 0
    %83 = vmatprep.subr.bf16.mxu0 0
    %84 = vmatpush1.bf16.msra.mxu0 0
    %85 = vmatprep.subr.bf16.mxu0 0
    %86 = vmatpush1.bf16.msra.mxu0 0
    %87 = vmatprep.subr.bf16.mxu0 0
    %88 = vmatpush1.bf16.msra.mxu0 0
    %89 = vmatprep.subr.bf16.mxu0 0
    %90 = vmatpush1.bf16.msra.mxu0 0
    %91 = vmatprep.subr.bf16.mxu0 0
    %92 = vmatpush1.bf16.msra.mxu0 0
    %93 = vmatprep.subr.bf16.mxu0 0
    %94 = vmatpush1.bf16.msra.mxu0 0
    %95 = vmatprep.subr.bf16.mxu0 0
    %96 = vmatpush1.bf16.msra.mxu0 0
    %97 = vmatprep.subr.bf16.mxu0 0
    %98 = vmatpush1.bf16.msra.mxu0 0
    %99 = vmatprep.subr.bf16.mxu0 0
    %100 = vmatpush1.bf16.msra.mxu0 0
    %101 = vmatprep.subr.bf16.mxu0 0
    %102 = vmatpush1.bf16.msra.mxu0 0
    %103 = vmatprep.subr.bf16.mxu0 0
    %104 = vmatpush1.bf16.msra.mxu0 0
    %105 = vmatprep.mubr.bf16.mxu0 0
    %106 = vmatmul.mubr.bf16.gmra.mrb[0].mxu0 %v68
    %v107 = vpop.f32.mrb[0].mxu0
    %v108 = vadd.f32 %v28, %v107
    %v109 = vpop.f32.mrb[0].mxu0
    %v110 = vpop.f32.mrb[0].mxu0
    %v111 = vadd.f32 %v29, %v110
    %v112 = vpop.f32.mrb[0].mxu0
    %113 = vmatprep.mubr.bf16.mxu0 0
    %114 = vmatmul.mubr.bf16.gmra.mrb[0].mxu0 %v71
    %v115 = vpop.f32.mrb[0].mxu0
    %v116 = vadd.f32 %v30, %v115
    %v117 = vpop.f32.mrb[0].mxu0
    %v118 = vpop.f32.mrb[0].mxu0
    %v119 = vadd.f32 %v31, %v118
    %v120 = vpop.f32.mrb[0].mxu0
    %121 = vdwg.mxu0
    %v122 = vld [vmem:[%s2 + $0x20] sm:$0x1]
    %v123 = vld [vmem:[%s2 + $0x21] sm:$0x1]
    %v124 = vld [vmem:[%s2 + $0x22] sm:$0x1]
    %vm125 = vcmask 261120
    %v126 = vsel %vm125, %v108, 0.0
    %127 = vadd.xlane.f32.xlu0 %v126
    %v128 = vpop.xlane.xlu0 %127
    %v129 = vsel %vm125, %v111, 0.0
    %130 = vadd.xlane.f32.xlu0 %v129
    %v131 = vpop.xlane.xlu0 %130
    %v132 = vsel %vm125, %v116, 0.0
    %133 = vadd.xlane.f32.xlu0 %v132
    %v134 = vpop.xlane.xlu0 %133
    %v135 = vsel %vm125, %v119, 0.0
    %136 = vadd.xlane.f32.xlu0 %v135
    %v137 = vpop.xlane.xlu0 %136
    %v138 = vrcp.pop 32.0
    %v139 = vmul.f32 %v128, %v138
    %v140 = vmul.f32 %v131, %v138
    %v141 = vmul.f32 %v134, %v138
    %v142 = vmul.f32 %v137, %v138
    %v143 = vsub.f32 %v108, %v139
    %v144 = vsub.f32 %v111, %v140
    %v145 = vsub.f32 %v116, %v141
    %v146 = vsub.f32 %v119, %v142
    %v147 = vmul.f32 %v143, %v143
    %v148 = vmul.f32 %v144, %v144
    %v149 = vmul.f32 %v145, %v145
    %v150 = vmul.f32 %v146, %v146
    %v151 = vsel %vm125, %v147, 0.0
    %152 = vadd.xlane.f32.xlu0 %v151
    %v153 = vpop.xlane.xlu0 %152
    %v154 = vsel %vm125, %v148, 0.0
    %155 = vadd.xlane.f32.xlu0 %v154
    %v156 = vpop.xlane.xlu0 %155
    %v157 = vsel %vm125, %v149, 0.0
    %158 = vadd.xlane.f32.xlu0 %v157
    %v159 = vpop.xlane.xlu0 %158
    %v160 = vsel %vm125, %v150, 0.0
    %161 = vadd.xlane.f32.xlu0 %v160
    %v162 = vpop.xlane.xlu0 %161
    %v163 = vmul.f32 %v153, %v138
    %v164 = vmul.f32 %v156, %v138
    %v165 = vmul.f32 %v159, %v138
    %v166 = vmul.f32 %v162, %v138
    %v167 = vadd.f32 %v163, 1e-06
    %v168 = vadd.f32 %v164, 1e-06
    %v169 = vadd.f32 %v165, 1e-06
    %v170 = vadd.f32 %v166, 1e-06
    %v171 = vrsqrt.pop %v167
    %v172 = vrsqrt.pop %v168
    %v173 = vrsqrt.pop %v169
    %v174 = vrsqrt.pop %v170
    %v175 = vmul.f32 %v143, %v171
    %v176 = vmul.f32 %v144, %v172
    %v177 = vmul.f32 %v145, %v173
    %v178 = vmul.f32 %v146, %v174
    %v179 = vlaneseq
    %v180 = vshrl.u32 %v179, 7
    %v181 = vsub.s32 0, %v180
    %v182 = vrot.slane %v122, %v181
    %v183 = vmul.f32 %v175, %v182
    %v184 = vmul.f32 %v176, %v182
    %v185 = vmul.f32 %v177, %v182
    %v186 = vmul.f32 %v178, %v182
    %188 = vrot.lane.b32.xlu0 %v182, 96
    %v189 = vpop.permute.xlu0 %188
    %v191 = vadd.f32 %v183, %v189
    %v192 = vadd.f32 %v184, %v189
    %v193 = vadd.f32 %v185, %v189
    %v194 = vadd.f32 %v186, %v189
    %v195 = vpack.c.bf16 %v192, %v191
    %v196 = vpack.c.bf16 %v194, %v193
    %v197 = vld [vmem:[%s1 + $0x20] sm:$0xf]
    %v198 = vld [vmem:[%s1 + $0x24] sm:$0xf]
    %v199 = vld [vmem:[%s1 + $0x28] sm:$0xf]
    %v200 = vld [vmem:[%s1 + $0x2c] sm:$0xf]
    %v201 = vlaneseq
    %v202 = vshrl.u32 %v201, 7
    %v203 = vsub.s32 0, %v202
    %v204 = vrot.slane %v123, %v203
    %v209 = vunpack.c.l.b16 %v197
    %v210 = vunpack.c.l.b16 %v198
    %v211 = vunpack.c.l.b16 %v199
    %v212 = vunpack.c.l.b16 %v200
    %v213 = vpack.c.b16 %v210, %v209
    %v214 = vpack.c.b16 %v212, %v211
    %v218 = vsel %vm125, %v195, 0
    %v221 = vsel %vm125, %v196, 0
    %223 = vmatprep.subr.bf16.mxu0 0
    %224 = vmatpush1.bf16.msra.mxu0 %v213
    %225 = vmatprep.subr.bf16.mxu0 0
    %226 = vmatpush1.bf16.msra.mxu0 %v214
    %227 = vmatprep.subr.bf16.mxu0 0
    %228 = vmatpush1.bf16.msra.mxu0 0
    %229 = vmatprep.subr.bf16.mxu0 0
    %230 = vmatpush1.bf16.msra.mxu0 0
    %231 = vmatprep.subr.bf16.mxu0 0
    %232 = vmatpush1.bf16.msra.mxu0 0
    %233 = vmatprep.subr.bf16.mxu0 0
    %234 = vmatpush1.bf16.msra.mxu0 0
    %235 = vmatprep.subr.bf16.mxu0 0
    %236 = vmatpush1.bf16.msra.mxu0 0
    %237 = vmatprep.subr.bf16.mxu0 0
    %238 = vmatpush1.bf16.msra.mxu0 0
    %239 = vmatprep.subr.bf16.mxu0 0
    %240 = vmatpush1.bf16.msra.mxu0 0
    %241 = vmatprep.subr.bf16.mxu0 0
    %242 = vmatpush1.bf16.msra.mxu0 0
    %243 = vmatprep.subr.bf16.mxu0 0
    %244 = vmatpush1.bf16.msra.mxu0 0
    %245 = vmatprep.subr.bf16.mxu0 0
    %246 = vmatpush1.bf16.msra.mxu0 0
    %247 = vmatprep.subr.bf16.mxu0 0
    %248 = vmatpush1.bf16.msra.mxu0 0
    %249 = vmatprep.subr.bf16.mxu0 0
    %250 = vmatpush1.bf16.msra.mxu0 0
    %251 = vmatprep.subr.bf16.mxu0 0
    %252 = vmatpush1.bf16.msra.mxu0 0
    %253 = vmatprep.subr.bf16.mxu0 0
    %254 = vmatpush1.bf16.msra.mxu0 0
    %255 = vmatprep.mubr.bf16.mxu0 0
    %256 = vmatmul.mubr.bf16.gmra.mrb[0].mxu0 %v218
    %v257 = vpop.f32.mrb[0].mxu0
    %v258 = vadd.f32 %v204, %v257
    %v259 = vpop.f32.mrb[0].mxu0
    %v260 = vpop.f32.mrb[0].mxu0
    %v261 = vadd.f32 %v204, %v260
    %v262 = vpop.f32.mrb[0].mxu0
    %263 = vmatprep.mubr.bf16.mxu0 0
    %264 = vmatmul.mubr.bf16.gmra.mrb[0].mxu0 %v221
    %v265 = vpop.f32.mrb[0].mxu0
    %v266 = vadd.f32 %v204, %v265
    %v267 = vpop.f32.mrb[0].mxu0
    %v268 = vpop.f32.mrb[0].mxu0
    %v269 = vadd.f32 %v204, %v268
    %v270 = vpop.f32.mrb[0].mxu0
    %271 = vdwg.mxu0
    %v272 = vpack.c.bf16 %v261, %v258
    %v273 = vpack.c.bf16 %v269, %v266
    %275 = vrot.lane.b32.xlu0 %v272, 96
    %v276 = vpop.permute.xlu0 %275
    %vm277 = vcmask 64512
    %v279 = vsel %vm277, %v272, 0
    %v282 = vsel %vm277, %v276, 0
    %284 = vmatprep.subr.bf16.mxu0 0
    %285 = vmatpush1.bf16.xpose.msra.mxu0 %v282
    %286 = vmatprep.subr.bf16.mxu0 0
    %287 = vmatpush1.bf16.xpose.msra.mxu0 0
    %288 = vmatprep.subr.bf16.mxu0 0
    %289 = vmatpush1.bf16.xpose.msra.mxu0 0
    %290 = vmatprep.subr.bf16.mxu0 0
    %291 = vmatpush1.bf16.xpose.msra.mxu0 0
    %292 = vmatprep.subr.bf16.mxu0 0
    %293 = vmatpush1.bf16.xpose.msra.mxu0 0
    %294 = vmatprep.subr.bf16.mxu0 0
    %295 = vmatpush1.bf16.xpose.msra.mxu0 0
    %296 = vmatprep.subr.bf16.mxu0 0
    %297 = vmatpush1.bf16.xpose.msra.mxu0 0
    %298 = vmatprep.subr.bf16.mxu0 0
    %299 = vmatpush1.bf16.xpose.msra.mxu0 0
    %300 = vmatprep.subr.bf16.mxu0 0
    %301 = vmatpush1.bf16.xpose.msra.mxu0 0
    %302 = vmatprep.subr.bf16.mxu0 0
    %303 = vmatpush1.bf16.xpose.msra.mxu0 0
    %304 = vmatprep.subr.bf16.mxu0 0
    %305 = vmatpush1.bf16.xpose.msra.mxu0 0
    %306 = vmatprep.subr.bf16.mxu0 0
    %307 = vmatpush1.bf16.xpose.msra.mxu0 0
    %308 = vmatprep.subr.bf16.mxu0 0
    %309 = vmatpush1.bf16.xpose.msra.mxu0 0
    %310 = vmatprep.subr.bf16.mxu0 0
    %311 = vmatpush1.bf16.xpose.msra.mxu0 0
    %312 = vmatprep.subr.bf16.mxu0 0
    %313 = vmatpush1.bf16.xpose.msra.mxu0 0
    %314 = vmatprep.subr.bf16.mxu0 0
    %315 = vmatpush1.bf16.xpose.msra.mxu0 0
    %316 = vmatprep.mubr.bf16.mxu0 0
    %317 = vmatmul.mubr.bf16.gmra.mrb[0].mxu0 %v279
    %v318 = vpop.f32.mrb[0].mxu0
    %v319 = vadd.f32 0.0, %v318
    %v320 = vpop.f32.mrb[0].mxu0
    %v321 = vpop.f32.mrb[0].mxu0
    %v322 = vadd.f32 0.0, %v321
    %v323 = vpop.f32.mrb[0].mxu0
    %324 = vdwg.mxu0
    %vm325 = vcmask 130048
    %v326 = vsel %vm325, %v319, -inf
    %327 = vmax.xlane.f32.xlu0 %v326
    %v328 = vpop.xlane.xlu0 %327
    %v329 = vsel %vm325, %v322, -inf
    %330 = vmax.xlane.f32.xlu0 %v329
    %v331 = vpop.xlane.xlu0 %330
    %v332 = vsub.f32 %v319, %v328
    %v333 = vsub.f32 %v322, %v331
    %v334 = vmul.f32 %v332, 1.442695
    %v335 = vpow.pop %v334
    %v336 = vmul.f32 %v333, 1.442695
    %v337 = vpow.pop %v336
    %v338 = vsel %vm325, %v335, 0.0
    %339 = vadd.xlane.f32.xlu0 %v338
    %v340 = vpop.xlane.xlu0 %339
    %v341 = vsel %vm325, %v337, 0.0
    %342 = vadd.xlane.f32.xlu0 %v341
    %v343 = vpop.xlane.xlu0 %342
    %v344 = vrcp.pop %v340
    %v345 = vrcp.pop %v343
    %v346 = vmul.f32 %v335, %v344
    %v347 = vmul.f32 %v337, %v345
    %v348 = vpack.c.bf16 %v347, %v346
    %349 = vrot.lane.b32.xlu0 %v272, 64
    %v350 = vpop.permute.xlu0 %349
    %v353 = vsel %vm325, %v348, 0
    %355 = vmatprep.subr.bf16.mxu0 0
    %356 = vmatpush1.bf16.msra.mxu0 %v350
    %357 = vmatprep.subr.bf16.mxu0 0
    %358 = vmatpush1.bf16.msra.mxu0 0
    %359 = vmatprep.subr.bf16.mxu0 0
    %360 = vmatpush1.bf16.msra.mxu0 0
    %361 = vmatprep.subr.bf16.mxu0 0
    %362 = vmatpush1.bf16.msra.mxu0 0
    %363 = vmatprep.subr.bf16.mxu0 0
    %364 = vmatpush1.bf16.msra.mxu0 0
    %365 = vmatprep.subr.bf16.mxu0 0
    %366 = vmatpush1.bf16.msra.mxu0 0
    %367 = vmatprep.subr.bf16.mxu0 0
    %368 = vmatpush1.bf16.msra.mxu0 0
    %369 = vmatprep.subr.bf16.mxu0 0
    %370 = vmatpush1.bf16.msra.mxu0 0
    %371 = vmatprep.subr.bf16.mxu0 0
    %372 = vmatpush1.bf16.msra.mxu0 0
    %373 = vmatprep.subr.bf16.mxu0 0
    %374 = vmatpush1.bf16.msra.mxu0 0
    %375 = vmatprep.subr.bf16.mxu0 0
    %376 = vmatpush1.bf16.msra.mxu0 0
    %377 = vmatprep.subr.bf16.mxu0 0
    %378 = vmatpush1.bf16.msra.mxu0 0
    %379 = vmatprep.subr.bf16.mxu0 0
    %380 = vmatpush1.bf16.msra.mxu0 0
    %381 = vmatprep.subr.bf16.mxu0 0
    %382 = vmatpush1.bf16.msra.mxu0 0
    %383 = vmatprep.subr.bf16.mxu0 0
    %384 = vmatpush1.bf16.msra.mxu0 0
    %385 = vmatprep.subr.bf16.mxu0 0
    %386 = vmatpush1.bf16.msra.mxu0 0
    %387 = vmatprep.mubr.bf16.mxu0 0
    %388 = vmatmul.mubr.bf16.gmra.mrb[0].mxu0 %v353
    %v389 = vpop.f32.mrb[0].mxu0
    %v390 = vadd.f32 0.0, %v389
    %v391 = vpop.f32.mrb[0].mxu0
    %v392 = vpop.f32.mrb[0].mxu0
    %v393 = vadd.f32 0.0, %v392
    %v394 = vpop.f32.mrb[0].mxu0
    %395 = vdwg.mxu0
    %396 = vrot.lane.b32.xlu0 %v272, 120
    %v397 = vpop.permute.xlu0 %396
    %398 = vrot.lane.b32.xlu0 %v272, 88
    %v399 = vpop.permute.xlu0 %398
    %v401 = vsel %vm277, %v397, 0
    %v404 = vsel %vm277, %v399, 0
    %406 = vmatprep.subr.bf16.mxu0 0
    %407 = vmatpush1.bf16.xpose.msra.mxu0 %v404
    %408 = vmatprep.subr.bf16.mxu0 0
    %409 = vmatpush1.bf16.xpose.msra.mxu0 0
    %410 = vmatprep.subr.bf16.mxu0 0
    %411 = vmatpush1.bf16.xpose.msra.mxu0 0
    %412 = vmatprep.subr.bf16.mxu0 0
    %413 = vmatpush1.bf16.xpose.msra.mxu0 0
    %414 = vmatprep.subr.bf16.mxu0 0
    %415 = vmatpush1.bf16.xpose.msra.mxu0 0
    %416 = vmatprep.subr.bf16.mxu0 0
    %417 = vmatpush1.bf16.xpose.msra.mxu0 0
    %418 = vmatprep.subr.bf16.mxu0 0
    %419 = vmatpush1.bf16.xpose.msra.mxu0 0
    %420 = vmatprep.subr.bf16.mxu0 0
    %421 = vmatpush1.bf16.xpose.msra.mxu0 0
    %422 = vmatprep.subr.bf16.mxu0 0
    %423 = vmatpush1.bf16.xpose.msra.mxu0 0
    %424 = vmatprep.subr.bf16.mxu0 0
    %425 = vmatpush1.bf16.xpose.msra.mxu0 0
    %426 = vmatprep.subr.bf16.mxu0 0
    %427 = vmatpush1.bf16.xpose.msra.mxu0 0
    %428 = vmatprep.subr.bf16.mxu0 0
    %429 = vmatpush1.bf16.xpose.msra.mxu0 0
    %430 = vmatprep.subr.bf16.mxu0 0
    %431 = vmatpush1.bf16.xpose.msra.mxu0 0
    %432 = vmatprep.subr.bf16.mxu0 0
    %433 = vmatpush1.bf16.xpose.msra.mxu0 0
    %434 = vmatprep.subr.bf16.mxu0 0
    %435 = vmatpush1.bf16.xpose.msra.mxu0 0
    %436 = vmatprep.subr.bf16.mxu0 0
    %437 = vmatpush1.bf16.xpose.msra.mxu0 0
    %438 = vmatprep.mubr.bf16.mxu0 0
    %439 = vmatmul.mubr.bf16.gmra.mrb[0].mxu0 %v401
    %v440 = vpop.f32.mrb[0].mxu0
    %v441 = vadd.f32 0.0, %v440
    %v442 = vpop.f32.mrb[0].mxu0
    %v443 = vpop.f32.mrb[0].mxu0
    %v444 = vadd.f32 0.0, %v443
    %v445 = vpop.f32.mrb[0].mxu0
    %446 = vdwg.mxu0
    %v447 = vsel %vm325, %v441, -inf
    %448 = vmax.xlane.f32.xlu0 %v447
    %v449 = vpop.xlane.xlu0 %448
    %v450 = vsel %vm325, %v444, -inf
    %451 = vmax.xlane.f32.xlu0 %v450
    %v452 = vpop.xlane.xlu0 %451
    %v453 = vsub.f32 %v441, %v449
    %v454 = vsub.f32 %v444, %v452
    %v455 = vmul.f32 %v453, 1.442695
    %v456 = vpow.pop %v455
    %v457 = vmul.f32 %v454, 1.442695
    %v458 = vpow.pop %v457
    %v459 = vsel %vm325, %v456, 0.0
    %460 = vadd.xlane.f32.xlu0 %v459
    %v461 = vpop.xlane.xlu0 %460
    %v462 = vsel %vm325, %v458, 0.0
    %463 = vadd.xlane.f32.xlu0 %v462
    %v464 = vpop.xlane.xlu0 %463
    %v465 = vrcp.pop %v461
    %v466 = vrcp.pop %v464
    %v467 = vmul.f32 %v456, %v465
    %v468 = vmul.f32 %v458, %v466
    %v469 = vpack.c.bf16 %v468, %v467
    %470 = vrot.lane.b32.xlu0 %v272, 56
    %v471 = vpop.permute.xlu0 %470
    %v474 = vsel %vm325, %v469, 0
    %476 = vmatprep.subr.bf16.mxu0 0
    %477 = vmatpush1.bf16.msra.mxu0 %v471
    %478 = vmatprep.subr.bf16.mxu0 0
    %479 = vmatpush1.bf16.msra.mxu0 0
    %480 = vmatprep.subr.bf16.mxu0 0
    %481 = vmatpush1.bf16.msra.mxu0 0
    %482 = vmatprep.subr.bf16.mxu0 0
    %483 = vmatpush1.bf16.msra.mxu0 0
    %484 = vmatprep.subr.bf16.mxu0 0
    %485 = vmatpush1.bf16.msra.mxu0 0
    %486 = vmatprep.subr.bf16.mxu0 0
    %487 = vmatpush1.bf16.msra.mxu0 0
    %488 = vmatprep.subr.bf16.mxu0 0
    %489 = vmatpush1.bf16.msra.mxu0 0
    %490 = vmatprep.subr.bf16.mxu0 0
    %491 = vmatpush1.bf16.msra.mxu0 0
    %492 = vmatprep.subr.bf16.mxu0 0
    %493 = vmatpush1.bf16.msra.mxu0 0
    %494 = vmatprep.subr.bf16.mxu0 0
    %495 = vmatpush1.bf16.msra.mxu0 0
    %496 = vmatprep.subr.bf16.mxu0 0
    %497 = vmatpush1.bf16.msra.mxu0 0
    %498 = vmatprep.subr.bf16.mxu0 0
    %499 = vmatpush1.bf16.msra.mxu0 0
    %500 = vmatprep.subr.bf16.mxu0 0
    %501 = vmatpush1.bf16.msra.mxu0 0
    %502 = vmatprep.subr.bf16.mxu0 0
    %503 = vmatpush1.bf16.msra.mxu0 0
    %504 = vmatprep.subr.bf16.mxu0 0
    %505 = vmatpush1.bf16.msra.mxu0 0
    %506 = vmatprep.subr.bf16.mxu0 0
    %507 = vmatpush1.bf16.msra.mxu0 0
    %508 = vmatprep.mubr.bf16.mxu0 0
    %509 = vmatmul.mubr.bf16.gmra.mrb[0].mxu0 %v474
    %v510 = vpop.f32.mrb[0].mxu0
    %v511 = vadd.f32 0.0, %v510
    %v512 = vpop.f32.mrb[0].mxu0
    %v513 = vpop.f32.mrb[0].mxu0
    %v514 = vadd.f32 0.0, %v513
    %v515 = vpop.f32.mrb[0].mxu0
    %516 = vdwg.mxu0
    %517 = vrot.lane.b32.xlu0 %v272, 112
    %v518 = vpop.permute.xlu0 %517
    %519 = vrot.lane.b32.xlu0 %v272, 80
    %v520 = vpop.permute.xlu0 %519
    %v522 = vsel %vm277, %v518, 0
    %v525 = vsel %vm277, %v520, 0
    %527 = vmatprep.subr.bf16.mxu0 0
    %528 = vmatpush1.bf16.xpose.msra.mxu0 %v525
    %529 = vmatprep.subr.bf16.mxu0 0
    %530 = vmatpush1.bf16.xpose.msra.mxu0 0
    %531 = vmatprep.subr.bf16.mxu0 0
    %532 = vmatpush1.bf16.xpose.msra.mxu0 0
    %533 = vmatprep.subr.bf16.mxu0 0
    %534 = vmatpush1.bf16.xpose.msra.mxu0 0
    %535 = vmatprep.subr.bf16.mxu0 0
    %536 = vmatpush1.bf16.xpose.msra.mxu0 0
    %537 = vmatprep.subr.bf16.mxu0 0
    %538 = vmatpush1.bf16.xpose.msra.mxu0 0
    %539 = vmatprep.subr.bf16.mxu0 0
    %540 = vmatpush1.bf16.xpose.msra.mxu0 0
    %541 = vmatprep.subr.bf16.mxu0 0
    %542 = vmatpush1.bf16.xpose.msra.mxu0 0
    %543 = vmatprep.subr.bf16.mxu0 0
    %544 = vmatpush1.bf16.xpose.msra.mxu0 0
    %545 = vmatprep.subr.bf16.mxu0 0
    %546 = vmatpush1.bf16.xpose.msra.mxu0 0
    %547 = vmatprep.subr.bf16.mxu0 0
    %548 = vmatpush1.bf16.xpose.msra.mxu0 0
    %549 = vmatprep.subr.bf16.mxu0 0
    %550 = vmatpush1.bf16.xpose.msra.mxu0 0
    %551 = vmatprep.subr.bf16.mxu0 0
    %552 = vmatpush1.bf16.xpose.msra.mxu0 0
    %553 = vmatprep.subr.bf16.mxu0 0
    %554 = vmatpush1.bf16.xpose.msra.mxu0 0
    %555 = vmatprep.subr.bf16.mxu0 0
    %556 = vmatpush1.bf16.xpose.msra.mxu0 0
    %557 = vmatprep.subr.bf16.mxu0 0
    %558 = vmatpush1.bf16.xpose.msra.mxu0 0
    %559 = vmatprep.mubr.bf16.mxu0 0
    %560 = vmatmul.mubr.bf16.gmra.mrb[0].mxu0 %v522
    %v561 = vpop.f32.mrb[0].mxu0
    %v562 = vadd.f32 0.0, %v561
    %v563 = vpop.f32.mrb[0].mxu0
    %v564 = vpop.f32.mrb[0].mxu0
    %v565 = vadd.f32 0.0, %v564
    %v566 = vpop.f32.mrb[0].mxu0
    %567 = vdwg.mxu0
    %v568 = vsel %vm325, %v562, -inf
    %569 = vmax.xlane.f32.xlu0 %v568
    %v570 = vpop.xlane.xlu0 %569
    %v571 = vsel %vm325, %v565, -inf
    %572 = vmax.xlane.f32.xlu0 %v571
    %v573 = vpop.xlane.xlu0 %572
    %v574 = vsub.f32 %v562, %v570
    %v575 = vsub.f32 %v565, %v573
    %v576 = vmul.f32 %v574, 1.442695
    %v577 = vpow.pop %v576
    %v578 = vmul.f32 %v575, 1.442695
    %v579 = vpow.pop %v578
    %v580 = vsel %vm325, %v577, 0.0
    %581 = vadd.xlane.f32.xlu0 %v580
    %v582 = vpop.xlane.xlu0 %581
    %v583 = vsel %vm325, %v579, 0.0
    %584 = vadd.xlane.f32.xlu0 %v583
    %v585 = vpop.xlane.xlu0 %584
    %v586 = vrcp.pop %v582
    %v587 = vrcp.pop %v585
    %v588 = vmul.f32 %v577, %v586
    %v589 = vmul.f32 %v579, %v587
    %v590 = vpack.c.bf16 %v589, %v588
    %591 = vrot.lane.b32.xlu0 %v272, 48
    %v592 = vpop.permute.xlu0 %591
    %v595 = vsel %vm325, %v590, 0
    %597 = vmatprep.subr.bf16.mxu0 0
    %598 = vmatpush1.bf16.msra.mxu0 %v592
    %599 = vmatprep.subr.bf16.mxu0 0
    %600 = vmatpush1.bf16.msra.mxu0 0
    %601 = vmatprep.subr.bf16.mxu0 0
    %602 = vmatpush1.bf16.msra.mxu0 0
    %603 = vmatprep.subr.bf16.mxu0 0
    %604 = vmatpush1.bf16.msra.mxu0 0
    %605 = vmatprep.subr.bf16.mxu0 0
    %606 = vmatpush1.bf16.msra.mxu0 0
    %607 = vmatprep.subr.bf16.mxu0 0
    %608 = vmatpush1.bf16.msra.mxu0 0
    %609 = vmatprep.subr.bf16.mxu0 0
    %610 = vmatpush1.bf16.msra.mxu0 0
    %611 = vmatprep.subr.bf16.mxu0 0
    %612 = vmatpush1.bf16.msra.mxu0 0
    %613 = vmatprep.subr.bf16.mxu0 0
    %614 = vmatpush1.bf16.msra.mxu0 0
    %615 = vmatprep.subr.bf16.mxu0 0
    %616 = vmatpush1.bf16.msra.mxu0 0
    %617 = vmatprep.subr.bf16.mxu0 0
    %618 = vmatpush1.bf16.msra.mxu0 0
    %619 = vmatprep.subr.bf16.mxu0 0
    %620 = vmatpush1.bf16.msra.mxu0 0
    %621 = vmatprep.subr.bf16.mxu0 0
    %622 = vmatpush1.bf16.msra.mxu0 0
    %623 = vmatprep.subr.bf16.mxu0 0
    %624 = vmatpush1.bf16.msra.mxu0 0
    %625 = vmatprep.subr.bf16.mxu0 0
    %626 = vmatpush1.bf16.msra.mxu0 0
    %627 = vmatprep.subr.bf16.mxu0 0
    %628 = vmatpush1.bf16.msra.mxu0 0
    %629 = vmatprep.mubr.bf16.mxu0 0
    %630 = vmatmul.mubr.bf16.gmra.mrb[0].mxu0 %v595
    %v631 = vpop.f32.mrb[0].mxu0
    %v632 = vadd.f32 0.0, %v631
    %v633 = vpop.f32.mrb[0].mxu0
    %v634 = vpop.f32.mrb[0].mxu0
    %v635 = vadd.f32 0.0, %v634
    %v636 = vpop.f32.mrb[0].mxu0
    %637 = vdwg.mxu0
    %638 = vrot.lane.b32.xlu0 %v272, 104
    %v639 = vpop.permute.xlu0 %638
    %640 = vrot.lane.b32.xlu0 %v272, 72
    %v641 = vpop.permute.xlu0 %640
    %v643 = vsel %vm277, %v639, 0
    %v646 = vsel %vm277, %v641, 0
    %648 = vmatprep.subr.bf16.mxu0 0
    %649 = vmatpush1.bf16.xpose.msra.mxu0 %v646
    %650 = vmatprep.subr.bf16.mxu0 0
    %651 = vmatpush1.bf16.xpose.msra.mxu0 0
    %652 = vmatprep.subr.bf16.mxu0 0
    %653 = vmatpush1.bf16.xpose.msra.mxu0 0
    %654 = vmatprep.subr.bf16.mxu0 0
    %655 = vmatpush1.bf16.xpose.msra.mxu0 0
    %656 = vmatprep.subr.bf16.mxu0 0
    %657 = vmatpush1.bf16.xpose.msra.mxu0 0
    %658 = vmatprep.subr.bf16.mxu0 0
    %659 = vmatpush1.bf16.xpose.msra.mxu0 0
    %660 = vmatprep.subr.bf16.mxu0 0
    %661 = vmatpush1.bf16.xpose.msra.mxu0 0
    %662 = vmatprep.subr.bf16.mxu0 0
    %663 = vmatpush1.bf16.xpose.msra.mxu0 0
    %664 = vmatprep.subr.bf16.mxu0 0
    %665 = vmatpush1.bf16.xpose.msra.mxu0 0
    %666 = vmatprep.subr.bf16.mxu0 0
    %667 = vmatpush1.bf16.xpose.msra.mxu0 0
    %668 = vmatprep.subr.bf16.mxu0 0
    %669 = vmatpush1.bf16.xpose.msra.mxu0 0
    %670 = vmatprep.subr.bf16.mxu0 0
    %671 = vmatpush1.bf16.xpose.msra.mxu0 0
    %672 = vmatprep.subr.bf16.mxu0 0
    %673 = vmatpush1.bf16.xpose.msra.mxu0 0
    %674 = vmatprep.subr.bf16.mxu0 0
    %675 = vmatpush1.bf16.xpose.msra.mxu0 0
    %676 = vmatprep.subr.bf16.mxu0 0
    %677 = vmatpush1.bf16.xpose.msra.mxu0 0
    %678 = vmatprep.subr.bf16.mxu0 0
    %679 = vmatpush1.bf16.xpose.msra.mxu0 0
    %680 = vmatprep.mubr.bf16.mxu0 0
    %681 = vmatmul.mubr.bf16.gmra.mrb[0].mxu0 %v643
    %v682 = vpop.f32.mrb[0].mxu0
    %v683 = vadd.f32 0.0, %v682
    %v684 = vpop.f32.mrb[0].mxu0
    %v685 = vpop.f32.mrb[0].mxu0
    %v686 = vadd.f32 0.0, %v685
    %v687 = vpop.f32.mrb[0].mxu0
    %688 = vdwg.mxu0
    %v689 = vsel %vm325, %v683, -inf
    %690 = vmax.xlane.f32.xlu0 %v689
    %v691 = vpop.xlane.xlu0 %690
    %v692 = vsel %vm325, %v686, -inf
    %693 = vmax.xlane.f32.xlu0 %v692
    %v694 = vpop.xlane.xlu0 %693
    %v695 = vsub.f32 %v683, %v691
    %v696 = vsub.f32 %v686, %v694
    %v697 = vmul.f32 %v695, 1.442695
    %v698 = vpow.pop %v697
    %v699 = vmul.f32 %v696, 1.442695
    %v700 = vpow.pop %v699
    %v701 = vsel %vm325, %v698, 0.0
    %702 = vadd.xlane.f32.xlu0 %v701
    %v703 = vpop.xlane.xlu0 %702
    %v704 = vsel %vm325, %v700, 0.0
    %705 = vadd.xlane.f32.xlu0 %v704
    %v706 = vpop.xlane.xlu0 %705
    %v707 = vrcp.pop %v703
    %v708 = vrcp.pop %v706
    %v709 = vmul.f32 %v698, %v707
    %v710 = vmul.f32 %v700, %v708
    %v711 = vpack.c.bf16 %v710, %v709
    %712 = vrot.lane.b32.xlu0 %v272, 40
    %v713 = vpop.permute.xlu0 %712
    %v716 = vsel %vm325, %v711, 0
    %718 = vmatprep.subr.bf16.mxu0 0
    %719 = vmatpush1.bf16.msra.mxu0 %v713
    %720 = vmatprep.subr.bf16.mxu0 0
    %721 = vmatpush1.bf16.msra.mxu0 0
    %722 = vmatprep.subr.bf16.mxu0 0
    %723 = vmatpush1.bf16.msra.mxu0 0
    %724 = vmatprep.subr.bf16.mxu0 0
    %725 = vmatpush1.bf16.msra.mxu0 0
    %726 = vmatprep.subr.bf16.mxu0 0
    %727 = vmatpush1.bf16.msra.mxu0 0
    %728 = vmatprep.subr.bf16.mxu0 0
    %729 = vmatpush1.bf16.msra.mxu0 0
    %730 = vmatprep.subr.bf16.mxu0 0
    %731 = vmatpush1.bf16.msra.mxu0 0
    %732 = vmatprep.subr.bf16.mxu0 0
    %733 = vmatpush1.bf16.msra.mxu0 0
    %734 = vmatprep.subr.bf16.mxu0 0
    %735 = vmatpush1.bf16.msra.mxu0 0
    %736 = vmatprep.subr.bf16.mxu0 0
    %737 = vmatpush1.bf16.msra.mxu0 0
    %738 = vmatprep.subr.bf16.mxu0 0
    %739 = vmatpush1.bf16.msra.mxu0 0
    %740 = vmatprep.subr.bf16.mxu0 0
    %741 = vmatpush1.bf16.msra.mxu0 0
    %742 = vmatprep.subr.bf16.mxu0 0
    %743 = vmatpush1.bf16.msra.mxu0 0
    %744 = vmatprep.subr.bf16.mxu0 0
    %745 = vmatpush1.bf16.msra.mxu0 0
    %746 = vmatprep.subr.bf16.mxu0 0
    %747 = vmatpush1.bf16.msra.mxu0 0
    %748 = vmatprep.subr.bf16.mxu0 0
    %749 = vmatpush1.bf16.msra.mxu0 0
    %750 = vmatprep.mubr.bf16.mxu0 0
    %751 = vmatmul.mubr.bf16.gmra.mrb[0].mxu0 %v716
    %v752 = vpop.f32.mrb[0].mxu0
    %v753 = vadd.f32 0.0, %v752
    %v754 = vpop.f32.mrb[0].mxu0
    %v755 = vpop.f32.mrb[0].mxu0
    %v756 = vadd.f32 0.0, %v755
    %v757 = vpop.f32.mrb[0].mxu0
    %758 = vdwg.mxu0
    %761 = vrot.lane.b32.xlu0 %v511, 8
    %v762 = vpop.permute.xlu0 %761
    %763 = vrot.lane.b32.xlu0 %v514, 8
    %v764 = vpop.permute.xlu0 %763
    %769 = vrot.lane.b32.xlu0 %v632, 16
    %v770 = vpop.permute.xlu0 %769
    %771 = vrot.lane.b32.xlu0 %v635, 16
    %v772 = vpop.permute.xlu0 %771
    %777 = vrot.lane.b32.xlu0 %v753, 24
    %v778 = vpop.permute.xlu0 %777
    %779 = vrot.lane.b32.xlu0 %v756, 24
    %v780 = vpop.permute.xlu0 %779
    %v783 = vsel %vm277, %v390, %v762
    %v784 = vsel %vm277, %v393, %v764
    %v785 = vsel %vm325, %v783, %v770
    %v786 = vsel %vm325, %v784, %v772
    %vm787 = vcmask 195584
    %v788 = vsel %vm787, %v785, %v778
    %v789 = vsel %vm787, %v786, %v780
    %791 = vrot.lane.b32.xlu0 %v273, 96
    %v792 = vpop.permute.xlu0 %791
    %v794 = vsel %vm277, %v273, 0
    %v797 = vsel %vm277, %v792, 0
    %799 = vmatprep.subr.bf16.mxu0 0
    %800 = vmatpush1.bf16.xpose.msra.mxu0 %v797
    %801 = vmatprep.subr.bf16.mxu0 0
    %802 = vmatpush1.bf16.xpose.msra.mxu0 0
    %803 = vmatprep.subr.bf16.mxu0 0
    %804 = vmatpush1.bf16.xpose.msra.mxu0 0
    %805 = vmatprep.subr.bf16.mxu0 0
    %806 = vmatpush1.bf16.xpose.msra.mxu0 0
    %807 = vmatprep.subr.bf16.mxu0 0
    %808 = vmatpush1.bf16.xpose.msra.mxu0 0
    %809 = vmatprep.subr.bf16.mxu0 0
    %810 = vmatpush1.bf16.xpose.msra.mxu0 0
    %811 = vmatprep.subr.bf16.mxu0 0
    %812 = vmatpush1.bf16.xpose.msra.mxu0 0
    %813 = vmatprep.subr.bf16.mxu0 0
    %814 = vmatpush1.bf16.xpose.msra.mxu0 0
    %815 = vmatprep.subr.bf16.mxu0 0
    %816 = vmatpush1.bf16.xpose.msra.mxu0 0
    %817 = vmatprep.subr.bf16.mxu0 0
    %818 = vmatpush1.bf16.xpose.msra.mxu0 0
    %819 = vmatprep.subr.bf16.mxu0 0
    %820 = vmatpush1.bf16.xpose.msra.mxu0 0
    %821 = vmatprep.subr.bf16.mxu0 0
    %822 = vmatpush1.bf16.xpose.msra.mxu0 0
    %823 = vmatprep.subr.bf16.mxu0 0
    %824 = vmatpush1.bf16.xpose.msra.mxu0 0
    %825 = vmatprep.subr.bf16.mxu0 0
    %826 = vmatpush1.bf16.xpose.msra.mxu0 0
    %827 = vmatprep.subr.bf16.mxu0 0
    %828 = vmatpush1.bf16.xpose.msra.mxu0 0
    %829 = vmatprep.subr.bf16.mxu0 0
    %830 = vmatpush1.bf16.xpose.msra.mxu0 0
    %831 = vmatprep.mubr.bf16.mxu0 0
    %832 = vmatmul.mubr.bf16.gmra.mrb[0].mxu0 %v794
    %v833 = vpop.f32.mrb[0].mxu0
    %v834 = vadd.f32 0.0, %v833
    %v835 = vpop.f32.mrb[0].mxu0
    %v836 = vpop.f32.mrb[0].mxu0
    %v837 = vadd.f32 0.0, %v836
    %v838 = vpop.f32.mrb[0].mxu0
    %839 = vdwg.mxu0
    %v840 = vsel %vm325, %v834, -inf
    %841 = vmax.xlane.f32.xlu0 %v840
    %v842 = vpop.xlane.xlu0 %841
    %v843 = vsel %vm325, %v837, -inf
    %844 = vmax.xlane.f32.xlu0 %v843
    %v845 = vpop.xlane.xlu0 %844
    %v846 = vsub.f32 %v834, %v842
    %v847 = vsub.f32 %v837, %v845
    %v848 = vmul.f32 %v846, 1.442695
    %v849 = vpow.pop %v848
    %v850 = vmul.f32 %v847, 1.442695
    %v851 = vpow.pop %v850
    %v852 = vsel %vm325, %v849, 0.0
    %853 = vadd.xlane.f32.xlu0 %v852
    %v854 = vpop.xlane.xlu0 %853
    %v855 = vsel %vm325, %v851, 0.0
    %856 = vadd.xlane.f32.xlu0 %v855
    %v857 = vpop.xlane.xlu0 %856
    %v858 = vrcp.pop %v854
    %v859 = vrcp.pop %v857
    %v860 = vmul.f32 %v849, %v858
    %v861 = vmul.f32 %v851, %v859
    %v862 = vpack.c.bf16 %v861, %v860
    %863 = vrot.lane.b32.xlu0 %v273, 64
    %v864 = vpop.permute.xlu0 %863
    %v867 = vsel %vm325, %v862, 0
    %869 = vmatprep.subr.bf16.mxu0 0
    %870 = vmatpush1.bf16.msra.mxu0 %v864
    %871 = vmatprep.subr.bf16.mxu0 0
    %872 = vmatpush1.bf16.msra.mxu0 0
    %873 = vmatprep.subr.bf16.mxu0 0
    %874 = vmatpush1.bf16.msra.mxu0 0
    %875 = vmatprep.subr.bf16.mxu0 0
    %876 = vmatpush1.bf16.msra.mxu0 0
    %877 = vmatprep.subr.bf16.mxu0 0
    %878 = vmatpush1.bf16.msra.mxu0 0
    %879 = vmatprep.subr.bf16.mxu0 0
    %880 = vmatpush1.bf16.msra.mxu0 0
    %881 = vmatprep.subr.bf16.mxu0 0
    %882 = vmatpush1.bf16.msra.mxu0 0
    %883 = vmatprep.subr.bf16.mxu0 0
    %884 = vmatpush1.bf16.msra.mxu0 0
    %885 = vmatprep.subr.bf16.mxu0 0
    %886 = vmatpush1.bf16.msra.mxu0 0
    %887 = vmatprep.subr.bf16.mxu0 0
    %888 = vmatpush1.bf16.msra.mxu0 0
    %889 = vmatprep.subr.bf16.mxu0 0
    %890 = vmatpush1.bf16.msra.mxu0 0
    %891 = vmatprep.subr.bf16.mxu0 0
    %892 = vmatpush1.bf16.msra.mxu0 0
    %893 = vmatprep.subr.bf16.mxu0 0
    %894 = vmatpush1.bf16.msra.mxu0 0
    %895 = vmatprep.subr.bf16.mxu0 0
    %896 = vmatpush1.bf16.msra.mxu0 0
    %897 = vmatprep.subr.bf16.mxu0 0
    %898 = vmatpush1.bf16.msra.mxu0 0
    %899 = vmatprep.subr.bf16.mxu0 0
    %900 = vmatpush1.bf16.msra.mxu0 0
    %901 = vmatprep.mubr.bf16.mxu0 0
    %902 = vmatmul.mubr.bf16.gmra.mrb[0].mxu0 %v867
    %v903 = vpop.f32.mrb[0].mxu0
    %v904 = vadd.f32 0.0, %v903
    %v905 = vpop.f32.mrb[0].mxu0
    %v906 = vpop.f32.mrb[0].mxu0
    %v907 = vadd.f32 0.0, %v906
    %v908 = vpop.f32.mrb[0].mxu0
    %909 = vdwg.mxu0
    %910 = vrot.lane.b32.xlu0 %v273, 120
    %v911 = vpop.permute.xlu0 %910
    %912 = vrot.lane.b32.xlu0 %v273, 88
    %v913 = vpop.permute.xlu0 %912
    %v915 = vsel %vm277, %v911, 0
    %v918 = vsel %vm277, %v913, 0
    %920 = vmatprep.subr.bf16.mxu0 0
    %921 = vmatpush1.bf16.xpose.msra.mxu0 %v918
    %922 = vmatprep.subr.bf16.mxu0 0
    %923 = vmatpush1.bf16.xpose.msra.mxu0 0
    %924 = vmatprep.subr.bf16.mxu0 0
    %925 = vmatpush1.bf16.xpose.msra.mxu0 0
    %926 = vmatprep.subr.bf16.mxu0 0
    %927 = vmatpush1.bf16.xpose.msra.mxu0 0
    %928 = vmatprep.subr.bf16.mxu0 0
    %929 = vmatpush1.bf16.xpose.msra.mxu0 0
    %930 = vmatprep.subr.bf16.mxu0 0
    %931 = vmatpush1.bf16.xpose.msra.mxu0 0
    %932 = vmatprep.subr.bf16.mxu0 0
    %933 = vmatpush1.bf16.xpose.msra.mxu0 0
    %934 = vmatprep.subr.bf16.mxu0 0
    %935 = vmatpush1.bf16.xpose.msra.mxu0 0
    %936 = vmatprep.subr.bf16.mxu0 0
    %937 = vmatpush1.bf16.xpose.msra.mxu0 0
    %938 = vmatprep.subr.bf16.mxu0 0
    %939 = vmatpush1.bf16.xpose.msra.mxu0 0
    %940 = vmatprep.subr.bf16.mxu0 0
    %941 = vmatpush1.bf16.xpose.msra.mxu0 0
    %942 = vmatprep.subr.bf16.mxu0 0
    %943 = vmatpush1.bf16.xpose.msra.mxu0 0
    %944 = vmatprep.subr.bf16.mxu0 0
    %945 = vmatpush1.bf16.xpose.msra.mxu0 0
    %946 = vmatprep.subr.bf16.mxu0 0
    %947 = vmatpush1.bf16.xpose.msra.mxu0 0
    %948 = vmatprep.subr.bf16.mxu0 0
    %949 = vmatpush1.bf16.xpose.msra.mxu0 0
    %950 = vmatprep.subr.bf16.mxu0 0
    %951 = vmatpush1.bf16.xpose.msra.mxu0 0
    %952 = vmatprep.mubr.bf16.mxu0 0
    %953 = vmatmul.mubr.bf16.gmra.mrb[0].mxu0 %v915
    %v954 = vpop.f32.mrb[0].mxu0
    %v955 = vadd.f32 0.0, %v954
    %v956 = vpop.f32.mrb[0].mxu0
    %v957 = vpop.f32.mrb[0].mxu0
    %v958 = vadd.f32 0.0, %v957
    %v959 = vpop.f32.mrb[0].mxu0
    %960 = vdwg.mxu0
    %v961 = vsel %vm325, %v955, -inf
    %962 = vmax.xlane.f32.xlu0 %v961
    %v963 = vpop.xlane.xlu0 %962
    %v964 = vsel %vm325, %v958, -inf
    %965 = vmax.xlane.f32.xlu0 %v964
    %v966 = vpop.xlane.xlu0 %965
    %v967 = vsub.f32 %v955, %v963
    %v968 = vsub.f32 %v958, %v966
    %v969 = vmul.f32 %v967, 1.442695
    %v970 = vpow.pop %v969
    %v971 = vmul.f32 %v968, 1.442695
    %v972 = vpow.pop %v971
    %v973 = vsel %vm325, %v970, 0.0
    %974 = vadd.xlane.f32.xlu0 %v973
    %v975 = vpop.xlane.xlu0 %974
    %v976 = vsel %vm325, %v972, 0.0
    %977 = vadd.xlane.f32.xlu0 %v976
    %v978 = vpop.xlane.xlu0 %977
    %v979 = vrcp.pop %v975
    %v980 = vrcp.pop %v978
    %v981 = vmul.f32 %v970, %v979
    %v982 = vmul.f32 %v972, %v980
    %v983 = vpack.c.bf16 %v982, %v981
    %984 = vrot.lane.b32.xlu0 %v273, 56
    %v985 = vpop.permute.xlu0 %984
    %v988 = vsel %vm325, %v983, 0
    %990 = vmatprep.subr.bf16.mxu0 0
    %991 = vmatpush1.bf16.msra.mxu0 %v985
    %992 = vmatprep.subr.bf16.mxu0 0
    %993 = vmatpush1.bf16.msra.mxu0 0
    %994 = vmatprep.subr.bf16.mxu0 0
    %995 = vmatpush1.bf16.msra.mxu0 0
    %996 = vmatprep.subr.bf16.mxu0 0
    %997 = vmatpush1.bf16.msra.mxu0 0
    %998 = vmatprep.subr.bf16.mxu0 0
    %999 = vmatpush1.bf16.msra.mxu0 0
    %1000 = vmatprep.subr.bf16.mxu0 0
    %1001 = vmatpush1.bf16.msra.mxu0 0
    %1002 = vmatprep.subr.bf16.mxu0 0
    %1003 = vmatpush1.bf16.msra.mxu0 0
    %1004 = vmatprep.subr.bf16.mxu0 0
    %1005 = vmatpush1.bf16.msra.mxu0 0
    %1006 = vmatprep.subr.bf16.mxu0 0
    %1007 = vmatpush1.bf16.msra.mxu0 0
    %1008 = vmatprep.subr.bf16.mxu0 0
    %1009 = vmatpush1.bf16.msra.mxu0 0
    %1010 = vmatprep.subr.bf16.mxu0 0
    %1011 = vmatpush1.bf16.msra.mxu0 0
    %1012 = vmatprep.subr.bf16.mxu0 0
    %1013 = vmatpush1.bf16.msra.mxu0 0
    %1014 = vmatprep.subr.bf16.mxu0 0
    %1015 = vmatpush1.bf16.msra.mxu0 0
    %1016 = vmatprep.subr.bf16.mxu0 0
    %1017 = vmatpush1.bf16.msra.mxu0 0
    %1018 = vmatprep.subr.bf16.mxu0 0
    %1019 = vmatpush1.bf16.msra.mxu0 0
    %1020 = vmatprep.subr.bf16.mxu0 0
    %1021 = vmatpush1.bf16.msra.mxu0 0
    %1022 = vmatprep.mubr.bf16.mxu0 0
    %1023 = vmatmul.mubr.bf16.gmra.mrb[0].mxu0 %v988
    %v1024 = vpop.f32.mrb[0].mxu0
    %v1025 = vadd.f32 0.0, %v1024
    %v1026 = vpop.f32.mrb[0].mxu0
    %v1027 = vpop.f32.mrb[0].mxu0
    %v1028 = vadd.f32 0.0, %v1027
    %v1029 = vpop.f32.mrb[0].mxu0
    %1030 = vdwg.mxu0
    %1031 = vrot.lane.b32.xlu0 %v273, 112
    %v1032 = vpop.permute.xlu0 %1031
    %1033 = vrot.lane.b32.xlu0 %v273, 80
    %v1034 = vpop.permute.xlu0 %1033
    %v1036 = vsel %vm277, %v1032, 0
    %v1039 = vsel %vm277, %v1034, 0
    %1041 = vmatprep.subr.bf16.mxu0 0
    %1042 = vmatpush1.bf16.xpose.msra.mxu0 %v1039
    %1043 = vmatprep.subr.bf16.mxu0 0
    %1044 = vmatpush1.bf16.xpose.msra.mxu0 0
    %1045 = vmatprep.subr.bf16.mxu0 0
    %1046 = vmatpush1.bf16.xpose.msra.mxu0 0
    %1047 = vmatprep.subr.bf16.mxu0 0
    %1048 = vmatpush1.bf16.xpose.msra.mxu0 0
    %1049 = vmatprep.subr.bf16.mxu0 0
    %1050 = vmatpush1.bf16.xpose.msra.mxu0 0
    %1051 = vmatprep.subr.bf16.mxu0 0
    %1052 = vmatpush1.bf16.xpose.msra.mxu0 0
    %1053 = vmatprep.subr.bf16.mxu0 0
    %1054 = vmatpush1.bf16.xpose.msra.mxu0 0
    %1055 = vmatprep.subr.bf16.mxu0 0
    %1056 = vmatpush1.bf16.xpose.msra.mxu0 0
    %1057 = vmatprep.subr.bf16.mxu0 0
    %1058 = vmatpush1.bf16.xpose.msra.mxu0 0
    %1059 = vmatprep.subr.bf16.mxu0 0
    %1060 = vmatpush1.bf16.xpose.msra.mxu0 0
    %1061 = vmatprep.subr.bf16.mxu0 0
    %1062 = vmatpush1.bf16.xpose.msra.mxu0 0
    %1063 = vmatprep.subr.bf16.mxu0 0
    %1064 = vmatpush1.bf16.xpose.msra.mxu0 0
    %1065 = vmatprep.subr.bf16.mxu0 0
    %1066 = vmatpush1.bf16.xpose.msra.mxu0 0
    %1067 = vmatprep.subr.bf16.mxu0 0
    %1068 = vmatpush1.bf16.xpose.msra.mxu0 0
    %1069 = vmatprep.subr.bf16.mxu0 0
    %1070 = vmatpush1.bf16.xpose.msra.mxu0 0
    %1071 = vmatprep.subr.bf16.mxu0 0
    %1072 = vmatpush1.bf16.xpose.msra.mxu0 0
    %1073 = vmatprep.mubr.bf16.mxu0 0
    %1074 = vmatmul.mubr.bf16.gmra.mrb[0].mxu0 %v1036
    %v1075 = vpop.f32.mrb[0].mxu0
    %v1076 = vadd.f32 0.0, %v1075
    %v1077 = vpop.f32.mrb[0].mxu0
    %v1078 = vpop.f32.mrb[0].mxu0
    %v1079 = vadd.f32 0.0, %v1078
    %v1080 = vpop.f32.mrb[0].mxu0
    %1081 = vdwg.mxu0
    %v1082 = vsel %vm325, %v1076, -inf
    %1083 = vmax.xlane.f32.xlu0 %v1082
    %v1084 = vpop.xlane.xlu0 %1083
    %v1085 = vsel %vm325, %v1079, -inf
    %1086 = vmax.xlane.f32.xlu0 %v1085
    %v1087 = vpop.xlane.xlu0 %1086
    %v1088 = vsub.f32 %v1076, %v1084
    %v1089 = vsub.f32 %v1079, %v1087
    %v1090 = vmul.f32 %v1088, 1.442695
    %v1091 = vpow.pop %v1090
    %v1092 = vmul.f32 %v1089, 1.442695
    %v1093 = vpow.pop %v1092
    %v1094 = vsel %vm325, %v1091, 0.0
    %1095 = vadd.xlane.f32.xlu0 %v1094
    %v1096 = vpop.xlane.xlu0 %1095
    %v1097 = vsel %vm325, %v1093, 0.0
    %1098 = vadd.xlane.f32.xlu0 %v1097
    %v1099 = vpop.xlane.xlu0 %1098
    %v1100 = vrcp.pop %v1096
    %v1101 = vrcp.pop %v1099
    %v1102 = vmul.f32 %v1091, %v1100
    %v1103 = vmul.f32 %v1093, %v1101
    %v1104 = vpack.c.bf16 %v1103, %v1102
    %1105 = vrot.lane.b32.xlu0 %v273, 48
    %v1106 = vpop.permute.xlu0 %1105
    %v1109 = vsel %vm325, %v1104, 0
    %1111 = vmatprep.subr.bf16.mxu0 0
    %1112 = vmatpush1.bf16.msra.mxu0 %v1106
    %1113 = vmatprep.subr.bf16.mxu0 0
    %1114 = vmatpush1.bf16.msra.mxu0 0
    %1115 = vmatprep.subr.bf16.mxu0 0
    %1116 = vmatpush1.bf16.msra.mxu0 0
    %1117 = vmatprep.subr.bf16.mxu0 0
    %1118 = vmatpush1.bf16.msra.mxu0 0
    %1119 = vmatprep.subr.bf16.mxu0 0
    %1120 = vmatpush1.bf16.msra.mxu0 0
    %1121 = vmatprep.subr.bf16.mxu0 0
    %1122 = vmatpush1.bf16.msra.mxu0 0
    %1123 = vmatprep.subr.bf16.mxu0 0
    %1124 = vmatpush1.bf16.msra.mxu0 0
    %1125 = vmatprep.subr.bf16.mxu0 0
    %1126 = vmatpush1.bf16.msra.mxu0 0
    %1127 = vmatprep.subr.bf16.mxu0 0
    %1128 = vmatpush1.bf16.msra.mxu0 0
    %1129 = vmatprep.subr.bf16.mxu0 0
    %1130 = vmatpush1.bf16.msra.mxu0 0
    %1131 = vmatprep.subr.bf16.mxu0 0
    %1132 = vmatpush1.bf16.msra.mxu0 0
    %1133 = vmatprep.subr.bf16.mxu0 0
    %1134 = vmatpush1.bf16.msra.mxu0 0
    %1135 = vmatprep.subr.bf16.mxu0 0
    %1136 = vmatpush1.bf16.msra.mxu0 0
    %1137 = vmatprep.subr.bf16.mxu0 0
    %1138 = vmatpush1.bf16.msra.mxu0 0
    %1139 = vmatprep.subr.bf16.mxu0 0
    %1140 = vmatpush1.bf16.msra.mxu0 0
    %1141 = vmatprep.subr.bf16.mxu0 0
    %1142 = vmatpush1.bf16.msra.mxu0 0
    %1143 = vmatprep.mubr.bf16.mxu0 0
    %1144 = vmatmul.mubr.bf16.gmra.mrb[0].mxu0 %v1109
    %v1145 = vpop.f32.mrb[0].mxu0
    %v1146 = vadd.f32 0.0, %v1145
    %v1147 = vpop.f32.mrb[0].mxu0
    %v1148 = vpop.f32.mrb[0].mxu0
    %v1149 = vadd.f32 0.0, %v1148
    %v1150 = vpop.f32.mrb[0].mxu0
    %1151 = vdwg.mxu0
    %1152 = vrot.lane.b32.xlu0 %v273, 104
    %v1153 = vpop.permute.xlu0 %1152
    %1154 = vrot.lane.b32.xlu0 %v273, 72
    %v1155 = vpop.permute.xlu0 %1154
    %v1157 = vsel %vm277, %v1153, 0
    %v1160 = vsel %vm277, %v1155, 0
    %1162 = vmatprep.subr.bf16.mxu0 0
    %1163 = vmatpush1.bf16.xpose.msra.mxu0 %v1160
    %1164 = vmatprep.subr.bf16.mxu0 0
    %1165 = vmatpush1.bf16.xpose.msra.mxu0 0
    %1166 = vmatprep.subr.bf16.mxu0 0
    %1167 = vmatpush1.bf16.xpose.msra.mxu0 0
    %1168 = vmatprep.subr.bf16.mxu0 0
    %1169 = vmatpush1.bf16.xpose.msra.mxu0 0
    %1170 = vmatprep.subr.bf16.mxu0 0
    %1171 = vmatpush1.bf16.xpose.msra.mxu0 0
    %1172 = vmatprep.subr.bf16.mxu0 0
    %1173 = vmatpush1.bf16.xpose.msra.mxu0 0
    %1174 = vmatprep.subr.bf16.mxu0 0
    %1175 = vmatpush1.bf16.xpose.msra.mxu0 0
    %1176 = vmatprep.subr.bf16.mxu0 0
    %1177 = vmatpush1.bf16.xpose.msra.mxu0 0
    %1178 = vmatprep.subr.bf16.mxu0 0
    %1179 = vmatpush1.bf16.xpose.msra.mxu0 0
    %1180 = vmatprep.subr.bf16.mxu0 0
    %1181 = vmatpush1.bf16.xpose.msra.mxu0 0
    %1182 = vmatprep.subr.bf16.mxu0 0
    %1183 = vmatpush1.bf16.xpose.msra.mxu0 0
    %1184 = vmatprep.subr.bf16.mxu0 0
    %1185 = vmatpush1.bf16.xpose.msra.mxu0 0
    %1186 = vmatprep.subr.bf16.mxu0 0
    %1187 = vmatpush1.bf16.xpose.msra.mxu0 0
    %1188 = vmatprep.subr.bf16.mxu0 0
    %1189 = vmatpush1.bf16.xpose.msra.mxu0 0
    %1190 = vmatprep.subr.bf16.mxu0 0
    %1191 = vmatpush1.bf16.xpose.msra.mxu0 0
    %1192 = vmatprep.subr.bf16.mxu0 0
    %1193 = vmatpush1.bf16.xpose.msra.mxu0 0
    %1194 = vmatprep.mubr.bf16.mxu0 0
    %1195 = vmatmul.mubr.bf16.gmra.mrb[0].mxu0 %v1157
    %v1196 = vpop.f32.mrb[0].mxu0
    %v1197 = vadd.f32 0.0, %v1196
    %v1198 = vpop.f32.mrb[0].mxu0
    %v1199 = vpop.f32.mrb[0].mxu0
    %v1200 = vadd.f32 0.0, %v1199
    %v1201 = vpop.f32.mrb[0].mxu0
    %1202 = vdwg.mxu0
    %v1203 = vsel %vm325, %v1197, -inf
    %1204 = vmax.xlane.f32.xlu0 %v1203
    %v1205 = vpop.xlane.xlu0 %1204
    %v1206 = vsel %vm325, %v1200, -inf
    %1207 = vmax.xlane.f32.xlu0 %v1206
    %v1208 = vpop.xlane.xlu0 %1207
    %v1209 = vsub.f32 %v1197, %v1205
    %v1210 = vsub.f32 %v1200, %v1208
    %v1211 = vmul.f32 %v1209, 1.442695
    %v1212 = vpow.pop %v1211
    %v1213 = vmul.f32 %v1210, 1.442695
    %v1214 = vpow.pop %v1213
    %v1215 = vsel %vm325, %v1212, 0.0
    %1216 = vadd.xlane.f32.xlu0 %v1215
    %v1217 = vpop.xlane.xlu0 %1216
    %v1218 = vsel %vm325, %v1214, 0.0
    %1219 = vadd.xlane.f32.xlu0 %v1218
    %v1220 = vpop.xlane.xlu0 %1219
    %v1221 = vrcp.pop %v1217
    %v1222 = vrcp.pop %v1220
    %v1223 = vmul.f32 %v1212, %v1221
    %v1224 = vmul.f32 %v1214, %v1222
    %v1225 = vpack.c.bf16 %v1224, %v1223
    %1226 = vrot.lane.b32.xlu0 %v273, 40
    %v1227 = vpop.permute.xlu0 %1226
    %v1230 = vsel %vm325, %v1225, 0
    %1232 = vmatprep.subr.bf16.mxu0 0
    %1233 = vmatpush1.bf16.msra.mxu0 %v1227
    %1234 = vmatprep.subr.bf16.mxu0 0
    %1235 = vmatpush1.bf16.msra.mxu0 0
    %1236 = vmatprep.subr.bf16.mxu0 0
    %1237 = vmatpush1.bf16.msra.mxu0 0
    %1238 = vmatprep.subr.bf16.mxu0 0
    %1239 = vmatpush1.bf16.msra.mxu0 0
    %1240 = vmatprep.subr.bf16.mxu0 0
    %1241 = vmatpush1.bf16.msra.mxu0 0
    %1242 = vmatprep.subr.bf16.mxu0 0
    %1243 = vmatpush1.bf16.msra.mxu0 0
    %1244 = vmatprep.subr.bf16.mxu0 0
    %1245 = vmatpush1.bf16.msra.mxu0 0
    %1246 = vmatprep.subr.bf16.mxu0 0
    %1247 = vmatpush1.bf16.msra.mxu0 0
    %1248 = vmatprep.subr.bf16.mxu0 0
    %1249 = vmatpush1.bf16.msra.mxu0 0
    %1250 = vmatprep.subr.bf16.mxu0 0
    %1251 = vmatpush1.bf16.msra.mxu0 0
    %1252 = vmatprep.subr.bf16.mxu0 0
    %1253 = vmatpush1.bf16.msra.mxu0 0
    %1254 = vmatprep.subr.bf16.mxu0 0
    %1255 = vmatpush1.bf16.msra.mxu0 0
    %1256 = vmatprep.subr.bf16.mxu0 0
    %1257 = vmatpush1.bf16.msra.mxu0 0
    %1258 = vmatprep.subr.bf16.mxu0 0
    %1259 = vmatpush1.bf16.msra.mxu0 0
    %1260 = vmatprep.subr.bf16.mxu0 0
    %1261 = vmatpush1.bf16.msra.mxu0 0
    %1262 = vmatprep.subr.bf16.mxu0 0
    %1263 = vmatpush1.bf16.msra.mxu0 0
    %1264 = vmatprep.mubr.bf16.mxu0 0
    %1265 = vmatmul.mubr.bf16.gmra.mrb[0].mxu0 %v1230
    %v1266 = vpop.f32.mrb[0].mxu0
    %v1267 = vadd.f32 0.0, %v1266
    %v1268 = vpop.f32.mrb[0].mxu0
    %v1269 = vpop.f32.mrb[0].mxu0
    %v1270 = vadd.f32 0.0, %v1269
    %v1271 = vpop.f32.mrb[0].mxu0
    %1272 = vdwg.mxu0
    %1275 = vrot.lane.b32.xlu0 %v1025, 8
    %v1276 = vpop.permute.xlu0 %1275
    %1277 = vrot.lane.b32.xlu0 %v1028, 8
    %v1278 = vpop.permute.xlu0 %1277
    %1283 = vrot.lane.b32.xlu0 %v1146, 16
    %v1284 = vpop.permute.xlu0 %1283
    %1285 = vrot.lane.b32.xlu0 %v1149, 16
    %v1286 = vpop.permute.xlu0 %1285
    %1291 = vrot.lane.b32.xlu0 %v1267, 24
    %v1292 = vpop.permute.xlu0 %1291
    %1293 = vrot.lane.b32.xlu0 %v1270, 24
    %v1294 = vpop.permute.xlu0 %1293
    %v1297 = vsel %vm277, %v904, %v1276
    %v1298 = vsel %vm277, %v907, %v1278
    %v1299 = vsel %vm325, %v1297, %v1284
    %v1300 = vsel %vm325, %v1298, %v1286
    %v1301 = vsel %vm787, %v1299, %v1292
    %v1302 = vsel %vm787, %v1300, %v1294
    %v1303 = vpack.c.bf16 %v789, %v788
    %v1304 = vpack.c.bf16 %v1302, %v1301
    %1305 = vrot.lane.b32.xlu0 %v213, 32
    %v1306 = vpop.permute.xlu0 %1305
    %1307 = vrot.lane.b32.xlu0 %v214, 32
    %v1308 = vpop.permute.xlu0 %1307
    %1312 = vrot.lane.b32.xlu0 %v204, 32
    %v1313 = vpop.permute.xlu0 %1312
    %v1316 = vsel %vm125, %v1303, 0
    %v1319 = vsel %vm125, %v1304, 0
    %1321 = vmatprep.subr.bf16.mxu0 0
    %1322 = vmatpush1.bf16.msra.mxu0 %v1306
    %1323 = vmatprep.subr.bf16.mxu0 0
    %1324 = vmatpush1.bf16.msra.mxu0 %v1308
    %1325 = vmatprep.subr.bf16.mxu0 0
    %1326 = vmatpush1.bf16.msra.mxu0 0
    %1327 = vmatprep.subr.bf16.mxu0 0
    %1328 = vmatpush1.bf16.msra.mxu0 0
    %1329 = vmatprep.subr.bf16.mxu0 0
    %1330 = vmatpush1.bf16.msra.mxu0 0
    %1331 = vmatprep.subr.bf16.mxu0 0
    %1332 = vmatpush1.bf16.msra.mxu0 0
    %1333 = vmatprep.subr.bf16.mxu0 0
    %1334 = vmatpush1.bf16.msra.mxu0 0
    %1335 = vmatprep.subr.bf16.mxu0 0
    %1336 = vmatpush1.bf16.msra.mxu0 0
    %1337 = vmatprep.subr.bf16.mxu0 0
    %1338 = vmatpush1.bf16.msra.mxu0 0
    %1339 = vmatprep.subr.bf16.mxu0 0
    %1340 = vmatpush1.bf16.msra.mxu0 0
    %1341 = vmatprep.subr.bf16.mxu0 0
    %1342 = vmatpush1.bf16.msra.mxu0 0
    %1343 = vmatprep.subr.bf16.mxu0 0
    %1344 = vmatpush1.bf16.msra.mxu0 0
    %1345 = vmatprep.subr.bf16.mxu0 0
    %1346 = vmatpush1.bf16.msra.mxu0 0
    %1347 = vmatprep.subr.bf16.mxu0 0
    %1348 = vmatpush1.bf16.msra.mxu0 0
    %1349 = vmatprep.subr.bf16.mxu0 0
    %1350 = vmatpush1.bf16.msra.mxu0 0
    %1351 = vmatprep.subr.bf16.mxu0 0
    %1352 = vmatpush1.bf16.msra.mxu0 0
    %1353 = vmatprep.mubr.bf16.mxu0 0
    %1354 = vmatmul.mubr.bf16.gmra.mrb[0].mxu0 %v1316
    %v1355 = vpop.f32.mrb[0].mxu0
    %v1356 = vadd.f32 %v1313, %v1355
    %v1357 = vpop.f32.mrb[0].mxu0
    %v1358 = vpop.f32.mrb[0].mxu0
    %v1359 = vadd.f32 %v1313, %v1358
    %v1360 = vpop.f32.mrb[0].mxu0
    %1361 = vmatprep.mubr.bf16.mxu0 0
    %1362 = vmatmul.mubr.bf16.gmra.mrb[0].mxu0 %v1319
    %v1363 = vpop.f32.mrb[0].mxu0
    %v1364 = vadd.f32 %v1313, %v1363
    %v1365 = vpop.f32.mrb[0].mxu0
    %v1366 = vpop.f32.mrb[0].mxu0
    %v1367 = vadd.f32 %v1313, %v1366
    %v1368 = vpop.f32.mrb[0].mxu0
    %1369 = vdwg.mxu0
    %v1370 = vadd.f32 %v108, %v1356
    %v1371 = vadd.f32 %v111, %v1359
    %v1372 = vadd.f32 %v116, %v1364
    %v1373 = vadd.f32 %v119, %v1367
    %v1374 = vsel %vm125, %v1370, 0.0
    %1375 = vadd.xlane.f32.xlu0 %v1374
    %v1376 = vpop.xlane.xlu0 %1375
    %v1377 = vsel %vm125, %v1371, 0.0
    %1378 = vadd.xlane.f32.xlu0 %v1377
    %v1379 = vpop.xlane.xlu0 %1378
    %v1380 = vsel %vm125, %v1372, 0.0
    %1381 = vadd.xlane.f32.xlu0 %v1380
    %v1382 = vpop.xlane.xlu0 %1381
    %v1383 = vsel %vm125, %v1373, 0.0
    %1384 = vadd.xlane.f32.xlu0 %v1383
    %v1385 = vpop.xlane.xlu0 %1384
    %v1386 = vmul.f32 %v1376, %v138
    %v1387 = vmul.f32 %v1379, %v138
    %v1388 = vmul.f32 %v1382, %v138
    %v1389 = vmul.f32 %v1385, %v138
    %v1390 = vsub.f32 %v1370, %v1386
    %v1391 = vsub.f32 %v1371, %v1387
    %v1392 = vsub.f32 %v1372, %v1388
    %v1393 = vsub.f32 %v1373, %v1389
    %v1394 = vmul.f32 %v1390, %v1390
    %v1395 = vmul.f32 %v1391, %v1391
    %v1396 = vmul.f32 %v1392, %v1392
    %v1397 = vmul.f32 %v1393, %v1393
    %v1398 = vsel %vm125, %v1394, 0.0
    %1399 = vadd.xlane.f32.xlu0 %v1398
    %v1400 = vpop.xlane.xlu0 %1399
    %v1401 = vsel %vm125, %v1395, 0.0
    %1402 = vadd.xlane.f32.xlu0 %v1401
    %v1403 = vpop.xlane.xlu0 %1402
    %v1404 = vsel %vm125, %v1396, 0.0
    %1405 = vadd.xlane.f32.xlu0 %v1404
    %v1406 = vpop.xlane.xlu0 %1405
    %v1407 = vsel %vm125, %v1397, 0.0
    %1408 = vadd.xlane.f32.xlu0 %v1407
    %v1409 = vpop.xlane.xlu0 %1408
    %v1410 = vmul.f32 %v1400, %v138
    %v1411 = vmul.f32 %v1403, %v138
    %v1412 = vmul.f32 %v1406, %v138
    %v1413 = vmul.f32 %v1409, %v138
    %v1414 = vadd.f32 %v1410, 1e-06
    %v1415 = vadd.f32 %v1411, 1e-06
    %v1416 = vadd.f32 %v1412, 1e-06
    %v1417 = vadd.f32 %v1413, 1e-06
    %v1418 = vrsqrt.pop %v1414
    %v1419 = vrsqrt.pop %v1415
    %v1420 = vrsqrt.pop %v1416
    %v1421 = vrsqrt.pop %v1417
    %v1422 = vmul.f32 %v1390, %v1418
    %v1423 = vmul.f32 %v1391, %v1419
    %v1424 = vmul.f32 %v1392, %v1420
    %v1425 = vmul.f32 %v1393, %v1421
    %1426 = vrot.lane.b32.xlu0 %v182, 64
    %v1427 = vpop.permute.xlu0 %1426
    %v1429 = vmul.f32 %v1422, %v1427
    %v1430 = vmul.f32 %v1423, %v1427
    %v1431 = vmul.f32 %v1424, %v1427
    %v1432 = vmul.f32 %v1425, %v1427
    %1433 = vrot.lane.b32.xlu0 %v182, 32
    %v1434 = vpop.permute.xlu0 %1433
    %v1436 = vadd.f32 %v1429, %v1434
    %v1437 = vadd.f32 %v1430, %v1434
    %v1438 = vadd.f32 %v1431, %v1434
    %v1439 = vadd.f32 %v1432, %v1434
    %v1440 = vpack.c.bf16 %v1437, %v1436
    %v1441 = vpack.c.bf16 %v1439, %v1438
    %v1442 = vld [vmem:[%s1 + $0x30] sm:$0xf]
    %v1443 = vld [vmem:[%s1 + $0x34] sm:$0xf]
    %v1444 = vld [vmem:[%s1 + $0x38] sm:$0xf]
    %v1445 = vld [vmem:[%s1 + $0x3c] sm:$0xf]
    %v1446 = vlaneseq
    %v1447 = vshrl.u32 %v1446, 7
    %v1448 = vsub.s32 0, %v1447
    %v1449 = vrot.slane %v124, %v1448
    %v1454 = vunpack.c.l.b16 %v1442
    %v1455 = vunpack.c.l.b16 %v1443
    %v1456 = vunpack.c.l.b16 %v1444
    %v1457 = vunpack.c.l.b16 %v1445
    %v1458 = vpack.c.b16 %v1455, %v1454
    %v1459 = vpack.c.b16 %v1457, %v1456
    %v1463 = vsel %vm125, %v1440, 0
    %v1466 = vsel %vm125, %v1441, 0
    %1468 = vmatprep.subr.bf16.mxu0 0
    %1469 = vmatpush1.bf16.msra.mxu0 %v1458
    %1470 = vmatprep.subr.bf16.mxu0 0
    %1471 = vmatpush1.bf16.msra.mxu0 %v1459
    %1472 = vmatprep.subr.bf16.mxu0 0
    %1473 = vmatpush1.bf16.msra.mxu0 0
    %1474 = vmatprep.subr.bf16.mxu0 0
    %1475 = vmatpush1.bf16.msra.mxu0 0
    %1476 = vmatprep.subr.bf16.mxu0 0
    %1477 = vmatpush1.bf16.msra.mxu0 0
    %1478 = vmatprep.subr.bf16.mxu0 0
    %1479 = vmatpush1.bf16.msra.mxu0 0
    %1480 = vmatprep.subr.bf16.mxu0 0
    %1481 = vmatpush1.bf16.msra.mxu0 0
    %1482 = vmatprep.subr.bf16.mxu0 0
    %1483 = vmatpush1.bf16.msra.mxu0 0
    %1484 = vmatprep.subr.bf16.mxu0 0
    %1485 = vmatpush1.bf16.msra.mxu0 0
    %1486 = vmatprep.subr.bf16.mxu0 0
    %1487 = vmatpush1.bf16.msra.mxu0 0
    %1488 = vmatprep.subr.bf16.mxu0 0
    %1489 = vmatpush1.bf16.msra.mxu0 0
    %1490 = vmatprep.subr.bf16.mxu0 0
    %1491 = vmatpush1.bf16.msra.mxu0 0
    %1492 = vmatprep.subr.bf16.mxu0 0
    %1493 = vmatpush1.bf16.msra.mxu0 0
    %1494 = vmatprep.subr.bf16.mxu0 0
    %1495 = vmatpush1.bf16.msra.mxu0 0
    %1496 = vmatprep.subr.bf16.mxu0 0
    %1497 = vmatpush1.bf16.msra.mxu0 0
    %1498 = vmatprep.subr.bf16.mxu0 0
    %1499 = vmatpush1.bf16.msra.mxu0 0
    %1500 = vmatprep.mubr.bf16.mxu0 0
    %1501 = vmatmul.mubr.bf16.gmra.mrb[0].mxu0 %v1463
    %v1502 = vpop.f32.mrb[0].mxu0
    %v1503 = vadd.f32 %v1449, %v1502
    %v1504 = vpop.f32.mrb[0].mxu0
    %v1505 = vpop.f32.mrb[0].mxu0
    %v1506 = vadd.f32 %v1449, %v1505
    %v1507 = vpop.f32.mrb[0].mxu0
    %1508 = vmatprep.mubr.bf16.mxu0 0
    %1509 = vmatmul.mubr.bf16.gmra.mrb[0].mxu0 %v1466
    %v1510 = vpop.f32.mrb[0].mxu0
    %v1511 = vadd.f32 %v1449, %v1510
    %v1512 = vpop.f32.mrb[0].mxu0
    %v1513 = vpop.f32.mrb[0].mxu0
    %v1514 = vadd.f32 %v1449, %v1513
    %v1515 = vpop.f32.mrb[0].mxu0
    %1516 = vdwg.mxu0
    %v1517 = vmul.f32 %v1503, %v1503
    %v1518 = vmul.f32 %v1506, %v1506
    %v1519 = vmul.f32 %v1511, %v1511
    %v1520 = vmul.f32 %v1514, %v1514
    %v1521 = vmul.f32 %v1503, %v1517
    %v1522 = vmul.f32 %v1506, %v1518
    %v1523 = vmul.f32 %v1511, %v1519
    %v1524 = vmul.f32 %v1514, %v1520
    %v1525 = vmul.f32 %v1521, 0.044715
    %v1526 = vmul.f32 %v1522, 0.044715
    %v1527 = vmul.f32 %v1523, 0.044715
    %v1528 = vmul.f32 %v1524, 0.044715
    %v1529 = vadd.f32 %v1503, %v1525
    %v1530 = vadd.f32 %v1506, %v1526
    %v1531 = vadd.f32 %v1511, %v1527
    %v1532 = vadd.f32 %v1514, %v1528
    %v1533 = vmul.f32 %v1529, 0.7978846
    %v1534 = vmul.f32 %v1530, 0.7978846
    %v1535 = vmul.f32 %v1531, 0.7978846
    %v1536 = vmul.f32 %v1532, 0.7978846
    %v1537 = vtanh.pop %v1533
    %v1538 = vtanh.pop %v1534
    %v1539 = vtanh.pop %v1535
    %v1540 = vtanh.pop %v1536
    %v1541 = vadd.f32 %v1537, 1.0
    %v1542 = vadd.f32 %v1538, 1.0
    %v1543 = vadd.f32 %v1539, 1.0
    %v1544 = vadd.f32 %v1540, 1.0
    %v1545 = vmul.f32 %v1541, 0.5
    %v1546 = vmul.f32 %v1542, 0.5
    %v1547 = vmul.f32 %v1543, 0.5
    %v1548 = vmul.f32 %v1544, 0.5
    %v1549 = vmul.f32 %v1503, %v1545
    %v1550 = vmul.f32 %v1506, %v1546
    %v1551 = vmul.f32 %v1511, %v1547
    %v1552 = vmul.f32 %v1514, %v1548
    %v1553 = vpack.c.bf16 %v1550, %v1549
    %v1554 = vpack.c.bf16 %v1552, %v1551
    %v1555 = vld [vmem:[%s1 + $0x40] sm:$0xf]
    %v1556 = vld [vmem:[%s1 + $0x44] sm:$0xf]
    %v1557 = vld [vmem:[%s1 + $0x48] sm:$0xf]
    %v1558 = vld [vmem:[%s1 + $0x4c] sm:$0xf]
    %v1559 = vld [vmem:[%s1 + $0x50] sm:$0xf]
    %v1560 = vld [vmem:[%s1 + $0x54] sm:$0xf]
    %v1561 = vld [vmem:[%s1 + $0x58] sm:$0xf]
    %v1562 = vld [vmem:[%s1 + $0x5c] sm:$0xf]
    %v1571 = vunpack.c.l.b16 %v1555
    %v1572 = vunpack.c.l.b16 %v1556
    %v1573 = vunpack.c.l.b16 %v1557
    %v1574 = vunpack.c.l.b16 %v1558
    %v1575 = vunpack.c.l.b16 %v1559
    %v1576 = vunpack.c.l.b16 %v1560
    %v1577 = vunpack.c.l.b16 %v1561
    %v1578 = vunpack.c.l.b16 %v1562
    %v1579 = vpack.c.b16 %v1572, %v1571
    %v1580 = vpack.c.b16 %v1574, %v1573
    %v1581 = vpack.c.b16 %v1576, %v1575
    %v1582 = vpack.c.b16 %v1578, %v1577
    %1588 = vrot.lane.b32.xlu0 %v1449, 64
    %v1589 = vpop.permute.xlu0 %1588
    %v1592 = vsel %vm66, %v1553, 0
    %v1595 = vsel %vm66, %v1554, 0
    %1597 = vmatprep.subr.bf16.mxu0 0
    %1598 = vmatpush1.bf16.msra.mxu0 %v1579
    %1599 = vmatprep.subr.bf16.mxu0 0
    %1600 = vmatpush1.bf16.msra.mxu0 %v1580
    %1601 = vmatprep.subr.bf16.mxu0 0
    %1602 = vmatpush1.bf16.msra.mxu0 %v1581
    %1603 = vmatprep.subr.bf16.mxu0 0
    %1604 = vmatpush1.bf16.msra.mxu0 %v1582
    %1605 = vmatprep.subr.bf16.mxu0 0
    %1606 = vmatpush1.bf16.msra.mxu0 0
    %1607 = vmatprep.subr.bf16.mxu0 0
    %1608 = vmatpush1.bf16.msra.mxu0 0
    %1609 = vmatprep.subr.bf16.mxu0 0
    %1610 = vmatpush1.bf16.msra.mxu0 0
    %1611 = vmatprep.subr.bf16.mxu0 0
    %1612 = vmatpush1.bf16.msra.mxu0 0
    %1613 = vmatprep.subr.bf16.mxu0 0
    %1614 = vmatpush1.bf16.msra.mxu0 0
    %1615 = vmatprep.subr.bf16.mxu0 0
    %1616 = vmatpush1.bf16.msra.mxu0 0
    %1617 = vmatprep.subr.bf16.mxu0 0
    %1618 = vmatpush1.bf16.msra.mxu0 0
    %1619 = vmatprep.subr.bf16.mxu0 0
    %1620 = vmatpush1.bf16.msra.mxu0 0
    %1621 = vmatprep.subr.bf16.mxu0 0
    %1622 = vmatpush1.bf16.msra.mxu0 0
    %1623 = vmatprep.subr.bf16.mxu0 0
    %1624 = vmatpush1.bf16.msra.mxu0 0
    %1625 = vmatprep.subr.bf16.mxu0 0
    %1626 = vmatpush1.bf16.msra.mxu0 0
    %1627 = vmatprep.subr.bf16.mxu0 0
    %1628 = vmatpush1.bf16.msra.mxu0 0
    %1629 = vmatprep.mubr.bf16.mxu0 0
    %1630 = vmatmul.mubr.bf16.gmra.mrb[0].mxu0 %v1592
    %v1631 = vpop.f32.mrb[0].mxu0
    %v1632 = vadd.f32 %v1589, %v1631
    %v1633 = vpop.f32.mrb[0].mxu0
    %v1634 = vpop.f32.mrb[0].mxu0
    %v1635 = vadd.f32 %v1589, %v1634
    %v1636 = vpop.f32.mrb[0].mxu0
    %1637 = vmatprep.mubr.bf16.mxu0 0
    %1638 = vmatmul.mubr.bf16.gmra.mrb[0].mxu0 %v1595
    %v1639 = vpop.f32.mrb[0].mxu0
    %v1640 = vadd.f32 %v1589, %v1639
    %v1641 = vpop.f32.mrb[0].mxu0
    %v1642 = vpop.f32.mrb[0].mxu0
    %v1643 = vadd.f32 %v1589, %v1642
    %v1644 = vpop.f32.mrb[0].mxu0
    %1645 = vdwg.mxu0
    %v1646 = vadd.f32 %v1370, %v1632
    %v1647 = vadd.f32 %v1371, %v1635
    %v1648 = vadd.f32 %v1372, %v1640
    %v1649 = vadd.f32 %v1373, %v1643
    %v1650 = vld [vmem:[%s2 + $0x28] sm:$0x1]
    %v1651 = vld [vmem:[%s2 + $0x29] sm:$0x1]
    %v1652 = vld [vmem:[%s2 + $0x2a] sm:$0x1]
    %v1653 = vsel %vm125, %v1646, 0.0
    %1654 = vadd.xlane.f32.xlu0 %v1653
    %v1655 = vpop.xlane.xlu0 %1654
    %v1656 = vsel %vm125, %v1647, 0.0
    %1657 = vadd.xlane.f32.xlu0 %v1656
    %v1658 = vpop.xlane.xlu0 %1657
    %v1659 = vsel %vm125, %v1648, 0.0
    %1660 = vadd.xlane.f32.xlu0 %v1659
    %v1661 = vpop.xlane.xlu0 %1660
    %v1662 = vsel %vm125, %v1649, 0.0
    %1663 = vadd.xlane.f32.xlu0 %v1662
    %v1664 = vpop.xlane.xlu0 %1663
    %v1665 = vmul.f32 %v1655, %v138
    %v1666 = vmul.f32 %v1658, %v138
    %v1667 = vmul.f32 %v1661, %v138
    %v1668 = vmul.f32 %v1664, %v138
    %v1669 = vsub.f32 %v1646, %v1665
    %v1670 = vsub.f32 %v1647, %v1666
    %v1671 = vsub.f32 %v1648, %v1667
    %v1672 = vsub.f32 %v1649, %v1668
    %v1673 = vmul.f32 %v1669, %v1669
    %v1674 = vmul.f32 %v1670, %v1670
    %v1675 = vmul.f32 %v1671, %v1671
    %v1676 = vmul.f32 %v1672, %v1672
    %v1677 = vsel %vm125, %v1673, 0.0
    %1678 = vadd.xlane.f32.xlu0 %v1677
    %v1679 = vpop.xlane.xlu0 %1678
    %v1680 = vsel %vm125, %v1674, 0.0
    %1681 = vadd.xlane.f32.xlu0 %v1680
    %v1682 = vpop.xlane.xlu0 %1681
    %v1683 = vsel %vm125, %v1675, 0.0
    %1684 = vadd.xlane.f32.xlu0 %v1683
    %v1685 = vpop.xlane.xlu0 %1684
    %v1686 = vsel %vm125, %v1676, 0.0
    %1687 = vadd.xlane.f32.xlu0 %v1686
    %v1688 = vpop.xlane.xlu0 %1687
    %v1689 = vmul.f32 %v1679, %v138
    %v1690 = vmul.f32 %v1682, %v138
    %v1691 = vmul.f32 %v1685, %v138
    %v1692 = vmul.f32 %v1688, %v138
    %v1693 = vadd.f32 %v1689, 1e-06
    %v1694 = vadd.f32 %v1690, 1e-06
    %v1695 = vadd.f32 %v1691, 1e-06
    %v1696 = vadd.f32 %v1692, 1e-06
    %v1697 = vrsqrt.pop %v1693
    %v1698 = vrsqrt.pop %v1694
    %v1699 = vrsqrt.pop %v1695
    %v1700 = vrsqrt.pop %v1696
    %v1701 = vmul.f32 %v1669, %v1697
    %v1702 = vmul.f32 %v1670, %v1698
    %v1703 = vmul.f32 %v1671, %v1699
    %v1704 = vmul.f32 %v1672, %v1700
    %v1705 = vlaneseq
    %v1706 = vshrl.u32 %v1705, 7
    %v1707 = vsub.s32 0, %v1706
    %v1708 = vrot.slane %v1650, %v1707
    %v1709 = vmul.f32 %v1701, %v1708
    %v1710 = vmul.f32 %v1702, %v1708
    %v1711 = vmul.f32 %v1703, %v1708
    %v1712 = vmul.f32 %v1704, %v1708
    %1714 = vrot.lane.b32.xlu0 %v1708, 96
    %v1715 = vpop.permute.xlu0 %1714
    %v1717 = vadd.f32 %v1709, %v1715
    %v1718 = vadd.f32 %v1710, %v1715
    %v1719 = vadd.f32 %v1711, %v1715
    %v1720 = vadd.f32 %v1712, %v1715
    %v1721 = vpack.c.bf16 %v1718, %v1717
    %v1722 = vpack.c.bf16 %v1720, %v1719
    %v1723 = vld [vmem:[%s1 + $0x60] sm:$0xf]
    %v1724 = vld [vmem:[%s1 + $0x64] sm:$0xf]
    %v1725 = vld [vmem:[%s1 + $0x68] sm:$0xf]
    %v1726 = vld [vmem:[%s1 + $0x6c] sm:$0xf]
    %v1727 = vlaneseq
    %v1728 = vshrl.u32 %v1727, 7
    %v1729 = vsub.s32 0, %v1728
    %v1730 = vrot.slane %v1651, %v1729
    %v1735 = vunpack.c.l.b16 %v1723
    %v1736 = vunpack.c.l.b16 %v1724
    %v1737 = vunpack.c.l.b16 %v1725
    %v1738 = vunpack.c.l.b16 %v1726
    %v1739 = vpack.c.b16 %v1736, %v1735
    %v1740 = vpack.c.b16 %v1738, %v1737
    %v1744 = vsel %vm125, %v1721, 0
    %v1747 = vsel %vm125, %v1722, 0
    %1749 = vmatprep.subr.bf16.mxu0 0
    %1750 = vmatpush1.bf16.msra.mxu0 %v1739
    %1751 = vmatprep.subr.bf16.mxu0 0
    %1752 = vmatpush1.bf16.msra.mxu0 %v1740
    %1753 = vmatprep.subr.bf16.mxu0 0
    %1754 = vmatpush1.bf16.msra.mxu0 0
    %1755 = vmatprep.subr.bf16.mxu0 0
    %1756 = vmatpush1.bf16.msra.mxu0 0
    %1757 = vmatprep.subr.bf16.mxu0 0
    %1758 = vmatpush1.bf16.msra.mxu0 0
    %1759 = vmatprep.subr.bf16.mxu0 0
    %1760 = vmatpush1.bf16.msra.mxu0 0
    %1761 = vmatprep.subr.bf16.mxu0 0
    %1762 = vmatpush1.bf16.msra.mxu0 0
    %1763 = vmatprep.subr.bf16.mxu0 0
    %1764 = vmatpush1.bf16.msra.mxu0 0
    %1765 = vmatprep.subr.bf16.mxu0 0
    %1766 = vmatpush1.bf16.msra.mxu0 0
    %1767 = vmatprep.subr.bf16.mxu0 0
    %1768 = vmatpush1.bf16.msra.mxu0 0
    %1769 = vmatprep.subr.bf16.mxu0 0
    %1770 = vmatpush1.bf16.msra.mxu0 0
    %1771 = vmatprep.subr.bf16.mxu0 0
    %1772 = vmatpush1.bf16.msra.mxu0 0
    %1773 = vmatprep.subr.bf16.mxu0 0
    %1774 = vmatpush1.bf16.msra.mxu0 0
    %1775 = vmatprep.subr.bf16.mxu0 0
    %1776 = vmatpush1.bf16.msra.mxu0 0
    %1777 = vmatprep.subr.bf16.mxu0 0
    %1778 = vmatpush1.bf16.msra.mxu0 0
    %1779 = vmatprep.subr.bf16.mxu0 0
    %1780 = vmatpush1.bf16.msra.mxu0 0
    %1781 = vmatprep.mubr.bf16.mxu0 0
    %1782 = vmatmul.mubr.bf16.gmra.mrb[0].mxu0 %v1744
    %v1783 = vpop.f32.mrb[0].mxu0
    %v1784 = vadd.f32 %v1730, %v1783
    %v1785 = vpop.f32.mrb[0].mxu0
    %v1786 = vpop.f32.mrb[0].mxu0
    %v1787 = vadd.f32 %v1730, %v1786
    %v1788 = vpop.f32.mrb[0].mxu0
    %1789 = vmatprep.mubr.bf16.mxu0 0
    %1790 = vmatmul.mubr.bf16.gmra.mrb[0].mxu0 %v1747
    %v1791 = vpop.f32.mrb[0].mxu0
    %v1792 = vadd.f32 %v1730, %v1791
    %v1793 = vpop.f32.mrb[0].mxu0
    %v1794 = vpop.f32.mrb[0].mxu0
    %v1795 = vadd.f32 %v1730, %v1794
    %v1796 = vpop.f32.mrb[0].mxu0
    %1797 = vdwg.mxu0
    %v1798 = vpack.c.bf16 %v1787, %v1784
    %v1799 = vpack.c.bf16 %v1795, %v1792
    %1801 = vrot.lane.b32.xlu0 %v1798, 96
    %v1802 = vpop.permute.xlu0 %1801
    %v1804 = vsel %vm277, %v1798, 0
    %v1807 = vsel %vm277, %v1802, 0
    %1809 = vmatprep.subr.bf16.mxu0 0
    %1810 = vmatpush1.bf16.xpose.msra.mxu0 %v1807
    %1811 = vmatprep.subr.bf16.mxu0 0
    %1812 = vmatpush1.bf16.xpose.msra.mxu0 0
    %1813 = vmatprep.subr.bf16.mxu0 0
    %1814 = vmatpush1.bf16.xpose.msra.mxu0 0
    %1815 = vmatprep.subr.bf16.mxu0 0
    %1816 = vmatpush1.bf16.xpose.msra.mxu0 0
    %1817 = vmatprep.subr.bf16.mxu0 0
    %1818 = vmatpush1.bf16.xpose.msra.mxu0 0
    %1819 = vmatprep.subr.bf16.mxu0 0
    %1820 = vmatpush1.bf16.xpose.msra.mxu0 0
    %1821 = vmatprep.subr.bf16.mxu0 0
    %1822 = vmatpush1.bf16.xpose.msra.mxu0 0
    %1823 = vmatprep.subr.bf16.mxu0 0
    %1824 = vmatpush1.bf16.xpose.msra.mxu0 0
    %1825 = vmatprep.subr.bf16.mxu0 0
    %1826 = vmatpush1.bf16.xpose.msra.mxu0 0
    %1827 = vmatprep.subr.bf16.mxu0 0
    %1828 = vmatpush1.bf16.xpose.msra.mxu0 0
    %1829 = vmatprep.subr.bf16.mxu0 0
    %1830 = vmatpush1.bf16.xpose.msra.mxu0 0
    %1831 = vmatprep.subr.bf16.mxu0 0
    %1832 = vmatpush1.bf16.xpose.msra.mxu0 0
    %1833 = vmatprep.subr.bf16.mxu0 0
    %1834 = vmatpush1.bf16.xpose.msra.mxu0 0
    %1835 = vmatprep.subr.bf16.mxu0 0
    %1836 = vmatpush1.bf16.xpose.msra.mxu0 0
    %1837 = vmatprep.subr.bf16.mxu0 0
    %1838 = vmatpush1.bf16.xpose.msra.mxu0 0
    %1839 = vmatprep.subr.bf16.mxu0 0
    %1840 = vmatpush1.bf16.xpose.msra.mxu0 0
    %1841 = vmatprep.mubr.bf16.mxu0 0
    %1842 = vmatmul.mubr.bf16.gmra.mrb[0].mxu0 %v1804
    %v1843 = vpop.f32.mrb[0].mxu0
    %v1844 = vadd.f32 0.0, %v1843
    %v1845 = vpop.f32.mrb[0].mxu0
    %v1846 = vpop.f32.mrb[0].mxu0
    %v1847 = vadd.f32 0.0, %v1846
    %v1848 = vpop.f32.mrb[0].mxu0
    %1849 = vdwg.mxu0
    %v1850 = vsel %vm325, %v1844, -inf
    %1851 = vmax.xlane.f32.xlu0 %v1850
    %v1852 = vpop.xlane.xlu0 %1851
    %v1853 = vsel %vm325, %v1847, -inf
    %1854 = vmax.xlane.f32.xlu0 %v1853
    %v1855 = vpop.xlane.xlu0 %1854
    %v1856 = vsub.f32 %v1844, %v1852
    %v1857 = vsub.f32 %v1847, %v1855
    %v1858 = vmul.f32 %v1856, 1.442695
    %v1859 = vpow.pop %v1858
    %v1860 = vmul.f32 %v1857, 1.442695
    %v1861 = vpow.pop %v1860
    %v1862 = vsel %vm325, %v1859, 0.0
    %1863 = vadd.xlane.f32.xlu0 %v1862
    %v1864 = vpop.xlane.xlu0 %1863
    %v1865 = vsel %vm325, %v1861, 0.0
    %1866 = vadd.xlane.f32.xlu0 %v1865
    %v1867 = vpop.xlane.xlu0 %1866
    %v1868 = vrcp.pop %v1864
    %v1869 = vrcp.pop %v1867
    %v1870 = vmul.f32 %v1859, %v1868
    %v1871 = vmul.f32 %v1861, %v1869
    %v1872 = vpack.c.bf16 %v1871, %v1870
    %1873 = vrot.lane.b32.xlu0 %v1798, 64
    %v1874 = vpop.permute.xlu0 %1873
    %v1877 = vsel %vm325, %v1872, 0
    %1879 = vmatprep.subr.bf16.mxu0 0
    %1880 = vmatpush1.bf16.msra.mxu0 %v1874
    %1881 = vmatprep.subr.bf16.mxu0 0
    %1882 = vmatpush1.bf16.msra.mxu0 0
    %1883 = vmatprep.subr.bf16.mxu0 0
    %1884 = vmatpush1.bf16.msra.mxu0 0
    %1885 = vmatprep.subr.bf16.mxu0 0
    %1886 = vmatpush1.bf16.msra.mxu0 0
    %1887 = vmatprep.subr.bf16.mxu0 0
    %1888 = vmatpush1.bf16.msra.mxu0 0
    %1889 = vmatprep.subr.bf16.mxu0 0
    %1890 = vmatpush1.bf16.msra.mxu0 0
    %1891 = vmatprep.subr.bf16.mxu0 0
    %1892 = vmatpush1.bf16.msra.mxu0 0
    %1893 = vmatprep.subr.bf16.mxu0 0
    %1894 = vmatpush1.bf16.msra.mxu0 0
    %1895 = vmatprep.subr.bf16.mxu0 0
    %1896 = vmatpush1.bf16.msra.mxu0 0
    %1897 = vmatprep.subr.bf16.mxu0 0
    %1898 = vmatpush1.bf16.msra.mxu0 0
    %1899 = vmatprep.subr.bf16.mxu0 0
    %1900 = vmatpush1.bf16.msra.mxu0 0
    %1901 = vmatprep.subr.bf16.mxu0 0
    %1902 = vmatpush1.bf16.msra.mxu0 0
    %1903 = vmatprep.subr.bf16.mxu0 0
    %1904 = vmatpush1.bf16.msra.mxu0 0
    %1905 = vmatprep.subr.bf16.mxu0 0
    %1906 = vmatpush1.bf16.msra.mxu0 0
    %1907 = vmatprep.subr.bf16.mxu0 0
    %1908 = vmatpush1.bf16.msra.mxu0 0
    %1909 = vmatprep.subr.bf16.mxu0 0
    %1910 = vmatpush1.bf16.msra.mxu0 0
    %1911 = vmatprep.mubr.bf16.mxu0 0
    %1912 = vmatmul.mubr.bf16.gmra.mrb[0].mxu0 %v1877
    %v1913 = vpop.f32.mrb[0].mxu0
    %v1914 = vadd.f32 0.0, %v1913
    %v1915 = vpop.f32.mrb[0].mxu0
    %v1916 = vpop.f32.mrb[0].mxu0
    %v1917 = vadd.f32 0.0, %v1916
    %v1918 = vpop.f32.mrb[0].mxu0
    %1919 = vdwg.mxu0
    %1920 = vrot.lane.b32.xlu0 %v1798, 120
    %v1921 = vpop.permute.xlu0 %1920
    %1922 = vrot.lane.b32.xlu0 %v1798, 88
    %v1923 = vpop.permute.xlu0 %1922
    %v1925 = vsel %vm277, %v1921, 0
    %v1928 = vsel %vm277, %v1923, 0
    %1930 = vmatprep.subr.bf16.mxu0 0
    %1931 = vmatpush1.bf16.xpose.msra.mxu0 %v1928
    %1932 = vmatprep.subr.bf16.mxu0 0
    %1933 = vmatpush1.bf16.xpose.msra.mxu0 0
    %1934 = vmatprep.subr.bf16.mxu0 0
    %1935 = vmatpush1.bf16.xpose.msra.mxu0 0
    %1936 = vmatprep.subr.bf16.mxu0 0
    %1937 = vmatpush1.bf16.xpose.msra.mxu0 0
    %1938 = vmatprep.subr.bf16.mxu0 0
    %1939 = vmatpush1.bf16.xpose.msra.mxu0 0
    %1940 = vmatprep.subr.bf16.mxu0 0
    %1941 = vmatpush1.bf16.xpose.msra.mxu0 0
    %1942 = vmatprep.subr.bf16.mxu0 0
    %1943 = vmatpush1.bf16.xpose.msra.mxu0 0
    %1944 = vmatprep.subr.bf16.mxu0 0
    %1945 = vmatpush1.bf16.xpose.msra.mxu0 0
    %1946 = vmatprep.subr.bf16.mxu0 0
    %1947 = vmatpush1.bf16.xpose.msra.mxu0 0
    %1948 = vmatprep.subr.bf16.mxu0 0
    %1949 = vmatpush1.bf16.xpose.msra.mxu0 0
    %1950 = vmatprep.subr.bf16.mxu0 0
    %1951 = vmatpush1.bf16.xpose.msra.mxu0 0
    %1952 = vmatprep.subr.bf16.mxu0 0
    %1953 = vmatpush1.bf16.xpose.msra.mxu0 0
    %1954 = vmatprep.subr.bf16.mxu0 0
    %1955 = vmatpush1.bf16.xpose.msra.mxu0 0
    %1956 = vmatprep.subr.bf16.mxu0 0
    %1957 = vmatpush1.bf16.xpose.msra.mxu0 0
    %1958 = vmatprep.subr.bf16.mxu0 0
    %1959 = vmatpush1.bf16.xpose.msra.mxu0 0
    %1960 = vmatprep.subr.bf16.mxu0 0
    %1961 = vmatpush1.bf16.xpose.msra.mxu0 0
    %1962 = vmatprep.mubr.bf16.mxu0 0
    %1963 = vmatmul.mubr.bf16.gmra.mrb[0].mxu0 %v1925
    %v1964 = vpop.f32.mrb[0].mxu0
    %v1965 = vadd.f32 0.0, %v1964
    %v1966 = vpop.f32.mrb[0].mxu0
    %v1967 = vpop.f32.mrb[0].mxu0
    %v1968 = vadd.f32 0.0, %v1967
    %v1969 = vpop.f32.mrb[0].mxu0
    %1970 = vdwg.mxu0
    %v1971 = vsel %vm325, %v1965, -inf
    %1972 = vmax.xlane.f32.xlu0 %v1971
    %v1973 = vpop.xlane.xlu0 %1972
    %v1974 = vsel %vm325, %v1968, -inf
    %1975 = vmax.xlane.f32.xlu0 %v1974
    %v1976 = vpop.xlane.xlu0 %1975
    %v1977 = vsub.f32 %v1965, %v1973
    %v1978 = vsub.f32 %v1968, %v1976
    %v1979 = vmul.f32 %v1977, 1.442695
    %v1980 = vpow.pop %v1979
    %v1981 = vmul.f32 %v1978, 1.442695
    %v1982 = vpow.pop %v1981
    %v1983 = vsel %vm325, %v1980, 0.0
    %1984 = vadd.xlane.f32.xlu0 %v1983
    %v1985 = vpop.xlane.xlu0 %1984
    %v1986 = vsel %vm325, %v1982, 0.0
    %1987 = vadd.xlane.f32.xlu0 %v1986
    %v1988 = vpop.xlane.xlu0 %1987
    %v1989 = vrcp.pop %v1985
    %v1990 = vrcp.pop %v1988
    %v1991 = vmul.f32 %v1980, %v1989
    %v1992 = vmul.f32 %v1982, %v1990
    %v1993 = vpack.c.bf16 %v1992, %v1991
    %1994 = vrot.lane.b32.xlu0 %v1798, 56
    %v1995 = vpop.permute.xlu0 %1994
    %v1998 = vsel %vm325, %v1993, 0
    %2000 = vmatprep.subr.bf16.mxu0 0
    %2001 = vmatpush1.bf16.msra.mxu0 %v1995
    %2002 = vmatprep.subr.bf16.mxu0 0
    %2003 = vmatpush1.bf16.msra.mxu0 0
    %2004 = vmatprep.subr.bf16.mxu0 0
    %2005 = vmatpush1.bf16.msra.mxu0 0
    %2006 = vmatprep.subr.bf16.mxu0 0
    %2007 = vmatpush1.bf16.msra.mxu0 0
    %2008 = vmatprep.subr.bf16.mxu0 0
    %2009 = vmatpush1.bf16.msra.mxu0 0
    %2010 = vmatprep.subr.bf16.mxu0 0
    %2011 = vmatpush1.bf16.msra.mxu0 0
    %2012 = vmatprep.subr.bf16.mxu0 0
    %2013 = vmatpush1.bf16.msra.mxu0 0
    %2014 = vmatprep.subr.bf16.mxu0 0
    %2015 = vmatpush1.bf16.msra.mxu0 0
    %2016 = vmatprep.subr.bf16.mxu0 0
    %2017 = vmatpush1.bf16.msra.mxu0 0
    %2018 = vmatprep.subr.bf16.mxu0 0
    %2019 = vmatpush1.bf16.msra.mxu0 0
    %2020 = vmatprep.subr.bf16.mxu0 0
    %2021 = vmatpush1.bf16.msra.mxu0 0
    %2022 = vmatprep.subr.bf16.mxu0 0
    %2023 = vmatpush1.bf16.msra.mxu0 0
    %2024 = vmatprep.subr.bf16.mxu0 0
    %2025 = vmatpush1.bf16.msra.mxu0 0
    %2026 = vmatprep.subr.bf16.mxu0 0
    %2027 = vmatpush1.bf16.msra.mxu0 0
    %2028 = vmatprep.subr.bf16.mxu0 0
    %2029 = vmatpush1.bf16.msra.mxu0 0
    %2030 = vmatprep.subr.bf16.mxu0 0
    %2031 = vmatpush1.bf16.msra.mxu0 0
    %2032 = vmatprep.mubr.bf16.mxu0 0
    %2033 = vmatmul.mubr.bf16.gmra.mrb[0].mxu0 %v1998
    %v2034 = vpop.f32.mrb[0].mxu0
    %v2035 = vadd.f32 0.0, %v2034
    %v2036 = vpop.f32.mrb[0].mxu0
    %v2037 = vpop.f32.mrb[0].mxu0
    %v2038 = vadd.f32 0.0, %v2037
    %v2039 = vpop.f32.mrb[0].mxu0
    %2040 = vdwg.mxu0
    %2041 = vrot.lane.b32.xlu0 %v1798, 112
    %v2042 = vpop.permute.xlu0 %2041
    %2043 = vrot.lane.b32.xlu0 %v1798, 80
    %v2044 = vpop.permute.xlu0 %2043
    %v2046 = vsel %vm277, %v2042, 0
    %v2049 = vsel %vm277, %v2044, 0
    %2051 = vmatprep.subr.bf16.mxu0 0
    %2052 = vmatpush1.bf16.xpose.msra.mxu0 %v2049
    %2053 = vmatprep.subr.bf16.mxu0 0
    %2054 = vmatpush1.bf16.xpose.msra.mxu0 0
    %2055 = vmatprep.subr.bf16.mxu0 0
    %2056 = vmatpush1.bf16.xpose.msra.mxu0 0
    %2057 = vmatprep.subr.bf16.mxu0 0
    %2058 = vmatpush1.bf16.xpose.msra.mxu0 0
    %2059 = vmatprep.subr.bf16.mxu0 0
    %2060 = vmatpush1.bf16.xpose.msra.mxu0 0
    %2061 = vmatprep.subr.bf16.mxu0 0
    %2062 = vmatpush1.bf16.xpose.msra.mxu0 0
    %2063 = vmatprep.subr.bf16.mxu0 0
    %2064 = vmatpush1.bf16.xpose.msra.mxu0 0
    %2065 = vmatprep.subr.bf16.mxu0 0
    %2066 = vmatpush1.bf16.xpose.msra.mxu0 0
    %2067 = vmatprep.subr.bf16.mxu0 0
    %2068 = vmatpush1.bf16.xpose.msra.mxu0 0
    %2069 = vmatprep.subr.bf16.mxu0 0
    %2070 = vmatpush1.bf16.xpose.msra.mxu0 0
    %2071 = vmatprep.subr.bf16.mxu0 0
    %2072 = vmatpush1.bf16.xpose.msra.mxu0 0
    %2073 = vmatprep.subr.bf16.mxu0 0
    %2074 = vmatpush1.bf16.xpose.msra.mxu0 0
    %2075 = vmatprep.subr.bf16.mxu0 0
    %2076 = vmatpush1.bf16.xpose.msra.mxu0 0
    %2077 = vmatprep.subr.bf16.mxu0 0
    %2078 = vmatpush1.bf16.xpose.msra.mxu0 0
    %2079 = vmatprep.subr.bf16.mxu0 0
    %2080 = vmatpush1.bf16.xpose.msra.mxu0 0
    %2081 = vmatprep.subr.bf16.mxu0 0
    %2082 = vmatpush1.bf16.xpose.msra.mxu0 0
    %2083 = vmatprep.mubr.bf16.mxu0 0
    %2084 = vmatmul.mubr.bf16.gmra.mrb[0].mxu0 %v2046
    %v2085 = vpop.f32.mrb[0].mxu0
    %v2086 = vadd.f32 0.0, %v2085
    %v2087 = vpop.f32.mrb[0].mxu0
    %v2088 = vpop.f32.mrb[0].mxu0
    %v2089 = vadd.f32 0.0, %v2088
    %v2090 = vpop.f32.mrb[0].mxu0
    %2091 = vdwg.mxu0
    %v2092 = vsel %vm325, %v2086, -inf
    %2093 = vmax.xlane.f32.xlu0 %v2092
    %v2094 = vpop.xlane.xlu0 %2093
    %v2095 = vsel %vm325, %v2089, -inf
    %2096 = vmax.xlane.f32.xlu0 %v2095
    %v2097 = vpop.xlane.xlu0 %2096
    %v2098 = vsub.f32 %v2086, %v2094
    %v2099 = vsub.f32 %v2089, %v2097
    %v2100 = vmul.f32 %v2098, 1.442695
    %v2101 = vpow.pop %v2100
    %v2102 = vmul.f32 %v2099, 1.442695
    %v2103 = vpow.pop %v2102
    %v2104 = vsel %vm325, %v2101, 0.0
    %2105 = vadd.xlane.f32.xlu0 %v2104
    %v2106 = vpop.xlane.xlu0 %2105
    %v2107 = vsel %vm325, %v2103, 0.0
    %2108 = vadd.xlane.f32.xlu0 %v2107
    %v2109 = vpop.xlane.xlu0 %2108
    %v2110 = vrcp.pop %v2106
    %v2111 = vrcp.pop %v2109
    %v2112 = vmul.f32 %v2101, %v2110
    %v2113 = vmul.f32 %v2103, %v2111
    %v2114 = vpack.c.bf16 %v2113, %v2112
    %2115 = vrot.lane.b32.xlu0 %v1798, 48
    %v2116 = vpop.permute.xlu0 %2115
    %v2119 = vsel %vm325, %v2114, 0
    %2121 = vmatprep.subr.bf16.mxu0 0
    %2122 = vmatpush1.bf16.msra.mxu0 %v2116
    %2123 = vmatprep.subr.bf16.mxu0 0
    %2124 = vmatpush1.bf16.msra.mxu0 0
    %2125 = vmatprep.subr.bf16.mxu0 0
    %2126 = vmatpush1.bf16.msra.mxu0 0
    %2127 = vmatprep.subr.bf16.mxu0 0
    %2128 = vmatpush1.bf16.msra.mxu0 0
    %2129 = vmatprep.subr.bf16.mxu0 0
    %2130 = vmatpush1.bf16.msra.mxu0 0
    %2131 = vmatprep.subr.bf16.mxu0 0
    %2132 = vmatpush1.bf16.msra.mxu0 0
    %2133 = vmatprep.subr.bf16.mxu0 0
    %2134 = vmatpush1.bf16.msra.mxu0 0
    %2135 = vmatprep.subr.bf16.mxu0 0
    %2136 = vmatpush1.bf16.msra.mxu0 0
    %2137 = vmatprep.subr.bf16.mxu0 0
    %2138 = vmatpush1.bf16.msra.mxu0 0
    %2139 = vmatprep.subr.bf16.mxu0 0
    %2140 = vmatpush1.bf16.msra.mxu0 0
    %2141 = vmatprep.subr.bf16.mxu0 0
    %2142 = vmatpush1.bf16.msra.mxu0 0
    %2143 = vmatprep.subr.bf16.mxu0 0
    %2144 = vmatpush1.bf16.msra.mxu0 0
    %2145 = vmatprep.subr.bf16.mxu0 0
    %2146 = vmatpush1.bf16.msra.mxu0 0
    %2147 = vmatprep.subr.bf16.mxu0 0
    %2148 = vmatpush1.bf16.msra.mxu0 0
    %2149 = vmatprep.subr.bf16.mxu0 0
    %2150 = vmatpush1.bf16.msra.mxu0 0
    %2151 = vmatprep.subr.bf16.mxu0 0
    %2152 = vmatpush1.bf16.msra.mxu0 0
    %2153 = vmatprep.mubr.bf16.mxu0 0
    %2154 = vmatmul.mubr.bf16.gmra.mrb[0].mxu0 %v2119
    %v2155 = vpop.f32.mrb[0].mxu0
    %v2156 = vadd.f32 0.0, %v2155
    %v2157 = vpop.f32.mrb[0].mxu0
    %v2158 = vpop.f32.mrb[0].mxu0
    %v2159 = vadd.f32 0.0, %v2158
    %v2160 = vpop.f32.mrb[0].mxu0
    %2161 = vdwg.mxu0
    %2162 = vrot.lane.b32.xlu0 %v1798, 104
    %v2163 = vpop.permute.xlu0 %2162
    %2164 = vrot.lane.b32.xlu0 %v1798, 72
    %v2165 = vpop.permute.xlu0 %2164
    %v2167 = vsel %vm277, %v2163, 0
    %v2170 = vsel %vm277, %v2165, 0
    %2172 = vmatprep.subr.bf16.mxu0 0
    %2173 = vmatpush1.bf16.xpose.msra.mxu0 %v2170
    %2174 = vmatprep.subr.bf16.mxu0 0
    %2175 = vmatpush1.bf16.xpose.msra.mxu0 0
    %2176 = vmatprep.subr.bf16.mxu0 0
    %2177 = vmatpush1.bf16.xpose.msra.mxu0 0
    %2178 = vmatprep.subr.bf16.mxu0 0
    %2179 = vmatpush1.bf16.xpose.msra.mxu0 0
    %2180 = vmatprep.subr.bf16.mxu0 0
    %2181 = vmatpush1.bf16.xpose.msra.mxu0 0
    %2182 = vmatprep.subr.bf16.mxu0 0
    %2183 = vmatpush1.bf16.xpose.msra.mxu0 0
    %2184 = vmatprep.subr.bf16.mxu0 0
    %2185 = vmatpush1.bf16.xpose.msra.mxu0 0
    %2186 = vmatprep.subr.bf16.mxu0 0
    %2187 = vmatpush1.bf16.xpose.msra.mxu0 0
    %2188 = vmatprep.subr.bf16.mxu0 0
    %2189 = vmatpush1.bf16.xpose.msra.mxu0 0
    %2190 = vmatprep.subr.bf16.mxu0 0
    %2191 = vmatpush1.bf16.xpose.msra.mxu0 0
    %2192 = vmatprep.subr.bf16.mxu0 0
    %2193 = vmatpush1.bf16.xpose.msra.mxu0 0
    %2194 = vmatprep.subr.bf16.mxu0 0
    %2195 = vmatpush1.bf16.xpose.msra.mxu0 0
    %2196 = vmatprep.subr.bf16.mxu0 0
    %2197 = vmatpush1.bf16.xpose.msra.mxu0 0
    %2198 = vmatprep.subr.bf16.mxu0 0
    %2199 = vmatpush1.bf16.xpose.msra.mxu0 0
    %2200 = vmatprep.subr.bf16.mxu0 0
    %2201 = vmatpush1.bf16.xpose.msra.mxu0 0
    %2202 = vmatprep.subr.bf16.mxu0 0
    %2203 = vmatpush1.bf16.xpose.msra.mxu0 0
    %2204 = vmatprep.mubr.bf16.mxu0 0
    %2205 = vmatmul.mubr.bf16.gmra.mrb[0].mxu0 %v2167
    %v2206 = vpop.f32.mrb[0].mxu0
    %v2207 = vadd.f32 0.0, %v2206
    %v2208 = vpop.f32.mrb[0].mxu0
    %v2209 = vpop.f32.mrb[0].mxu0
    %v2210 = vadd.f32 0.0, %v2209
    %v2211 = vpop.f32.mrb[0].mxu0
    %2212 = vdwg.mxu0
    %v2213 = vsel %vm325, %v2207, -inf
    %2214 = vmax.xlane.f32.xlu0 %v2213
    %v2215 = vpop.xlane.xlu0 %2214
    %v2216 = vsel %vm325, %v2210, -inf
    %2217 = vmax.xlane.f32.xlu0 %v2216
    %v2218 = vpop.xlane.xlu0 %2217
    %v2219 = vsub.f32 %v2207, %v2215
    %v2220 = vsub.f32 %v2210, %v2218
    %v2221 = vmul.f32 %v2219, 1.442695
    %v2222 = vpow.pop %v2221
    %v2223 = vmul.f32 %v2220, 1.442695
    %v2224 = vpow.pop %v2223
    %v2225 = vsel %vm325, %v2222, 0.0
    %2226 = vadd.xlane.f32.xlu0 %v2225
    %v2227 = vpop.xlane.xlu0 %2226
    %v2228 = vsel %vm325, %v2224, 0.0
    %2229 = vadd.xlane.f32.xlu0 %v2228
    %v2230 = vpop.xlane.xlu0 %2229
    %v2231 = vrcp.pop %v2227
    %v2232 = vrcp.pop %v2230
    %v2233 = vmul.f32 %v2222, %v2231
    %v2234 = vmul.f32 %v2224, %v2232
    %v2235 = vpack.c.bf16 %v2234, %v2233
    %2236 = vrot.lane.b32.xlu0 %v1798, 40
    %v2237 = vpop.permute.xlu0 %2236
    %v2240 = vsel %vm325, %v2235, 0
    %2242 = vmatprep.subr.bf16.mxu0 0
    %2243 = vmatpush1.bf16.msra.mxu0 %v2237
    %2244 = vmatprep.subr.bf16.mxu0 0
    %2245 = vmatpush1.bf16.msra.mxu0 0
    %2246 = vmatprep.subr.bf16.mxu0 0
    %2247 = vmatpush1.bf16.msra.mxu0 0
    %2248 = vmatprep.subr.bf16.mxu0 0
    %2249 = vmatpush1.bf16.msra.mxu0 0
    %2250 = vmatprep.subr.bf16.mxu0 0
    %2251 = vmatpush1.bf16.msra.mxu0 0
    %2252 = vmatprep.subr.bf16.mxu0 0
    %2253 = vmatpush1.bf16.msra.mxu0 0
    %2254 = vmatprep.subr.bf16.mxu0 0
    %2255 = vmatpush1.bf16.msra.mxu0 0
    %2256 = vmatprep.subr.bf16.mxu0 0
    %2257 = vmatpush1.bf16.msra.mxu0 0
    %2258 = vmatprep.subr.bf16.mxu0 0
    %2259 = vmatpush1.bf16.msra.mxu0 0
    %2260 = vmatprep.subr.bf16.mxu0 0
    %2261 = vmatpush1.bf16.msra.mxu0 0
    %2262 = vmatprep.subr.bf16.mxu0 0
    %2263 = vmatpush1.bf16.msra.mxu0 0
    %2264 = vmatprep.subr.bf16.mxu0 0
    %2265 = vmatpush1.bf16.msra.mxu0 0
    %2266 = vmatprep.subr.bf16.mxu0 0
    %2267 = vmatpush1.bf16.msra.mxu0 0
    %2268 = vmatprep.subr.bf16.mxu0 0
    %2269 = vmatpush1.bf16.msra.mxu0 0
    %2270 = vmatprep.subr.bf16.mxu0 0
    %2271 = vmatpush1.bf16.msra.mxu0 0
    %2272 = vmatprep.subr.bf16.mxu0 0
    %2273 = vmatpush1.bf16.msra.mxu0 0
    %2274 = vmatprep.mubr.bf16.mxu0 0
    %2275 = vmatmul.mubr.bf16.gmra.mrb[0].mxu0 %v2240
    %v2276 = vpop.f32.mrb[0].mxu0
    %v2277 = vadd.f32 0.0, %v2276
    %v2278 = vpop.f32.mrb[0].mxu0
    %v2279 = vpop.f32.mrb[0].mxu0
    %v2280 = vadd.f32 0.0, %v2279
    %v2281 = vpop.f32.mrb[0].mxu0
    %2282 = vdwg.mxu0
    %2285 = vrot.lane.b32.xlu0 %v2035, 8
    %v2286 = vpop.permute.xlu0 %2285
    %2287 = vrot.lane.b32.xlu0 %v2038, 8
    %v2288 = vpop.permute.xlu0 %2287
    %2293 = vrot.lane.b32.xlu0 %v2156, 16
    %v2294 = vpop.permute.xlu0 %2293
    %2295 = vrot.lane.b32.xlu0 %v2159, 16
    %v2296 = vpop.permute.xlu0 %2295
    %2301 = vrot.lane.b32.xlu0 %v2277, 24
    %v2302 = vpop.permute.xlu0 %2301
    %2303 = vrot.lane.b32.xlu0 %v2280, 24
    %v2304 = vpop.permute.xlu0 %2303
    %v2307 = vsel %vm277, %v1914, %v2286
    %v2308 = vsel %vm277, %v1917, %v2288
    %v2309 = vsel %vm325, %v2307, %v2294
    %v2310 = vsel %vm325, %v2308, %v2296
    %v2311 = vsel %vm787, %v2309, %v2302
    %v2312 = vsel %vm787, %v2310, %v2304
    %2314 = vrot.lane.b32.xlu0 %v1799, 96
    %v2315 = vpop.permute.xlu0 %2314
    %v2317 = vsel %vm277, %v1799, 0
    %v2320 = vsel %vm277, %v2315, 0
    %2322 = vmatprep.subr.bf16.mxu0 0
    %2323 = vmatpush1.bf16.xpose.msra.mxu0 %v2320
    %2324 = vmatprep.subr.bf16.mxu0 0
    %2325 = vmatpush1.bf16.xpose.msra.mxu0 0
    %2326 = vmatprep.subr.bf16.mxu0 0
    %2327 = vmatpush1.bf16.xpose.msra.mxu0 0
    %2328 = vmatprep.subr.bf16.mxu0 0
    %2329 = vmatpush1.bf16.xpose.msra.mxu0 0
    %2330 = vmatprep.subr.bf16.mxu0 0
    %2331 = vmatpush1.bf16.xpose.msra.mxu0 0
    %2332 = vmatprep.subr.bf16.mxu0 0
    %2333 = vmatpush1.bf16.xpose.msra.mxu0 0
    %2334 = vmatprep.subr.bf16.mxu0 0
    %2335 = vmatpush1.bf16.xpose.msra.mxu0 0
    %2336 = vmatprep.subr.bf16.mxu0 0
    %2337 = vmatpush1.bf16.xpose.msra.mxu0 0
    %2338 = vmatprep.subr.bf16.mxu0 0
    %2339 = vmatpush1.bf16.xpose.msra.mxu0 0
    %2340 = vmatprep.subr.bf16.mxu0 0
    %2341 = vmatpush1.bf16.xpose.msra.mxu0 0
    %2342 = vmatprep.subr.bf16.mxu0 0
    %2343 = vmatpush1.bf16.xpose.msra.mxu0 0
    %2344 = vmatprep.subr.bf16.mxu0 0
    %2345 = vmatpush1.bf16.xpose.msra.mxu0 0
    %2346 = vmatprep.subr.bf16.mxu0 0
    %2347 = vmatpush1.bf16.xpose.msra.mxu0 0
    %2348 = vmatprep.subr.bf16.mxu0 0
    %2349 = vmatpush1.bf16.xpose.msra.mxu0 0
    %2350 = vmatprep.subr.bf16.mxu0 0
    %2351 = vmatpush1.bf16.xpose.msra.mxu0 0
    %2352 = vmatprep.subr.bf16.mxu0 0
    %2353 = vmatpush1.bf16.xpose.msra.mxu0 0
    %2354 = vmatprep.mubr.bf16.mxu0 0
    %2355 = vmatmul.mubr.bf16.gmra.mrb[0].mxu0 %v2317
    %v2356 = vpop.f32.mrb[0].mxu0
    %v2357 = vadd.f32 0.0, %v2356
    %v2358 = vpop.f32.mrb[0].mxu0
    %v2359 = vpop.f32.mrb[0].mxu0
    %v2360 = vadd.f32 0.0, %v2359
    %v2361 = vpop.f32.mrb[0].mxu0
    %2362 = vdwg.mxu0
    %v2363 = vsel %vm325, %v2357, -inf
    %2364 = vmax.xlane.f32.xlu0 %v2363
    %v2365 = vpop.xlane.xlu0 %2364
    %v2366 = vsel %vm325, %v2360, -inf
    %2367 = vmax.xlane.f32.xlu0 %v2366
    %v2368 = vpop.xlane.xlu0 %2367
    %v2369 = vsub.f32 %v2357, %v2365
    %v2370 = vsub.f32 %v2360, %v2368
    %v2371 = vmul.f32 %v2369, 1.442695
    %v2372 = vpow.pop %v2371
    %v2373 = vmul.f32 %v2370, 1.442695
    %v2374 = vpow.pop %v2373
    %v2375 = vsel %vm325, %v2372, 0.0
    %2376 = vadd.xlane.f32.xlu0 %v2375
    %v2377 = vpop.xlane.xlu0 %2376
    %v2378 = vsel %vm325, %v2374, 0.0
    %2379 = vadd.xlane.f32.xlu0 %v2378
    %v2380 = vpop.xlane.xlu0 %2379
    %v2381 = vrcp.pop %v2377
    %v2382 = vrcp.pop %v2380
    %v2383 = vmul.f32 %v2372, %v2381
    %v2384 = vmul.f32 %v2374, %v2382
    %v2385 = vpack.c.bf16 %v2384, %v2383
    %2386 = vrot.lane.b32.xlu0 %v1799, 64
    %v2387 = vpop.permute.xlu0 %2386
    %v2390 = vsel %vm325, %v2385, 0
    %2392 = vmatprep.subr.bf16.mxu0 0
    %2393 = vmatpush1.bf16.msra.mxu0 %v2387
    %2394 = vmatprep.subr.bf16.mxu0 0
    %2395 = vmatpush1.bf16.msra.mxu0 0
    %2396 = vmatprep.subr.bf16.mxu0 0
    %2397 = vmatpush1.bf16.msra.mxu0 0
    %2398 = vmatprep.subr.bf16.mxu0 0
    %2399 = vmatpush1.bf16.msra.mxu0 0
    %2400 = vmatprep.subr.bf16.mxu0 0
    %2401 = vmatpush1.bf16.msra.mxu0 0
    %2402 = vmatprep.subr.bf16.mxu0 0
    %2403 = vmatpush1.bf16.msra.mxu0 0
    %2404 = vmatprep.subr.bf16.mxu0 0
    %2405 = vmatpush1.bf16.msra.mxu0 0
    %2406 = vmatprep.subr.bf16.mxu0 0
    %2407 = vmatpush1.bf16.msra.mxu0 0
    %2408 = vmatprep.subr.bf16.mxu0 0
    %2409 = vmatpush1.bf16.msra.mxu0 0
    %2410 = vmatprep.subr.bf16.mxu0 0
    %2411 = vmatpush1.bf16.msra.mxu0 0
    %2412 = vmatprep.subr.bf16.mxu0 0
    %2413 = vmatpush1.bf16.msra.mxu0 0
    %2414 = vmatprep.subr.bf16.mxu0 0
    %2415 = vmatpush1.bf16.msra.mxu0 0
    %2416 = vmatprep.subr.bf16.mxu0 0
    %2417 = vmatpush1.bf16.msra.mxu0 0
    %2418 = vmatprep.subr.bf16.mxu0 0
    %2419 = vmatpush1.bf16.msra.mxu0 0
    %2420 = vmatprep.subr.bf16.mxu0 0
    %2421 = vmatpush1.bf16.msra.mxu0 0
    %2422 = vmatprep.subr.bf16.mxu0 0
    %2423 = vmatpush1.bf16.msra.mxu0 0
    %2424 = vmatprep.mubr.bf16.mxu0 0
    %2425 = vmatmul.mubr.bf16.gmra.mrb[0].mxu0 %v2390
    %v2426 = vpop.f32.mrb[0].mxu0
    %v2427 = vadd.f32 0.0, %v2426
    %v2428 = vpop.f32.mrb[0].mxu0
    %v2429 = vpop.f32.mrb[0].mxu0
    %v2430 = vadd.f32 0.0, %v2429
    %v2431 = vpop.f32.mrb[0].mxu0
    %2432 = vdwg.mxu0
    %2433 = vrot.lane.b32.xlu0 %v1799, 120
    %v2434 = vpop.permute.xlu0 %2433
    %2435 = vrot.lane.b32.xlu0 %v1799, 88
    %v2436 = vpop.permute.xlu0 %2435
    %v2438 = vsel %vm277, %v2434, 0
    %v2441 = vsel %vm277, %v2436, 0
    %2443 = vmatprep.subr.bf16.mxu0 0
    %2444 = vmatpush1.bf16.xpose.msra.mxu0 %v2441
    %2445 = vmatprep.subr.bf16.mxu0 0
    %2446 = vmatpush1.bf16.xpose.msra.mxu0 0
    %2447 = vmatprep.subr.bf16.mxu0 0
    %2448 = vmatpush1.bf16.xpose.msra.mxu0 0
    %2449 = vmatprep.subr.bf16.mxu0 0
    %2450 = vmatpush1.bf16.xpose.msra.mxu0 0
    %2451 = vmatprep.subr.bf16.mxu0 0
    %2452 = vmatpush1.bf16.xpose.msra.mxu0 0
    %2453 = vmatprep.subr.bf16.mxu0 0
    %2454 = vmatpush1.bf16.xpose.msra.mxu0 0
    %2455 = vmatprep.subr.bf16.mxu0 0
    %2456 = vmatpush1.bf16.xpose.msra.mxu0 0
    %2457 = vmatprep.subr.bf16.mxu0 0
    %2458 = vmatpush1.bf16.xpose.msra.mxu0 0
    %2459 = vmatprep.subr.bf16.mxu0 0
    %2460 = vmatpush1.bf16.xpose.msra.mxu0 0
    %2461 = vmatprep.subr.bf16.mxu0 0
    %2462 = vmatpush1.bf16.xpose.msra.mxu0 0
    %2463 = vmatprep.subr.bf16.mxu0 0
    %2464 = vmatpush1.bf16.xpose.msra.mxu0 0
    %2465 = vmatprep.subr.bf16.mxu0 0
    %2466 = vmatpush1.bf16.xpose.msra.mxu0 0
    %2467 = vmatprep.subr.bf16.mxu0 0
    %2468 = vmatpush1.bf16.xpose.msra.mxu0 0
    %2469 = vmatprep.subr.bf16.mxu0 0
    %2470 = vmatpush1.bf16.xpose.msra.mxu0 0
    %2471 = vmatprep.subr.bf16.mxu0 0
    %2472 = vmatpush1.bf16.xpose.msra.mxu0 0
    %2473 = vmatprep.subr.bf16.mxu0 0
    %2474 = vmatpush1.bf16.xpose.msra.mxu0 0
    %2475 = vmatprep.mubr.bf16.mxu0 0
    %2476 = vmatmul.mubr.bf16.gmra.mrb[0].mxu0 %v2438
    %v2477 = vpop.f32.mrb[0].mxu0
    %v2478 = vadd.f32 0.0, %v2477
    %v2479 = vpop.f32.mrb[0].mxu0
    %v2480 = vpop.f32.mrb[0].mxu0
    %v2481 = vadd.f32 0.0, %v2480
    %v2482 = vpop.f32.mrb[0].mxu0
    %2483 = vdwg.mxu0
    %v2484 = vsel %vm325, %v2478, -inf
    %2485 = vmax.xlane.f32.xlu0 %v2484
    %v2486 = vpop.xlane.xlu0 %2485
    %v2487 = vsel %vm325, %v2481, -inf
    %2488 = vmax.xlane.f32.xlu0 %v2487
    %v2489 = vpop.xlane.xlu0 %2488
    %v2490 = vsub.f32 %v2478, %v2486
    %v2491 = vsub.f32 %v2481, %v2489
    %v2492 = vmul.f32 %v2490, 1.442695
    %v2493 = vpow.pop %v2492
    %v2494 = vmul.f32 %v2491, 1.442695
    %v2495 = vpow.pop %v2494
    %v2496 = vsel %vm325, %v2493, 0.0
    %2497 = vadd.xlane.f32.xlu0 %v2496
    %v2498 = vpop.xlane.xlu0 %2497
    %v2499 = vsel %vm325, %v2495, 0.0
    %2500 = vadd.xlane.f32.xlu0 %v2499
    %v2501 = vpop.xlane.xlu0 %2500
    %v2502 = vrcp.pop %v2498
    %v2503 = vrcp.pop %v2501
    %v2504 = vmul.f32 %v2493, %v2502
    %v2505 = vmul.f32 %v2495, %v2503
    %v2506 = vpack.c.bf16 %v2505, %v2504
    %2507 = vrot.lane.b32.xlu0 %v1799, 56
    %v2508 = vpop.permute.xlu0 %2507
    %v2511 = vsel %vm325, %v2506, 0
    %2513 = vmatprep.subr.bf16.mxu0 0
    %2514 = vmatpush1.bf16.msra.mxu0 %v2508
    %2515 = vmatprep.subr.bf16.mxu0 0
    %2516 = vmatpush1.bf16.msra.mxu0 0
    %2517 = vmatprep.subr.bf16.mxu0 0
    %2518 = vmatpush1.bf16.msra.mxu0 0
    %2519 = vmatprep.subr.bf16.mxu0 0
    %2520 = vmatpush1.bf16.msra.mxu0 0
    %2521 = vmatprep.subr.bf16.mxu0 0
    %2522 = vmatpush1.bf16.msra.mxu0 0
    %2523 = vmatprep.subr.bf16.mxu0 0
    %2524 = vmatpush1.bf16.msra.mxu0 0
    %2525 = vmatprep.subr.bf16.mxu0 0
    %2526 = vmatpush1.bf16.msra.mxu0 0
    %2527 = vmatprep.subr.bf16.mxu0 0
    %2528 = vmatpush1.bf16.msra.mxu0 0
    %2529 = vmatprep.subr.bf16.mxu0 0
    %2530 = vmatpush1.bf16.msra.mxu0 0
    %2531 = vmatprep.subr.bf16.mxu0 0
    %2532 = vmatpush1.bf16.msra.mxu0 0
    %2533 = vmatprep.subr.bf16.mxu0 0
    %2534 = vmatpush1.bf16.msra.mxu0 0
    %2535 = vmatprep.subr.bf16.mxu0 0
    %2536 = vmatpush1.bf16.msra.mxu0 0
    %2537 = vmatprep.subr.bf16.mxu0 0
    %2538 = vmatpush1.bf16.msra.mxu0 0
    %2539 = vmatprep.subr.bf16.mxu0 0
    %2540 = vmatpush1.bf16.msra.mxu0 0
    %2541 = vmatprep.subr.bf16.mxu0 0
    %2542 = vmatpush1.bf16.msra.mxu0 0
    %2543 = vmatprep.subr.bf16.mxu0 0
    %2544 = vmatpush1.bf16.msra.mxu0 0
    %2545 = vmatprep.mubr.bf16.mxu0 0
    %2546 = vmatmul.mubr.bf16.gmra.mrb[0].mxu0 %v2511
    %v2547 = vpop.f32.mrb[0].mxu0
    %v2548 = vadd.f32 0.0, %v2547
    %v2549 = vpop.f32.mrb[0].mxu0
    %v2550 = vpop.f32.mrb[0].mxu0
    %v2551 = vadd.f32 0.0, %v2550
    %v2552 = vpop.f32.mrb[0].mxu0
    %2553 = vdwg.mxu0
    %2554 = vrot.lane.b32.xlu0 %v1799, 112
    %v2555 = vpop.permute.xlu0 %2554
    %2556 = vrot.lane.b32.xlu0 %v1799, 80
    %v2557 = vpop.permute.xlu0 %2556
    %v2559 = vsel %vm277, %v2555, 0
    %v2562 = vsel %vm277, %v2557, 0
    %2564 = vmatprep.subr.bf16.mxu0 0
    %2565 = vmatpush1.bf16.xpose.msra.mxu0 %v2562
    %2566 = vmatprep.subr.bf16.mxu0 0
    %2567 = vmatpush1.bf16.xpose.msra.mxu0 0
    %2568 = vmatprep.subr.bf16.mxu0 0
    %2569 = vmatpush1.bf16.xpose.msra.mxu0 0
    %2570 = vmatprep.subr.bf16.mxu0 0
    %2571 = vmatpush1.bf16.xpose.msra.mxu0 0
    %2572 = vmatprep.subr.bf16.mxu0 0
    %2573 = vmatpush1.bf16.xpose.msra.mxu0 0
    %2574 = vmatprep.subr.bf16.mxu0 0
    %2575 = vmatpush1.bf16.xpose.msra.mxu0 0
    %2576 = vmatprep.subr.bf16.mxu0 0
    %2577 = vmatpush1.bf16.xpose.msra.mxu0 0
    %2578 = vmatprep.subr.bf16.mxu0 0
    %2579 = vmatpush1.bf16.xpose.msra.mxu0 0
    %2580 = vmatprep.subr.bf16.mxu0 0
    %2581 = vmatpush1.bf16.xpose.msra.mxu0 0
    %2582 = vmatprep.subr.bf16.mxu0 0
    %2583 = vmatpush1.bf16.xpose.msra.mxu0 0
    %2584 = vmatprep.subr.bf16.mxu0 0
    %2585 = vmatpush1.bf16.xpose.msra.mxu0 0
    %2586 = vmatprep.subr.bf16.mxu0 0
    %2587 = vmatpush1.bf16.xpose.msra.mxu0 0
    %2588 = vmatprep.subr.bf16.mxu0 0
    %2589 = vmatpush1.bf16.xpose.msra.mxu0 0
    %2590 = vmatprep.subr.bf16.mxu0 0
    %2591 = vmatpush1.bf16.xpose.msra.mxu0 0
    %2592 = vmatprep.subr.bf16.mxu0 0
    %2593 = vmatpush1.bf16.xpose.msra.mxu0 0
    %2594 = vmatprep.subr.bf16.mxu0 0
    %2595 = vmatpush1.bf16.xpose.msra.mxu0 0
    %2596 = vmatprep.mubr.bf16.mxu0 0
    %2597 = vmatmul.mubr.bf16.gmra.mrb[0].mxu0 %v2559
    %v2598 = vpop.f32.mrb[0].mxu0
    %v2599 = vadd.f32 0.0, %v2598
    %v2600 = vpop.f32.mrb[0].mxu0
    %v2601 = vpop.f32.mrb[0].mxu0
    %v2602 = vadd.f32 0.0, %v2601
    %v2603 = vpop.f32.mrb[0].mxu0
    %2604 = vdwg.mxu0
    %v2605 = vsel %vm325, %v2599, -inf
    %2606 = vmax.xlane.f32.xlu0 %v2605
    %v2607 = vpop.xlane.xlu0 %2606
    %v2608 = vsel %vm325, %v2602, -inf
    %2609 = vmax.xlane.f32.xlu0 %v2608
    %v2610 = vpop.xlane.xlu0 %2609
    %v2611 = vsub.f32 %v2599, %v2607
    %v2612 = vsub.f32 %v2602, %v2610
    %v2613 = vmul.f32 %v2611, 1.442695
    %v2614 = vpow.pop %v2613
    %v2615 = vmul.f32 %v2612, 1.442695
    %v2616 = vpow.pop %v2615
    %v2617 = vsel %vm325, %v2614, 0.0
    %2618 = vadd.xlane.f32.xlu0 %v2617
    %v2619 = vpop.xlane.xlu0 %2618
    %v2620 = vsel %vm325, %v2616, 0.0
    %2621 = vadd.xlane.f32.xlu0 %v2620
    %v2622 = vpop.xlane.xlu0 %2621
    %v2623 = vrcp.pop %v2619
    %v2624 = vrcp.pop %v2622
    %v2625 = vmul.f32 %v2614, %v2623
    %v2626 = vmul.f32 %v2616, %v2624
    %v2627 = vpack.c.bf16 %v2626, %v2625
    %2628 = vrot.lane.b32.xlu0 %v1799, 48
    %v2629 = vpop.permute.xlu0 %2628
    %v2632 = vsel %vm325, %v2627, 0
    %2634 = vmatprep.subr.bf16.mxu0 0
    %2635 = vmatpush1.bf16.msra.mxu0 %v2629
    %2636 = vmatprep.subr.bf16.mxu0 0
    %2637 = vmatpush1.bf16.msra.mxu0 0
    %2638 = vmatprep.subr.bf16.mxu0 0
    %2639 = vmatpush1.bf16.msra.mxu0 0
    %2640 = vmatprep.subr.bf16.mxu0 0
    %2641 = vmatpush1.bf16.msra.mxu0 0
    %2642 = vmatprep.subr.bf16.mxu0 0
    %2643 = vmatpush1.bf16.msra.mxu0 0
    %2644 = vmatprep.subr.bf16.mxu0 0
    %2645 = vmatpush1.bf16.msra.mxu0 0
    %2646 = vmatprep.subr.bf16.mxu0 0
    %2647 = vmatpush1.bf16.msra.mxu0 0
    %2648 = vmatprep.subr.bf16.mxu0 0
    %2649 = vmatpush1.bf16.msra.mxu0 0
    %2650 = vmatprep.subr.bf16.mxu0 0
    %2651 = vmatpush1.bf16.msra.mxu0 0
    %2652 = vmatprep.subr.bf16.mxu0 0
    %2653 = vmatpush1.bf16.msra.mxu0 0
    %2654 = vmatprep.subr.bf16.mxu0 0
    %2655 = vmatpush1.bf16.msra.mxu0 0
    %2656 = vmatprep.subr.bf16.mxu0 0
    %2657 = vmatpush1.bf16.msra.mxu0 0
    %2658 = vmatprep.subr.bf16.mxu0 0
    %2659 = vmatpush1.bf16.msra.mxu0 0
    %2660 = vmatprep.subr.bf16.mxu0 0
    %2661 = vmatpush1.bf16.msra.mxu0 0
    %2662 = vmatprep.subr.bf16.mxu0 0
    %2663 = vmatpush1.bf16.msra.mxu0 0
    %2664 = vmatprep.subr.bf16.mxu0 0
    %2665 = vmatpush1.bf16.msra.mxu0 0
    %2666 = vmatprep.mubr.bf16.mxu0 0
    %2667 = vmatmul.mubr.bf16.gmra.mrb[0].mxu0 %v2632
    %v2668 = vpop.f32.mrb[0].mxu0
    %v2669 = vadd.f32 0.0, %v2668
    %v2670 = vpop.f32.mrb[0].mxu0
    %v2671 = vpop.f32.mrb[0].mxu0
    %v2672 = vadd.f32 0.0, %v2671
    %v2673 = vpop.f32.mrb[0].mxu0
    %2674 = vdwg.mxu0
    %2675 = vrot.lane.b32.xlu0 %v1799, 104
    %v2676 = vpop.permute.xlu0 %2675
    %2677 = vrot.lane.b32.xlu0 %v1799, 72
    %v2678 = vpop.permute.xlu0 %2677
    %v2680 = vsel %vm277, %v2676, 0
    %v2683 = vsel %vm277, %v2678, 0
    %2685 = vmatprep.subr.bf16.mxu0 0
    %2686 = vmatpush1.bf16.xpose.msra.mxu0 %v2683
    %2687 = vmatprep.subr.bf16.mxu0 0
    %2688 = vmatpush1.bf16.xpose.msra.mxu0 0
    %2689 = vmatprep.subr.bf16.mxu0 0
    %2690 = vmatpush1.bf16.xpose.msra.mxu0 0
    %2691 = vmatprep.subr.bf16.mxu0 0
    %2692 = vmatpush1.bf16.xpose.msra.mxu0 0
    %2693 = vmatprep.subr.bf16.mxu0 0
    %2694 = vmatpush1.bf16.xpose.msra.mxu0 0
    %2695 = vmatprep.subr.bf16.mxu0 0
    %2696 = vmatpush1.bf16.xpose.msra.mxu0 0
    %2697 = vmatprep.subr.bf16.mxu0 0
    %2698 = vmatpush1.bf16.xpose.msra.mxu0 0
    %2699 = vmatprep.subr.bf16.mxu0 0
    %2700 = vmatpush1.bf16.xpose.msra.mxu0 0
    %2701 = vmatprep.subr.bf16.mxu0 0
    %2702 = vmatpush1.bf16.xpose.msra.mxu0 0
    %2703 = vmatprep.subr.bf16.mxu0 0
    %2704 = vmatpush1.bf16.xpose.msra.mxu0 0
    %2705 = vmatprep.subr.bf16.mxu0 0
    %2706 = vmatpush1.bf16.xpose.msra.mxu0 0
    %2707 = vmatprep.subr.bf16.mxu0 0
    %2708 = vmatpush1.bf16.xpose.msra.mxu0 0
    %2709 = vmatprep.subr.bf16.mxu0 0
    %2710 = vmatpush1.bf16.xpose.msra.mxu0 0
    %2711 = vmatprep.subr.bf16.mxu0 0
    %2712 = vmatpush1.bf16.xpose.msra.mxu0 0
    %2713 = vmatprep.subr.bf16.mxu0 0
    %2714 = vmatpush1.bf16.xpose.msra.mxu0 0
    %2715 = vmatprep.subr.bf16.mxu0 0
    %2716 = vmatpush1.bf16.xpose.msra.mxu0 0
    %2717 = vmatprep.mubr.bf16.mxu0 0
    %2718 = vmatmul.mubr.bf16.gmra.mrb[0].mxu0 %v2680
    %v2719 = vpop.f32.mrb[0].mxu0
    %v2720 = vadd.f32 0.0, %v2719
    %v2721 = vpop.f32.mrb[0].mxu0
    %v2722 = vpop.f32.mrb[0].mxu0
    %v2723 = vadd.f32 0.0, %v2722
    %v2724 = vpop.f32.mrb[0].mxu0
    %2725 = vdwg.mxu0
    %v2726 = vsel %vm325, %v2720, -inf
    %2727 = vmax.xlane.f32.xlu0 %v2726
    %v2728 = vpop.xlane.xlu0 %2727
    %v2729 = vsel %vm325, %v2723, -inf
    %2730 = vmax.xlane.f32.xlu0 %v2729
    %v2731 = vpop.xlane.xlu0 %2730
    %v2732 = vsub.f32 %v2720, %v2728
    %v2733 = vsub.f32 %v2723, %v2731
    %v2734 = vmul.f32 %v2732, 1.442695
    %v2735 = vpow.pop %v2734
    %v2736 = vmul.f32 %v2733, 1.442695
    %v2737 = vpow.pop %v2736
    %v2738 = vsel %vm325, %v2735, 0.0
    %2739 = vadd.xlane.f32.xlu0 %v2738
    %v2740 = vpop.xlane.xlu0 %2739
    %v2741 = vsel %vm325, %v2737, 0.0
    %2742 = vadd.xlane.f32.xlu0 %v2741
    %v2743 = vpop.xlane.xlu0 %2742
    %v2744 = vrcp.pop %v2740
    %v2745 = vrcp.pop %v2743
    %v2746 = vmul.f32 %v2735, %v2744
    %v2747 = vmul.f32 %v2737, %v2745
    %v2748 = vpack.c.bf16 %v2747, %v2746
    %2749 = vrot.lane.b32.xlu0 %v1799, 40
    %v2750 = vpop.permute.xlu0 %2749
    %v2753 = vsel %vm325, %v2748, 0
    %2755 = vmatprep.subr.bf16.mxu0 0
    %2756 = vmatpush1.bf16.msra.mxu0 %v2750
    %2757 = vmatprep.subr.bf16.mxu0 0
    %2758 = vmatpush1.bf16.msra.mxu0 0
    %2759 = vmatprep.subr.bf16.mxu0 0
    %2760 = vmatpush1.bf16.msra.mxu0 0
    %2761 = vmatprep.subr.bf16.mxu0 0
    %2762 = vmatpush1.bf16.msra.mxu0 0
    %2763 = vmatprep.subr.bf16.mxu0 0
    %2764 = vmatpush1.bf16.msra.mxu0 0
    %2765 = vmatprep.subr.bf16.mxu0 0
    %2766 = vmatpush1.bf16.msra.mxu0 0
    %2767 = vmatprep.subr.bf16.mxu0 0
    %2768 = vmatpush1.bf16.msra.mxu0 0
    %2769 = vmatprep.subr.bf16.mxu0 0
    %2770 = vmatpush1.bf16.msra.mxu0 0
    %2771 = vmatprep.subr.bf16.mxu0 0
    %2772 = vmatpush1.bf16.msra.mxu0 0
    %2773 = vmatprep.subr.bf16.mxu0 0
    %2774 = vmatpush1.bf16.msra.mxu0 0
    %2775 = vmatprep.subr.bf16.mxu0 0
    %2776 = vmatpush1.bf16.msra.mxu0 0
    %2777 = vmatprep.subr.bf16.mxu0 0
    %2778 = vmatpush1.bf16.msra.mxu0 0
    %2779 = vmatprep.subr.bf16.mxu0 0
    %2780 = vmatpush1.bf16.msra.mxu0 0
    %2781 = vmatprep.subr.bf16.mxu0 0
    %2782 = vmatpush1.bf16.msra.mxu0 0
    %2783 = vmatprep.subr.bf16.mxu0 0
    %2784 = vmatpush1.bf16.msra.mxu0 0
    %2785 = vmatprep.subr.bf16.mxu0 0
    %2786 = vmatpush1.bf16.msra.mxu0 0
    %2787 = vmatprep.mubr.bf16.mxu0 0
    %2788 = vmatmul.mubr.bf16.gmra.mrb[0].mxu0 %v2753
    %v2789 = vpop.f32.mrb[0].mxu0
    %v2790 = vadd.f32 0.0, %v2789
    %v2791 = vpop.f32.mrb[0].mxu0
    %v2792 = vpop.f32.mrb[0].mxu0
    %v2793 = vadd.f32 0.0, %v2792
    %v2794 = vpop.f32.mrb[0].mxu0
    %2795 = vdwg.mxu0
    %2798 = vrot.lane.b32.xlu0 %v2548, 8
    %v2799 = vpop.permute.xlu0 %2798
    %2800 = vrot.lane.b32.xlu0 %v2551, 8
    %v2801 = vpop.permute.xlu0 %2800
    %2806 = vrot.lane.b32.xlu0 %v2669, 16
    %v2807 = vpop.permute.xlu0 %2806
    %2808 = vrot.lane.b32.xlu0 %v2672, 16
    %v2809 = vpop.permute.xlu0 %2808
    %2814 = vrot.lane.b32.xlu0 %v2790, 24
    %v2815 = vpop.permute.xlu0 %2814
    %2816 = vrot.lane.b32.xlu0 %v2793, 24
    %v2817 = vpop.permute.xlu0 %2816
    %v2820 = vsel %vm277, %v2427, %v2799
    %v2821 = vsel %vm277, %v2430, %v2801
    %v2822 = vsel %vm325, %v2820, %v2807
    %v2823 = vsel %vm325, %v2821, %v2809
    %v2824 = vsel %vm787, %v2822, %v2815
    %v2825 = vsel %vm787, %v2823, %v2817
    %v2826 = vpack.c.bf16 %v2312, %v2311
    %v2827 = vpack.c.bf16 %v2825, %v2824
    %2828 = vrot.lane.b32.xlu0 %v1739, 32
    %v2829 = vpop.permute.xlu0 %2828
    %2830 = vrot.lane.b32.xlu0 %v1740, 32
    %v2831 = vpop.permute.xlu0 %2830
    %2835 = vrot.lane.b32.xlu0 %v1730, 32
    %v2836 = vpop.permute.xlu0 %2835
    %v2839 = vsel %vm125, %v2826, 0
    %v2842 = vsel %vm125, %v2827, 0
    %2844 = vmatprep.subr.bf16.mxu0 0
    %2845 = vmatpush1.bf16.msra.mxu0 %v2829
    %2846 = vmatprep.subr.bf16.mxu0 0
    %2847 = vmatpush1.bf16.msra.mxu0 %v2831
    %2848 = vmatprep.subr.bf16.mxu0 0
    %2849 = vmatpush1.bf16.msra.mxu0 0
    %2850 = vmatprep.subr.bf16.mxu0 0
    %2851 = vmatpush1.bf16.msra.mxu0 0
    %2852 = vmatprep.subr.bf16.mxu0 0
    %2853 = vmatpush1.bf16.msra.mxu0 0
    %2854 = vmatprep.subr.bf16.mxu0 0
    %2855 = vmatpush1.bf16.msra.mxu0 0
    %2856 = vmatprep.subr.bf16.mxu0 0
    %2857 = vmatpush1.bf16.msra.mxu0 0
    %2858 = vmatprep.subr.bf16.mxu0 0
    %2859 = vmatpush1.bf16.msra.mxu0 0
    %2860 = vmatprep.subr.bf16.mxu0 0
    %2861 = vmatpush1.bf16.msra.mxu0 0
    %2862 = vmatprep.subr.bf16.mxu0 0
    %2863 = vmatpush1.bf16.msra.mxu0 0
    %2864 = vmatprep.subr.bf16.mxu0 0
    %2865 = vmatpush1.bf16.msra.mxu0 0
    %2866 = vmatprep.subr.bf16.mxu0 0
    %2867 = vmatpush1.bf16.msra.mxu0 0
    %2868 = vmatprep.subr.bf16.mxu0 0
    %2869 = vmatpush1.bf16.msra.mxu0 0
    %2870 = vmatprep.subr.bf16.mxu0 0
    %2871 = vmatpush1.bf16.msra.mxu0 0
    %2872 = vmatprep.subr.bf16.mxu0 0
    %2873 = vmatpush1.bf16.msra.mxu0 0
    %2874 = vmatprep.subr.bf16.mxu0 0
    %2875 = vmatpush1.bf16.msra.mxu0 0
    %2876 = vmatprep.mubr.bf16.mxu0 0
    %2877 = vmatmul.mubr.bf16.gmra.mrb[0].mxu0 %v2839
    %v2878 = vpop.f32.mrb[0].mxu0
    %v2879 = vadd.f32 %v2836, %v2878
    %v2880 = vpop.f32.mrb[0].mxu0
    %v2881 = vpop.f32.mrb[0].mxu0
    %v2882 = vadd.f32 %v2836, %v2881
    %v2883 = vpop.f32.mrb[0].mxu0
    %2884 = vmatprep.mubr.bf16.mxu0 0
    %2885 = vmatmul.mubr.bf16.gmra.mrb[0].mxu0 %v2842
    %v2886 = vpop.f32.mrb[0].mxu0
    %v2887 = vadd.f32 %v2836, %v2886
    %v2888 = vpop.f32.mrb[0].mxu0
    %v2889 = vpop.f32.mrb[0].mxu0
    %v2890 = vadd.f32 %v2836, %v2889
    %v2891 = vpop.f32.mrb[0].mxu0
    %2892 = vdwg.mxu0
    %v2893 = vadd.f32 %v1646, %v2879
    %v2894 = vadd.f32 %v1647, %v2882
    %v2895 = vadd.f32 %v1648, %v2887
    %v2896 = vadd.f32 %v1649, %v2890
    %v2897 = vsel %vm125, %v2893, 0.0
    %2898 = vadd.xlane.f32.xlu0 %v2897
    %v2899 = vpop.xlane.xlu0 %2898
    %v2900 = vsel %vm125, %v2894, 0.0
    %2901 = vadd.xlane.f32.xlu0 %v2900
    %v2902 = vpop.xlane.xlu0 %2901
    %v2903 = vsel %vm125, %v2895, 0.0
    %2904 = vadd.xlane.f32.xlu0 %v2903
    %v2905 = vpop.xlane.xlu0 %2904
    %v2906 = vsel %vm125, %v2896, 0.0
    %2907 = vadd.xlane.f32.xlu0 %v2906
    %v2908 = vpop.xlane.xlu0 %2907
    %v2909 = vmul.f32 %v2899, %v138
    %v2910 = vmul.f32 %v2902, %v138
    %v2911 = vmul.f32 %v2905, %v138
    %v2912 = vmul.f32 %v2908, %v138
    %v2913 = vsub.f32 %v2893, %v2909
    %v2914 = vsub.f32 %v2894, %v2910
    %v2915 = vsub.f32 %v2895, %v2911
    %v2916 = vsub.f32 %v2896, %v2912
    %v2917 = vmul.f32 %v2913, %v2913
    %v2918 = vmul.f32 %v2914, %v2914
    %v2919 = vmul.f32 %v2915, %v2915
    %v2920 = vmul.f32 %v2916, %v2916
    %v2921 = vsel %vm125, %v2917, 0.0
    %2922 = vadd.xlane.f32.xlu0 %v2921
    %v2923 = vpop.xlane.xlu0 %2922
    %v2924 = vsel %vm125, %v2918, 0.0
    %2925 = vadd.xlane.f32.xlu0 %v2924
    %v2926 = vpop.xlane.xlu0 %2925
    %v2927 = vsel %vm125, %v2919, 0.0
    %2928 = vadd.xlane.f32.xlu0 %v2927
    %v2929 = vpop.xlane.xlu0 %2928
    %v2930 = vsel %vm125, %v2920, 0.0
    %2931 = vadd.xlane.f32.xlu0 %v2930
    %v2932 = vpop.xlane.xlu0 %2931
    %v2933 = vmul.f32 %v2923, %v138
    %v2934 = vmul.f32 %v2926, %v138
    %v2935 = vmul.f32 %v2929, %v138
    %v2936 = vmul.f32 %v2932, %v138
    %v2937 = vadd.f32 %v2933, 1e-06
    %v2938 = vadd.f32 %v2934, 1e-06
    %v2939 = vadd.f32 %v2935, 1e-06
    %v2940 = vadd.f32 %v2936, 1e-06
    %v2941 = vrsqrt.pop %v2937
    %v2942 = vrsqrt.pop %v2938
    %v2943 = vrsqrt.pop %v2939
    %v2944 = vrsqrt.pop %v2940
    %v2945 = vmul.f32 %v2913, %v2941
    %v2946 = vmul.f32 %v2914, %v2942
    %v2947 = vmul.f32 %v2915, %v2943
    %v2948 = vmul.f32 %v2916, %v2944
    %2949 = vrot.lane.b32.xlu0 %v1708, 64
    %v2950 = vpop.permute.xlu0 %2949
    %v2952 = vmul.f32 %v2945, %v2950
    %v2953 = vmul.f32 %v2946, %v2950
    %v2954 = vmul.f32 %v2947, %v2950
    %v2955 = vmul.f32 %v2948, %v2950
    %2956 = vrot.lane.b32.xlu0 %v1708, 32
    %v2957 = vpop.permute.xlu0 %2956
    %v2959 = vadd.f32 %v2952, %v2957
    %v2960 = vadd.f32 %v2953, %v2957
    %v2961 = vadd.f32 %v2954, %v2957
    %v2962 = vadd.f32 %v2955, %v2957
    %v2963 = vpack.c.bf16 %v2960, %v2959
    %v2964 = vpack.c.bf16 %v2962, %v2961
    %v2965 = vld [vmem:[%s1 + $0x70] sm:$0xf]
    %v2966 = vld [vmem:[%s1 + $0x74] sm:$0xf]
    %v2967 = vld [vmem:[%s1 + $0x78] sm:$0xf]
    %v2968 = vld [vmem:[%s1 + $0x7c] sm:$0xf]
    %v2969 = vlaneseq
    %v2970 = vshrl.u32 %v2969, 7
    %v2971 = vsub.s32 0, %v2970
    %v2972 = vrot.slane %v1652, %v2971
    %v2977 = vunpack.c.l.b16 %v2965
    %v2978 = vunpack.c.l.b16 %v2966
    %v2979 = vunpack.c.l.b16 %v2967
    %v2980 = vunpack.c.l.b16 %v2968
    %v2981 = vpack.c.b16 %v2978, %v2977
    %v2982 = vpack.c.b16 %v2980, %v2979
    %v2986 = vsel %vm125, %v2963, 0
    %v2989 = vsel %vm125, %v2964, 0
    %2991 = vmatprep.subr.bf16.mxu0 0
    %2992 = vmatpush1.bf16.msra.mxu0 %v2981
    %2993 = vmatprep.subr.bf16.mxu0 0
    %2994 = vmatpush1.bf16.msra.mxu0 %v2982
    %2995 = vmatprep.subr.bf16.mxu0 0
    %2996 = vmatpush1.bf16.msra.mxu0 0
    %2997 = vmatprep.subr.bf16.mxu0 0
    %2998 = vmatpush1.bf16.msra.mxu0 0
    %2999 = vmatprep.subr.bf16.mxu0 0
    %3000 = vmatpush1.bf16.msra.mxu0 0
    %3001 = vmatprep.subr.bf16.mxu0 0
    %3002 = vmatpush1.bf16.msra.mxu0 0
    %3003 = vmatprep.subr.bf16.mxu0 0
    %3004 = vmatpush1.bf16.msra.mxu0 0
    %3005 = vmatprep.subr.bf16.mxu0 0
    %3006 = vmatpush1.bf16.msra.mxu0 0
    %3007 = vmatprep.subr.bf16.mxu0 0
    %3008 = vmatpush1.bf16.msra.mxu0 0
    %3009 = vmatprep.subr.bf16.mxu0 0
    %3010 = vmatpush1.bf16.msra.mxu0 0
    %3011 = vmatprep.subr.bf16.mxu0 0
    %3012 = vmatpush1.bf16.msra.mxu0 0
    %3013 = vmatprep.subr.bf16.mxu0 0
    %3014 = vmatpush1.bf16.msra.mxu0 0
    %3015 = vmatprep.subr.bf16.mxu0 0
    %3016 = vmatpush1.bf16.msra.mxu0 0
    %3017 = vmatprep.subr.bf16.mxu0 0
    %3018 = vmatpush1.bf16.msra.mxu0 0
    %3019 = vmatprep.subr.bf16.mxu0 0
    %3020 = vmatpush1.bf16.msra.mxu0 0
    %3021 = vmatprep.subr.bf16.mxu0 0
    %3022 = vmatpush1.bf16.msra.mxu0 0
    %3023 = vmatprep.mubr.bf16.mxu0 0
    %3024 = vmatmul.mubr.bf16.gmra.mrb[0].mxu0 %v2986
    %v3025 = vpop.f32.mrb[0].mxu0
    %v3026 = vadd.f32 %v2972, %v3025
    %v3027 = vpop.f32.mrb[0].mxu0
    %v3028 = vpop.f32.mrb[0].mxu0
    %v3029 = vadd.f32 %v2972, %v3028
    %v3030 = vpop.f32.mrb[0].mxu0
    %3031 = vmatprep.mubr.bf16.mxu0 0
    %3032 = vmatmul.mubr.bf16.gmra.mrb[0].mxu0 %v2989
    %v3033 = vpop.f32.mrb[0].mxu0
    %v3034 = vadd.f32 %v2972, %v3033
    %v3035 = vpop.f32.mrb[0].mxu0
    %v3036 = vpop.f32.mrb[0].mxu0
    %v3037 = vadd.f32 %v2972, %v3036
    %v3038 = vpop.f32.mrb[0].mxu0
    %3039 = vdwg.mxu0
    %v3040 = vmul.f32 %v3026, %v3026
    %v3041 = vmul.f32 %v3029, %v3029
    %v3042 = vmul.f32 %v3034, %v3034
    %v3043 = vmul.f32 %v3037, %v3037
    %v3044 = vmul.f32 %v3026, %v3040
    %v3045 = vmul.f32 %v3029, %v3041
    %v3046 = vmul.f32 %v3034, %v3042
    %v3047 = vmul.f32 %v3037, %v3043
    %v3048 = vmul.f32 %v3044, 0.044715
    %v3049 = vmul.f32 %v3045, 0.044715
    %v3050 = vmul.f32 %v3046, 0.044715
    %v3051 = vmul.f32 %v3047, 0.044715
    %v3052 = vadd.f32 %v3026, %v3048
    %v3053 = vadd.f32 %v3029, %v3049
    %v3054 = vadd.f32 %v3034, %v3050
    %v3055 = vadd.f32 %v3037, %v3051
    %v3056 = vmul.f32 %v3052, 0.7978846
    %v3057 = vmul.f32 %v3053, 0.7978846
    %v3058 = vmul.f32 %v3054, 0.7978846
    %v3059 = vmul.f32 %v3055, 0.7978846
    %v3060 = vtanh.pop %v3056
    %v3061 = vtanh.pop %v3057
    %v3062 = vtanh.pop %v3058
    %v3063 = vtanh.pop %v3059
    %v3064 = vadd.f32 %v3060, 1.0
    %v3065 = vadd.f32 %v3061, 1.0
    %v3066 = vadd.f32 %v3062, 1.0
    %v3067 = vadd.f32 %v3063, 1.0
    %v3068 = vmul.f32 %v3064, 0.5
    %v3069 = vmul.f32 %v3065, 0.5
    %v3070 = vmul.f32 %v3066, 0.5
    %v3071 = vmul.f32 %v3067, 0.5
    %v3072 = vmul.f32 %v3026, %v3068
    %v3073 = vmul.f32 %v3029, %v3069
    %v3074 = vmul.f32 %v3034, %v3070
    %v3075 = vmul.f32 %v3037, %v3071
    %v3076 = vpack.c.bf16 %v3073, %v3072
    %v3077 = vpack.c.bf16 %v3075, %v3074
    %v3078 = vld [vmem:[%s1 + $0x80] sm:$0xf]
    %v3079 = vld [vmem:[%s1 + $0x84] sm:$0xf]
    %v3080 = vld [vmem:[%s1 + $0x88] sm:$0xf]
    %v3081 = vld [vmem:[%s1 + $0x8c] sm:$0xf]
    %v3082 = vld [vmem:[%s1 + $0x90] sm:$0xf]
    %v3083 = vld [vmem:[%s1 + $0x94] sm:$0xf]
    %v3084 = vld [vmem:[%s1 + $0x98] sm:$0xf]
    %v3085 = vld [vmem:[%s1 + $0x9c] sm:$0xf]
    %v3094 = vunpack.c.l.b16 %v3078
    %v3095 = vunpack.c.l.b16 %v3079
    %v3096 = vunpack.c.l.b16 %v3080
    %v3097 = vunpack.c.l.b16 %v3081
    %v3098 = vunpack.c.l.b16 %v3082
    %v3099 = vunpack.c.l.b16 %v3083
    %v3100 = vunpack.c.l.b16 %v3084
    %v3101 = vunpack.c.l.b16 %v3085
    %v3102 = vpack.c.b16 %v3095, %v3094
    %v3103 = vpack.c.b16 %v3097, %v3096
    %v3104 = vpack.c.b16 %v3099, %v3098
    %v3105 = vpack.c.b16 %v3101, %v3100
    %3111 = vrot.lane.b32.xlu0 %v2972, 64
    %v3112 = vpop.permute.xlu0 %3111
    %v3115 = vsel %vm66, %v3076, 0
    %v3118 = vsel %vm66, %v3077, 0
    %3120 = vmatprep.subr.bf16.mxu0 0
    %3121 = vmatpush1.bf16.msra.mxu0 %v3102
    %3122 = vmatprep.subr.bf16.mxu0 0
    %3123 = vmatpush1.bf16.msra.mxu0 %v3103
    %3124 = vmatprep.subr.bf16.mxu0 0
    %3125 = vmatpush1.bf16.msra.mxu0 %v3104
    %3126 = vmatprep.subr.bf16.mxu0 0
    %3127 = vmatpush1.bf16.msra.mxu0 %v3105
    %3128 = vmatprep.subr.bf16.mxu0 0
    %3129 = vmatpush1.bf16.msra.mxu0 0
    %3130 = vmatprep.subr.bf16.mxu0 0
    %3131 = vmatpush1.bf16.msra.mxu0 0
    %3132 = vmatprep.subr.bf16.mxu0 0
    %3133 = vmatpush1.bf16.msra.mxu0 0
    %3134 = vmatprep.subr.bf16.mxu0 0
    %3135 = vmatpush1.bf16.msra.mxu0 0
    %3136 = vmatprep.subr.bf16.mxu0 0
    %3137 = vmatpush1.bf16.msra.mxu0 0
    %3138 = vmatprep.subr.bf16.mxu0 0
    %3139 = vmatpush1.bf16.msra.mxu0 0
    %3140 = vmatprep.subr.bf16.mxu0 0
    %3141 = vmatpush1.bf16.msra.mxu0 0
    %3142 = vmatprep.subr.bf16.mxu0 0
    %3143 = vmatpush1.bf16.msra.mxu0 0
    %3144 = vmatprep.subr.bf16.mxu0 0
    %3145 = vmatpush1.bf16.msra.mxu0 0
    %3146 = vmatprep.subr.bf16.mxu0 0
    %3147 = vmatpush1.bf16.msra.mxu0 0
    %3148 = vmatprep.subr.bf16.mxu0 0
    %3149 = vmatpush1.bf16.msra.mxu0 0
    %3150 = vmatprep.subr.bf16.mxu0 0
    %3151 = vmatpush1.bf16.msra.mxu0 0
    %3152 = vmatprep.mubr.bf16.mxu0 0
    %3153 = vmatmul.mubr.bf16.gmra.mrb[0].mxu0 %v3115
    %v3154 = vpop.f32.mrb[0].mxu0
    %v3155 = vadd.f32 %v3112, %v3154
    %v3156 = vpop.f32.mrb[0].mxu0
    %v3157 = vpop.f32.mrb[0].mxu0
    %v3158 = vadd.f32 %v3112, %v3157
    %v3159 = vpop.f32.mrb[0].mxu0
    %3160 = vmatprep.mubr.bf16.mxu0 0
    %3161 = vmatmul.mubr.bf16.gmra.mrb[0].mxu0 %v3118
    %v3162 = vpop.f32.mrb[0].mxu0
    %v3163 = vadd.f32 %v3112, %v3162
    %v3164 = vpop.f32.mrb[0].mxu0
    %v3165 = vpop.f32.mrb[0].mxu0
    %v3166 = vadd.f32 %v3112, %v3165
    %v3167 = vpop.f32.mrb[0].mxu0
    %3168 = vdwg.mxu0
    %v3169 = vadd.f32 %v2893, %v3155
    %v3170 = vadd.f32 %v2894, %v3158
    %v3171 = vadd.f32 %v2895, %v3163
    %v3172 = vadd.f32 %v2896, %v3166
    %v3173 = vld [vmem:[%s2 + $0x30] sm:$0x1]
    %v3174 = vsel %vm125, %v3169, 0.0
    %3175 = vadd.xlane.f32.xlu0 %v3174
    %v3176 = vpop.xlane.xlu0 %3175
    %v3177 = vsel %vm125, %v3170, 0.0
    %3178 = vadd.xlane.f32.xlu0 %v3177
    %v3179 = vpop.xlane.xlu0 %3178
    %v3180 = vsel %vm125, %v3171, 0.0
    %3181 = vadd.xlane.f32.xlu0 %v3180
    %v3182 = vpop.xlane.xlu0 %3181
    %v3183 = vsel %vm125, %v3172, 0.0
    %3184 = vadd.xlane.f32.xlu0 %v3183
    %v3185 = vpop.xlane.xlu0 %3184
    %v3186 = vmul.f32 %v3176, %v138
    %v3187 = vmul.f32 %v3179, %v138
    %v3188 = vmul.f32 %v3182, %v138
    %v3189 = vmul.f32 %v3185, %v138
    %v3190 = vsub.f32 %v3169, %v3186
    %v3191 = vsub.f32 %v3170, %v3187
    %v3192 = vsub.f32 %v3171, %v3188
    %v3193 = vsub.f32 %v3172, %v3189
    %v3194 = vmul.f32 %v3190, %v3190
    %v3195 = vmul.f32 %v3191, %v3191
    %v3196 = vmul.f32 %v3192, %v3192
    %v3197 = vmul.f32 %v3193, %v3193
    %v3198 = vsel %vm125, %v3194, 0.0
    %3199 = vadd.xlane.f32.xlu0 %v3198
    %v3200 = vpop.xlane.xlu0 %3199
    %v3201 = vsel %vm125, %v3195, 0.0
    %3202 = vadd.xlane.f32.xlu0 %v3201
    %v3203 = vpop.xlane.xlu0 %3202
    %v3204 = vsel %vm125, %v3196, 0.0
    %3205 = vadd.xlane.f32.xlu0 %v3204
    %v3206 = vpop.xlane.xlu0 %3205
    %v3207 = vsel %vm125, %v3197, 0.0
    %3208 = vadd.xlane.f32.xlu0 %v3207
    %v3209 = vpop.xlane.xlu0 %3208
    %v3210 = vmul.f32 %v3200, %v138
    %v3211 = vmul.f32 %v3203, %v138
    %v3212 = vmul.f32 %v3206, %v138
    %v3213 = vmul.f32 %v3209, %v138
    %v3214 = vadd.f32 %v3210, 1e-06
    %v3215 = vadd.f32 %v3211, 1e-06
    %v3216 = vadd.f32 %v3212, 1e-06
    %v3217 = vadd.f32 %v3213, 1e-06
    %v3218 = vrsqrt.pop %v3214
    %v3219 = vrsqrt.pop %v3215
    %v3220 = vrsqrt.pop %v3216
    %v3221 = vrsqrt.pop %v3217
    %v3222 = vmul.f32 %v3190, %v3218
    %v3223 = vmul.f32 %v3191, %v3219
    %v3224 = vmul.f32 %v3192, %v3220
    %v3225 = vmul.f32 %v3193, %v3221
    %v3226 = vlaneseq
    %v3227 = vshrl.u32 %v3226, 7
    %v3228 = vsub.s32 0, %v3227
    %v3229 = vrot.slane %v3173, %v3228
    %v3230 = vmul.f32 %v3222, %v3229
    %v3231 = vmul.f32 %v3223, %v3229
    %v3232 = vmul.f32 %v3224, %v3229
    %v3233 = vmul.f32 %v3225, %v3229
    %3235 = vrot.lane.b32.xlu0 %v3229, 96
    %v3236 = vpop.permute.xlu0 %3235
    %v3238 = vadd.f32 %v3230, %v3236
    %v3239 = vadd.f32 %v3231, %v3236
    %v3240 = vadd.f32 %v3232, %v3236
    %v3241 = vadd.f32 %v3233, %v3236
    %v3242 = vtanh.pop %v3238
    %v3243 = vtanh.pop %v3239
    %v3244 = vtanh.pop %v3240
    %v3245 = vtanh.pop %v3241
    %3246 = vst.msk [vmem:[#allocation2] sm:$0xff] %vm125, %v3242
    %3247 = vst.msk [vmem:[#allocation2 + $0x8] sm:$0xff] %vm125, %v3243
    %3248 = vst.msk [vmem:[#allocation2 + $0x10] sm:$0xff] %vm125, %v3244
    %3249 = vst.msk [vmem:[#allocation2 + $0x18] sm:$0xff] %vm125, %v3245
    // Predicated region
    $region14: #{vit_forward.1} parent=1 // pred_check
      _
    $region15: #{vit_forward.1} parent=1 // pred_check_branch
      %3251 = sbr.rel (0) target = $region17
    $region16: #{vit_forward.1} parent=1 // pred_region
      %s3253 = ssub.s32 512, 512
      %3254 = vsyncadd [#allocation3], %s3253
      %s3255 = sshll.u32 [#allocation2], 4
      %s3256 = int_to_ptr.vmem [resolvable:$true] %s3255
      %3261 = dma.vmem_to_hbm [thread:$0]  %s3256, 512, %s3, [#allocation3], 128, 128, 8
    $region17: #{vit_forward.1} parent=1 // pred_fallthru
      _
    // Predicated region
    $region18: #{vit_forward.1} parent=1 // pred_check
      _
    $region19: #{vit_forward.1} parent=1 // pred_check_branch
      %3263 = sbr.rel (0) target = $region21
    $region20: #{vit_forward.1} parent=1 // pred_region
      %3264 = dma.done [#allocation3], 512
    $region21: #{vit_forward.1} parent=1 // pred_fallthru
      _
    %3265 = vsyncpa [#allocation3], 1

</llo_original>
